<compile_context>
chip_gen: v5e
topology: v5e:2x2
jax: 0.10.0
libtpu: 0.0.40
codegen_flags: <defaults>
</compile_context>

<pallas_src>
import jax
import jax.numpy as jnp
from jax.experimental import pallas as pl
from jax.experimental.pallas import tpu as pltpu


def _elu(x):
    # ELU(alpha=1), f32 math (clamp arg so exp never overflows).
    return jnp.where(x > 0, x, jnp.exp(jnp.minimum(x, 0.0)) - 1.0)


def _elu2(x):
    # elu(elu(x)) collapsed into a single select:
    # for x <= 0, elu(x) = exp(x) - 1 in (-1, 0], so elu(elu(x)) = exp(exp(x)-1)-1.
    return jnp.where(x > 0, x, jnp.exp(jnp.exp(jnp.minimum(x, 0.0)) - 1.0) - 1.0)


# --------------------------------------------------------------------------
# Fused BottleNeck kernel: Down(conv3x3 s2 + ELU + ELU)
#                          -> [conv3x3 s1 + BN(batch stats) + ELU] x 2
#                          -> Up(ConvTranspose2d k2 s2 + ELU + ELU)
# Whole batch in one invocation (BatchNorm reduces over N,H,W); intermediate
# activations stay in a padded bf16 VMEM scratch.
# --------------------------------------------------------------------------
def bottleneck_kernel(dpat_ref, dw_ref, db_ref,
                      w1_ref, b1_ref, g1_ref, bb1_ref,
                      w2_ref, b2_ref, g2_ref, bb2_ref,
                      uw_ref, ub_ref,
                      o_ref, act_ref):
    # dpat_ref: (N, P, 9*C)   bf16  stride-2 im2col patches (taps on lane axis)
    # dw_ref:   (9*C, C2)     bf16
    # w1/w2:    (9*C2, C2)    bf16     uw_ref: (C2, 4*C) bf16
    # biases / BN params: (1, C2) or (1, 4*C) f32
    # o_ref:    (N, P, 4*C)   f32
    # act_ref:  (N, Ho+2, Wo+2, C2) bf16 scratch (zero border = conv padding)
    N, P, K0 = dpat_ref.shape
    Ho = act_ref.shape[1] - 2
    Wo = act_ref.shape[2] - 2
    C2 = act_ref.shape[3]

    # ---- Down: conv3x3 stride 2 as a single K=9*C matmul + bias + ELU+ELU ----
    y0 = jnp.dot(dpat_ref[...].reshape(N * P, K0), dw_ref[...],
                 preferred_element_type=jnp.float32) + db_ref[...]
    a0 = _elu2(y0)                                            # (N*P, C2) f32

    # Stage the activation in the padded VMEM scratch; border stays zero.
    act_ref[...] = jnp.zeros_like(act_ref)
    act_ref[:, 1:Ho + 1, 1:Wo + 1, :] = (
        a0.reshape(N, Ho, Wo, C2).astype(act_ref.dtype))

    cnt = float(N * P)

    def conv_bn_elu(w_ref, b_ref, g_ref, beta_ref, write_back):
        # In-kernel im2col: 9 unit-stride shifted views of the padded
        # activation, taps concatenated on the lane axis -> one K=9*C2 matmul.
        taps = []
        for kh in range(3):
            for kw in range(3):
                taps.append(
                    act_ref[:, kh:kh + Ho, kw:kw + Wo, :].reshape(N * P, C2))
        pat = jnp.concatenate(taps, axis=-1)                  # (N*P, 9*C2) bf16
        z = jnp.dot(pat, w_ref[...],
                    preferred_element_type=jnp.float32) + b_ref[...]
        # BatchNorm2d, training-mode batch stats, biased variance, f32.
        mean = jnp.sum(z, axis=0, keepdims=True) / cnt
        d = z - mean
        var = jnp.sum(d * d, axis=0, keepdims=True) / cnt
        a = _elu(d * (g_ref[...] * jax.lax.rsqrt(var + 1e-5)) + beta_ref[...])
        if write_back:
            act_ref[:, 1:Ho + 1, 1:Wo + 1, :] = (
                a.reshape(N, Ho, Wo, C2).astype(act_ref.dtype))
        return a

    conv_bn_elu(w1_ref, b1_ref, g1_ref, bb1_ref, write_back=True)
    a2 = conv_bn_elu(w2_ref, b2_ref, g2_ref, bb2_ref, write_back=False)

    # ---- Up: ConvTranspose2d(k=2, s=2) = single matmul to (N*P, 4*C) ----
    y = jnp.dot(a2.astype(uw_ref.dtype), uw_ref[...],
                preferred_element_type=jnp.float32) + ub_ref[...]
    o_ref[...] = _elu2(y).reshape(o_ref.shape).astype(o_ref.dtype)


# --------------------------------------------------------------------------
# BottleNeck forward (NCHW in, NCHW out).  Only layout glue lives in JAX:
# the stride-2 im2col of the (small) input and the final pixel shuffle.
# --------------------------------------------------------------------------
def bottleneck_forward(x_nchw, params):
    x = jnp.transpose(x_nchw, (0, 2, 3, 1)).astype(jnp.float32)   # -> NHWC
    N, H, W, C = x.shape
    C2 = 2 * C
    Ho, Wo = H // 2, W // 2
    P = Ho * Wo

    # Stride-2 im2col for the down conv, taps concatenated on the lane axis.
    xp = jnp.pad(x, ((0, 0), (1, 1), (1, 1), (0, 0)))
    taps = []
    for kh in range(3):
        for kw in range(3):
            taps.append(
                xp[:, kh:kh + 2 * Ho:2, kw:kw + 2 * Wo:2, :].reshape(N, P, C))
    dpat = jnp.concatenate(taps, axis=-1).astype(jnp.bfloat16)    # (N, P, 9*C)

    vmem = pl.BlockSpec(memory_space=pltpu.MemorySpace.VMEM)
    out = pl.pallas_call(
        bottleneck_kernel,
        out_shape=jax.ShapeDtypeStruct((N, P, 4 * C), jnp.float32),
        in_specs=[vmem] * 13,
        out_specs=vmem,
        scratch_shapes=[pltpu.VMEM((N, Ho + 2, Wo + 2, C2), jnp.bfloat16)],
        compiler_params=pltpu.CompilerParams(
            vmem_limit_bytes=32 * 1024 * 1024),
    )(dpat,
      params["down_w"], params["down_b"],
      params["conv1_w"], params["conv1_b"], params["bn1_g"], params["bn1_b"],
      params["conv2_w"], params["conv2_b"], params["bn2_g"], params["bn2_b"],
      params["up_w"], params["up_b4"])

    # Pixel-shuffle assembly (pure layout glue): lane index = (a*2+b)*C + cout.
    y = (out.reshape(N, Ho, Wo, 2, 2, C)
            .transpose(0, 1, 3, 2, 4, 5)
            .reshape(N, 2 * Ho, 2 * Wo, C))
    return jnp.transpose(y, (0, 3, 1, 2))                         # back to NCHW


# --------------------------------------------------------------------------
# Pure-JAX f32 reference (XLA ops) for correctness checking.
# --------------------------------------------------------------------------
def ref_forward(x_nchw, tp):
    x = jnp.transpose(x_nchw, (0, 2, 3, 1)).astype(jnp.float32)

    def conv(x, w_t, b, s):
        w = jnp.transpose(w_t, (2, 3, 1, 0))   # torch OIHW -> HWIO
        y = jax.lax.conv_general_dilated(
            x, w, (s, s), ((1, 1), (1, 1)),
            dimension_numbers=("NHWC", "HWIO", "NHWC"))
        return y + b

    def bn(x, g, b):
        m = jnp.mean(x, axis=(0, 1, 2), keepdims=True)
        v = jnp.var(x, axis=(0, 1, 2), keepdims=True)
        return g * (x - m) * jax.lax.rsqrt(v + 1e-5) + b

    c = _elu(_elu(conv(x, tp["down_w"], tp["down_b"], 2)))
    c = _elu(bn(conv(c, tp["conv1_w"], tp["conv1_b"], 1), tp["bn1_g"], tp["bn1_b"]))
    c = _elu(bn(conv(c, tp["conv2_w"], tp["conv2_b"], 1), tp["bn2_g"], tp["bn2_b"]))

    N, Hc, Wc, _ = c.shape
    Co = tp["up_w"].shape[1]
    y4 = jnp.einsum("nijk,kcab->nijabc", c, tp["up_w"])
    out = jnp.zeros((N, 2 * Hc, 2 * Wc, Co), jnp.float32)
    for a in range(2):
        for b_ in range(2):
            out = out.at[:, a::2, b_::2, :].set(y4[:, :, :, a, b_, :] + tp["up_b"])
    out = _elu(_elu(out))
    return jnp.transpose(out, (0, 3, 1, 2))


if __name__ == "__main__":
    N, C, H, W = 2, 4, 16, 16
    C2 = 2 * C

    keys = jax.random.split(jax.random.PRNGKey(0), 13)

    def u(k, shape, fan_in):
        bnd = 1.0 / float(fan_in) ** 0.5
        return jax.random.uniform(k, shape, jnp.float32, -bnd, bnd)

    # deterministic parameters in PyTorch layouts
    tparams = {
        "down_w": u(keys[0], (C2, C, 3, 3), C * 9),  "down_b": u(keys[1], (C2,), C * 9),
        "conv1_w": u(keys[2], (C2, C2, 3, 3), C2 * 9), "conv1_b": u(keys[3], (C2,), C2 * 9),
        "conv2_w": u(keys[4], (C2, C2, 3, 3), C2 * 9), "conv2_b": u(keys[5], (C2,), C2 * 9),
        "bn1_g": 1.0 + 0.1 * jax.random.normal(keys[6], (C2,), jnp.float32),
        "bn1_b": 0.1 * jax.random.normal(keys[7], (C2,), jnp.float32),
        "bn2_g": 1.0 + 0.1 * jax.random.normal(keys[8], (C2,), jnp.float32),
        "bn2_b": 0.1 * jax.random.normal(keys[9], (C2,), jnp.float32),
        "up_w": u(keys[10], (C2, C, 2, 2), C2 * 4),  "up_b": u(keys[11], (C,), C2 * 4),
    }

    # rearrange to kernel layouts (matmul operands in bf16, bias/BN in f32)
    params = {
        "down_w": jnp.transpose(tparams["down_w"], (2, 3, 1, 0)).reshape(9 * C, C2).astype(jnp.bfloat16),
        "down_b": tparams["down_b"].reshape(1, C2),
        "conv1_w": jnp.transpose(tparams["conv1_w"], (2, 3, 1, 0)).reshape(9 * C2, C2).astype(jnp.bfloat16),
        "conv1_b": tparams["conv1_b"].reshape(1, C2),
        "conv2_w": jnp.transpose(tparams["conv2_w"], (2, 3, 1, 0)).reshape(9 * C2, C2).astype(jnp.bfloat16),
        "conv2_b": tparams["conv2_b"].reshape(1, C2),
        "bn1_g": tparams["bn1_g"].reshape(1, C2), "bn1_b": tparams["bn1_b"].reshape(1, C2),
        "bn2_g": tparams["bn2_g"].reshape(1, C2), "bn2_b": tparams["bn2_b"].reshape(1, C2),
        # (cin, cout, a, b) -> (cin, a, b, cout) -> (C2, 4*C): lane = (a*2+b)*C + cout
        "up_w": jnp.transpose(tparams["up_w"], (0, 2, 3, 1)).reshape(C2, 4 * C).astype(jnp.bfloat16),
        "up_b4": jnp.tile(tparams["up_b"].reshape(1, C), (1, 4)),
    }

    x = jax.random.normal(keys[12], (N, C, H, W), jnp.float32)

    out = jax.block_until_ready(bottleneck_forward(x, params))
    ref = jax.block_until_ready(ref_forward(x, tparams))

    assert out.shape == (N, C, H, W), out.shape
    # bf16 MXU operands + bf16 staged activations -> compare with bf16-level tolerance
    assert jnp.allclose(out, ref, rtol=5e-2, atol=5e-2), float(jnp.max(jnp.abs(out - ref)))

    print("KERNEL_OK")
</pallas_src>

<mosaic_0001>
module attributes {stable_mosaic.version = 11 : i64} {
  func.func @bottleneck_kernel(%arg0: memref<2x64x36xbf16, #tpu.memory_space<vmem>>, %arg1: memref<36x8xbf16, #tpu.memory_space<vmem>>, %arg2: memref<1x8xf32, #tpu.memory_space<vmem>>, %arg3: memref<72x8xbf16, #tpu.memory_space<vmem>>, %arg4: memref<1x8xf32, #tpu.memory_space<vmem>>, %arg5: memref<1x8xf32, #tpu.memory_space<vmem>>, %arg6: memref<1x8xf32, #tpu.memory_space<vmem>>, %arg7: memref<72x8xbf16, #tpu.memory_space<vmem>>, %arg8: memref<1x8xf32, #tpu.memory_space<vmem>>, %arg9: memref<1x8xf32, #tpu.memory_space<vmem>>, %arg10: memref<1x8xf32, #tpu.memory_space<vmem>>, %arg11: memref<8x16xbf16, #tpu.memory_space<vmem>>, %arg12: memref<1x16xf32, #tpu.memory_space<vmem>>, %arg13: memref<2x64x16xf32, #tpu.memory_space<vmem>>, %arg14: memref<2x10x10x8xbf16, #tpu.memory_space<vmem>>) attributes {dimension_semantics = [], scalar_prefetch = 0 : i64, scratch_operands = 1 : i64, tpu.core_type = #tpu.core_type<tc>} {
    %c0 = arith.constant 0 : index
    %c0_0 = arith.constant 0 : index
    %c0_1 = arith.constant 0 : index
    %0 = vector.load %arg0[%c0, %c0_0, %c0_1] : memref<2x64x36xbf16, #tpu.memory_space<vmem>>, vector<2x64x36xbf16>
    %1 = vector.shape_cast %0 : vector<2x64x36xbf16> to vector<128x36xbf16>
    %c0_2 = arith.constant 0 : index
    %c0_3 = arith.constant 0 : index
    %2 = vector.load %arg1[%c0_2, %c0_3] : memref<36x8xbf16, #tpu.memory_space<vmem>>, vector<36x8xbf16>
    %cst = arith.constant dense<0.000000e+00> : vector<128x8xf32>
    %3 = tpu.matmul %1, %2, %cst {dimension_numbers = #tpu.dot_dimension_numbers<[1], [0], [0], [1], [0, 0, 1, 1], [], []>} : vector<128x36xbf16>, vector<36x8xbf16>, vector<128x8xf32> -> vector<128x8xf32>
    %c0_4 = arith.constant 0 : index
    %c0_5 = arith.constant 0 : index
    %4 = vector.load %arg2[%c0_4, %c0_5] : memref<1x8xf32, #tpu.memory_space<vmem>>, vector<1x8xf32>
    %5 = vector.broadcast %4 : vector<1x8xf32> to vector<128x8xf32>
    %6 = arith.addf %3, %5 : vector<128x8xf32>
    %cst_6 = arith.constant 0.000000e+00 : f32
    %7 = vector.broadcast %cst_6 : f32 to vector<128x8xf32>
    %8 = arith.cmpf ogt, %6, %7 : vector<128x8xf32>
    %cst_7 = arith.constant 0.000000e+00 : f32
    %9 = vector.broadcast %cst_7 : f32 to vector<128x8xf32>
    %10 = arith.minimumf %6, %9 : vector<128x8xf32>
    %11 = math.exp %10 : vector<128x8xf32>
    %cst_8 = arith.constant 1.000000e+00 : f32
    %12 = vector.broadcast %cst_8 : f32 to vector<128x8xf32>
    %13 = arith.subf %11, %12 : vector<128x8xf32>
    %14 = math.exp %13 : vector<128x8xf32>
    %cst_9 = arith.constant 1.000000e+00 : f32
    %15 = vector.broadcast %cst_9 : f32 to vector<128x8xf32>
    %16 = arith.subf %14, %15 : vector<128x8xf32>
    %17 = arith.select %8, %6, %16 : vector<128x8xi1>, vector<128x8xf32>
    %cst_10 = arith.constant 0.000000e+00 : bf16
    %18 = vector.broadcast %cst_10 : bf16 to vector<2x10x10x8xbf16>
    %c0_11 = arith.constant 0 : index
    %c0_12 = arith.constant 0 : index
    %c0_13 = arith.constant 0 : index
    %c0_14 = arith.constant 0 : index
    %19 = vector.load %arg14[%c0_11, %c0_12, %c0_13, %c0_14] : memref<2x10x10x8xbf16, #tpu.memory_space<vmem>>, vector<2x10x10x8xbf16>
    tpu.vector_store %arg14[%c0_11, %c0_12, %c0_13, %c0_14], %18 {strides = array<i32>} : memref<2x10x10x8xbf16, #tpu.memory_space<vmem>>, vector<2x10x10x8xbf16>,
    %20 = vector.shape_cast %17 : vector<128x8xf32> to vector<2x8x8x8xf32>
    %21 = arith.truncf %20 : vector<2x8x8x8xf32> to vector<2x8x8x8xbf16>
    %c0_15 = arith.constant 0 : index
    %c1 = arith.constant 1 : index
    %c1_16 = arith.constant 1 : index
    %c0_17 = arith.constant 0 : index
    %22 = vector.load %arg14[%c0_15, %c1, %c1_16, %c0_17] : memref<2x10x10x8xbf16, #tpu.memory_space<vmem>>, vector<2x8x8x8xbf16>
    tpu.vector_store %arg14[%c0_15, %c1, %c1_16, %c0_17], %21 {strides = array<i32>} : memref<2x10x10x8xbf16, #tpu.memory_space<vmem>>, vector<2x8x8x8xbf16>,
    %c0_18 = arith.constant 0 : index
    %c0_19 = arith.constant 0 : index
    %c0_20 = arith.constant 0 : index
    %c0_21 = arith.constant 0 : index
    %23 = vector.load %arg14[%c0_18, %c0_19, %c0_20, %c0_21] : memref<2x10x10x8xbf16, #tpu.memory_space<vmem>>, vector<2x8x8x8xbf16>
    %24 = vector.shape_cast %23 : vector<2x8x8x8xbf16> to vector<128x8xbf16>
    %c0_22 = arith.constant 0 : index
    %c0_23 = arith.constant 0 : index
    %c1_24 = arith.constant 1 : index
    %c0_25 = arith.constant 0 : index
    %25 = vector.load %arg14[%c0_22, %c0_23, %c1_24, %c0_25] : memref<2x10x10x8xbf16, #tpu.memory_space<vmem>>, vector<2x8x8x8xbf16>
    %26 = vector.shape_cast %25 : vector<2x8x8x8xbf16> to vector<128x8xbf16>
    %c0_26 = arith.constant 0 : index
    %c0_27 = arith.constant 0 : index
    %c2 = arith.constant 2 : index
    %c0_28 = arith.constant 0 : index
    %27 = vector.load %arg14[%c0_26, %c0_27, %c2, %c0_28] : memref<2x10x10x8xbf16, #tpu.memory_space<vmem>>, vector<2x8x8x8xbf16>
    %28 = vector.shape_cast %27 : vector<2x8x8x8xbf16> to vector<128x8xbf16>
    %c0_29 = arith.constant 0 : index
    %c1_30 = arith.constant 1 : index
    %c0_31 = arith.constant 0 : index
    %c0_32 = arith.constant 0 : index
    %29 = vector.load %arg14[%c0_29, %c1_30, %c0_31, %c0_32] : memref<2x10x10x8xbf16, #tpu.memory_space<vmem>>, vector<2x8x8x8xbf16>
    %30 = vector.shape_cast %29 : vector<2x8x8x8xbf16> to vector<128x8xbf16>
    %c0_33 = arith.constant 0 : index
    %c1_34 = arith.constant 1 : index
    %c1_35 = arith.constant 1 : index
    %c0_36 = arith.constant 0 : index
    %31 = vector.load %arg14[%c0_33, %c1_34, %c1_35, %c0_36] : memref<2x10x10x8xbf16, #tpu.memory_space<vmem>>, vector<2x8x8x8xbf16>
    %32 = vector.shape_cast %31 : vector<2x8x8x8xbf16> to vector<128x8xbf16>
    %c0_37 = arith.constant 0 : index
    %c1_38 = arith.constant 1 : index
    %c2_39 = arith.constant 2 : index
    %c0_40 = arith.constant 0 : index
    %33 = vector.load %arg14[%c0_37, %c1_38, %c2_39, %c0_40] : memref<2x10x10x8xbf16, #tpu.memory_space<vmem>>, vector<2x8x8x8xbf16>
    %34 = vector.shape_cast %33 : vector<2x8x8x8xbf16> to vector<128x8xbf16>
    %c0_41 = arith.constant 0 : index
    %c2_42 = arith.constant 2 : index
    %c0_43 = arith.constant 0 : index
    %c0_44 = arith.constant 0 : index
    %35 = vector.load %arg14[%c0_41, %c2_42, %c0_43, %c0_44] : memref<2x10x10x8xbf16, #tpu.memory_space<vmem>>, vector<2x8x8x8xbf16>
    %36 = vector.shape_cast %35 : vector<2x8x8x8xbf16> to vector<128x8xbf16>
    %c0_45 = arith.constant 0 : index
    %c2_46 = arith.constant 2 : index
    %c1_47 = arith.constant 1 : index
    %c0_48 = arith.constant 0 : index
    %37 = vector.load %arg14[%c0_45, %c2_46, %c1_47, %c0_48] : memref<2x10x10x8xbf16, #tpu.memory_space<vmem>>, vector<2x8x8x8xbf16>
    %38 = vector.shape_cast %37 : vector<2x8x8x8xbf16> to vector<128x8xbf16>
    %c0_49 = arith.constant 0 : index
    %c2_50 = arith.constant 2 : index
    %c2_51 = arith.constant 2 : index
    %c0_52 = arith.constant 0 : index
    %39 = vector.load %arg14[%c0_49, %c2_50, %c2_51, %c0_52] : memref<2x10x10x8xbf16, #tpu.memory_space<vmem>>, vector<2x8x8x8xbf16>
    %40 = vector.shape_cast %39 : vector<2x8x8x8xbf16> to vector<128x8xbf16>
    %41 = tpu.concatenate %24, %26, %28, %30, %32, %34, %36, %38, %40 in 1 : vector<128x8xbf16>, vector<128x8xbf16>, vector<128x8xbf16>, vector<128x8xbf16>, vector<128x8xbf16>, vector<128x8xbf16>, vector<128x8xbf16>, vector<128x8xbf16>, vector<128x8xbf16> -> vector<128x72xbf16>
    %c0_53 = arith.constant 0 : index
    %c0_54 = arith.constant 0 : index
    %42 = vector.load %arg3[%c0_53, %c0_54] : memref<72x8xbf16, #tpu.memory_space<vmem>>, vector<72x8xbf16>
    %cst_55 = arith.constant dense<0.000000e+00> : vector<128x8xf32>
    %43 = tpu.matmul %41, %42, %cst_55 {dimension_numbers = #tpu.dot_dimension_numbers<[1], [0], [0], [1], [0, 0, 1, 1], [], []>} : vector<128x72xbf16>, vector<72x8xbf16>, vector<128x8xf32> -> vector<128x8xf32>
    %c0_56 = arith.constant 0 : index
    %c0_57 = arith.constant 0 : index
    %44 = vector.load %arg4[%c0_56, %c0_57] : memref<1x8xf32, #tpu.memory_space<vmem>>, vector<1x8xf32>
    %45 = vector.broadcast %44 : vector<1x8xf32> to vector<128x8xf32>
    %46 = arith.addf %43, %45 : vector<128x8xf32>
    %cst_58 = arith.constant dense<0.000000e+00> : vector<8xf32>
    %47 = vector.multi_reduction <add>, %46, %cst_58 [0] : vector<128x8xf32> to vector<8xf32>
    %48 = vector.shape_cast %47 : vector<8xf32> to vector<1x8xf32>
    %cst_59 = arith.constant 1.280000e+02 : f32
    %49 = vector.broadcast %cst_59 : f32 to vector<1x8xf32>
    %50 = arith.divf %48, %49 : vector<1x8xf32>
    %51 = vector.broadcast %50 : vector<1x8xf32> to vector<128x8xf32>
    %52 = arith.subf %46, %51 : vector<128x8xf32>
    %53 = arith.mulf %52, %52 : vector<128x8xf32>
    %cst_60 = arith.constant dense<0.000000e+00> : vector<8xf32>
    %54 = vector.multi_reduction <add>, %53, %cst_60 [0] : vector<128x8xf32> to vector<8xf32>
    %55 = vector.shape_cast %54 : vector<8xf32> to vector<1x8xf32>
    %cst_61 = arith.constant 1.280000e+02 : f32
    %56 = vector.broadcast %cst_61 : f32 to vector<1x8xf32>
    %57 = arith.divf %55, %56 : vector<1x8xf32>
    %c0_62 = arith.constant 0 : index
    %c0_63 = arith.constant 0 : index
    %58 = vector.load %arg5[%c0_62, %c0_63] : memref<1x8xf32, #tpu.memory_space<vmem>>, vector<1x8xf32>
    %cst_64 = arith.constant 9.99999974E-6 : f32
    %59 = vector.broadcast %cst_64 : f32 to vector<1x8xf32>
    %60 = arith.addf %57, %59 : vector<1x8xf32>
    %61 = math.rsqrt %60 : vector<1x8xf32>
    %62 = arith.mulf %58, %61 : vector<1x8xf32>
    %63 = vector.broadcast %62 : vector<1x8xf32> to vector<128x8xf32>
    %64 = arith.mulf %52, %63 : vector<128x8xf32>
    %c0_65 = arith.constant 0 : index
    %c0_66 = arith.constant 0 : index
    %65 = vector.load %arg6[%c0_65, %c0_66] : memref<1x8xf32, #tpu.memory_space<vmem>>, vector<1x8xf32>
    %66 = vector.broadcast %65 : vector<1x8xf32> to vector<128x8xf32>
    %67 = arith.addf %64, %66 : vector<128x8xf32>
    %cst_67 = arith.constant 0.000000e+00 : f32
    %68 = vector.broadcast %cst_67 : f32 to vector<128x8xf32>
    %69 = arith.cmpf ogt, %67, %68 : vector<128x8xf32>
    %cst_68 = arith.constant 0.000000e+00 : f32
    %70 = vector.broadcast %cst_68 : f32 to vector<128x8xf32>
    %71 = arith.minimumf %67, %70 : vector<128x8xf32>
    %72 = math.exp %71 : vector<128x8xf32>
    %cst_69 = arith.constant 1.000000e+00 : f32
    %73 = vector.broadcast %cst_69 : f32 to vector<128x8xf32>
    %74 = arith.subf %72, %73 : vector<128x8xf32>
    %75 = arith.select %69, %67, %74 : vector<128x8xi1>, vector<128x8xf32>
    %76 = vector.shape_cast %75 : vector<128x8xf32> to vector<2x8x8x8xf32>
    %77 = arith.truncf %76 : vector<2x8x8x8xf32> to vector<2x8x8x8xbf16>
    %c0_70 = arith.constant 0 : index
    %c1_71 = arith.constant 1 : index
    %c1_72 = arith.constant 1 : index
    %c0_73 = arith.constant 0 : index
    %78 = vector.load %arg14[%c0_70, %c1_71, %c1_72, %c0_73] : memref<2x10x10x8xbf16, #tpu.memory_space<vmem>>, vector<2x8x8x8xbf16>
    tpu.vector_store %arg14[%c0_70, %c1_71, %c1_72, %c0_73], %77 {strides = array<i32>} : memref<2x10x10x8xbf16, #tpu.memory_space<vmem>>, vector<2x8x8x8xbf16>,
    %c0_74 = arith.constant 0 : index
    %c0_75 = arith.constant 0 : index
    %c0_76 = arith.constant 0 : index
    %c0_77 = arith.constant 0 : index
    %79 = vector.load %arg14[%c0_74, %c0_75, %c0_76, %c0_77] : memref<2x10x10x8xbf16, #tpu.memory_space<vmem>>, vector<2x8x8x8xbf16>
    %80 = vector.shape_cast %79 : vector<2x8x8x8xbf16> to vector<128x8xbf16>
    %c0_78 = arith.constant 0 : index
    %c0_79 = arith.constant 0 : index
    %c1_80 = arith.constant 1 : index
    %c0_81 = arith.constant 0 : index
    %81 = vector.load %arg14[%c0_78, %c0_79, %c1_80, %c0_81] : memref<2x10x10x8xbf16, #tpu.memory_space<vmem>>, vector<2x8x8x8xbf16>
    %82 = vector.shape_cast %81 : vector<2x8x8x8xbf16> to vector<128x8xbf16>
    %c0_82 = arith.constant 0 : index
    %c0_83 = arith.constant 0 : index
    %c2_84 = arith.constant 2 : index
    %c0_85 = arith.constant 0 : index
    %83 = vector.load %arg14[%c0_82, %c0_83, %c2_84, %c0_85] : memref<2x10x10x8xbf16, #tpu.memory_space<vmem>>, vector<2x8x8x8xbf16>
    %84 = vector.shape_cast %83 : vector<2x8x8x8xbf16> to vector<128x8xbf16>
    %c0_86 = arith.constant 0 : index
    %c1_87 = arith.constant 1 : index
    %c0_88 = arith.constant 0 : index
    %c0_89 = arith.constant 0 : index
    %85 = vector.load %arg14[%c0_86, %c1_87, %c0_88, %c0_89] : memref<2x10x10x8xbf16, #tpu.memory_space<vmem>>, vector<2x8x8x8xbf16>
    %86 = vector.shape_cast %85 : vector<2x8x8x8xbf16> to vector<128x8xbf16>
    %c0_90 = arith.constant 0 : index
    %c1_91 = arith.constant 1 : index
    %c1_92 = arith.constant 1 : index
    %c0_93 = arith.constant 0 : index
    %87 = vector.load %arg14[%c0_90, %c1_91, %c1_92, %c0_93] : memref<2x10x10x8xbf16, #tpu.memory_space<vmem>>, vector<2x8x8x8xbf16>
    %88 = vector.shape_cast %87 : vector<2x8x8x8xbf16> to vector<128x8xbf16>
    %c0_94 = arith.constant 0 : index
    %c1_95 = arith.constant 1 : index
    %c2_96 = arith.constant 2 : index
    %c0_97 = arith.constant 0 : index
    %89 = vector.load %arg14[%c0_94, %c1_95, %c2_96, %c0_97] : memref<2x10x10x8xbf16, #tpu.memory_space<vmem>>, vector<2x8x8x8xbf16>
    %90 = vector.shape_cast %89 : vector<2x8x8x8xbf16> to vector<128x8xbf16>
    %c0_98 = arith.constant 0 : index
    %c2_99 = arith.constant 2 : index
    %c0_100 = arith.constant 0 : index
    %c0_101 = arith.constant 0 : index
    %91 = vector.load %arg14[%c0_98, %c2_99, %c0_100, %c0_101] : memref<2x10x10x8xbf16, #tpu.memory_space<vmem>>, vector<2x8x8x8xbf16>
    %92 = vector.shape_cast %91 : vector<2x8x8x8xbf16> to vector<128x8xbf16>
    %c0_102 = arith.constant 0 : index
    %c2_103 = arith.constant 2 : index
    %c1_104 = arith.constant 1 : index
    %c0_105 = arith.constant 0 : index
    %93 = vector.load %arg14[%c0_102, %c2_103, %c1_104, %c0_105] : memref<2x10x10x8xbf16, #tpu.memory_space<vmem>>, vector<2x8x8x8xbf16>
    %94 = vector.shape_cast %93 : vector<2x8x8x8xbf16> to vector<128x8xbf16>
    %c0_106 = arith.constant 0 : index
    %c2_107 = arith.constant 2 : index
    %c2_108 = arith.constant 2 : index
    %c0_109 = arith.constant 0 : index
    %95 = vector.load %arg14[%c0_106, %c2_107, %c2_108, %c0_109] : memref<2x10x10x8xbf16, #tpu.memory_space<vmem>>, vector<2x8x8x8xbf16>
    %96 = vector.shape_cast %95 : vector<2x8x8x8xbf16> to vector<128x8xbf16>
    %97 = tpu.concatenate %80, %82, %84, %86, %88, %90, %92, %94, %96 in 1 : vector<128x8xbf16>, vector<128x8xbf16>, vector<128x8xbf16>, vector<128x8xbf16>, vector<128x8xbf16>, vector<128x8xbf16>, vector<128x8xbf16>, vector<128x8xbf16>, vector<128x8xbf16> -> vector<128x72xbf16>
    %c0_110 = arith.constant 0 : index
    %c0_111 = arith.constant 0 : index
    %98 = vector.load %arg7[%c0_110, %c0_111] : memref<72x8xbf16, #tpu.memory_space<vmem>>, vector<72x8xbf16>
    %cst_112 = arith.constant dense<0.000000e+00> : vector<128x8xf32>
    %99 = tpu.matmul %97, %98, %cst_112 {dimension_numbers = #tpu.dot_dimension_numbers<[1], [0], [0], [1], [0, 0, 1, 1], [], []>} : vector<128x72xbf16>, vector<72x8xbf16>, vector<128x8xf32> -> vector<128x8xf32>
    %c0_113 = arith.constant 0 : index
    %c0_114 = arith.constant 0 : index
    %100 = vector.load %arg8[%c0_113, %c0_114] : memref<1x8xf32, #tpu.memory_space<vmem>>, vector<1x8xf32>
    %101 = vector.broadcast %100 : vector<1x8xf32> to vector<128x8xf32>
    %102 = arith.addf %99, %101 : vector<128x8xf32>
    %cst_115 = arith.constant dense<0.000000e+00> : vector<8xf32>
    %103 = vector.multi_reduction <add>, %102, %cst_115 [0] : vector<128x8xf32> to vector<8xf32>
    %104 = vector.shape_cast %103 : vector<8xf32> to vector<1x8xf32>
    %cst_116 = arith.constant 1.280000e+02 : f32
    %105 = vector.broadcast %cst_116 : f32 to vector<1x8xf32>
    %106 = arith.divf %104, %105 : vector<1x8xf32>
    %107 = vector.broadcast %106 : vector<1x8xf32> to vector<128x8xf32>
    %108 = arith.subf %102, %107 : vector<128x8xf32>
    %109 = arith.mulf %108, %108 : vector<128x8xf32>
    %cst_117 = arith.constant dense<0.000000e+00> : vector<8xf32>
    %110 = vector.multi_reduction <add>, %109, %cst_117 [0] : vector<128x8xf32> to vector<8xf32>
    %111 = vector.shape_cast %110 : vector<8xf32> to vector<1x8xf32>
    %cst_118 = arith.constant 1.280000e+02 : f32
    %112 = vector.broadcast %cst_118 : f32 to vector<1x8xf32>
    %113 = arith.divf %111, %112 : vector<1x8xf32>
    %c0_119 = arith.constant 0 : index
    %c0_120 = arith.constant 0 : index
    %114 = vector.load %arg9[%c0_119, %c0_120] : memref<1x8xf32, #tpu.memory_space<vmem>>, vector<1x8xf32>
    %cst_121 = arith.constant 9.99999974E-6 : f32
    %115 = vector.broadcast %cst_121 : f32 to vector<1x8xf32>
    %116 = arith.addf %113, %115 : vector<1x8xf32>
    %117 = math.rsqrt %116 : vector<1x8xf32>
    %118 = arith.mulf %114, %117 : vector<1x8xf32>
    %119 = vector.broadcast %118 : vector<1x8xf32> to vector<128x8xf32>
    %120 = arith.mulf %108, %119 : vector<128x8xf32>
    %c0_122 = arith.constant 0 : index
    %c0_123 = arith.constant 0 : index
    %121 = vector.load %arg10[%c0_122, %c0_123] : memref<1x8xf32, #tpu.memory_space<vmem>>, vector<1x8xf32>
    %122 = vector.broadcast %121 : vector<1x8xf32> to vector<128x8xf32>
    %123 = arith.addf %120, %122 : vector<128x8xf32>
    %cst_124 = arith.constant 0.000000e+00 : f32
    %124 = vector.broadcast %cst_124 : f32 to vector<128x8xf32>
    %125 = arith.cmpf ogt, %123, %124 : vector<128x8xf32>
    %cst_125 = arith.constant 0.000000e+00 : f32
    %126 = vector.broadcast %cst_125 : f32 to vector<128x8xf32>
    %127 = arith.minimumf %123, %126 : vector<128x8xf32>
    %128 = math.exp %127 : vector<128x8xf32>
    %cst_126 = arith.constant 1.000000e+00 : f32
    %129 = vector.broadcast %cst_126 : f32 to vector<128x8xf32>
    %130 = arith.subf %128, %129 : vector<128x8xf32>
    %131 = arith.select %125, %123, %130 : vector<128x8xi1>, vector<128x8xf32>
    %132 = arith.truncf %131 : vector<128x8xf32> to vector<128x8xbf16>
    %c0_127 = arith.constant 0 : index
    %c0_128 = arith.constant 0 : index
    %133 = vector.load %arg11[%c0_127, %c0_128] : memref<8x16xbf16, #tpu.memory_space<vmem>>, vector<8x16xbf16>
    %cst_129 = arith.constant dense<0.000000e+00> : vector<128x16xf32>
    %134 = tpu.matmul %132, %133, %cst_129 {dimension_numbers = #tpu.dot_dimension_numbers<[1], [0], [0], [1], [0, 0, 1, 1], [], []>} : vector<128x8xbf16>, vector<8x16xbf16>, vector<128x16xf32> -> vector<128x16xf32>
    %c0_130 = arith.constant 0 : index
    %c0_131 = arith.constant 0 : index
    %135 = vector.load %arg12[%c0_130, %c0_131] : memref<1x16xf32, #tpu.memory_space<vmem>>, vector<1x16xf32>
    %136 = vector.broadcast %135 : vector<1x16xf32> to vector<128x16xf32>
    %137 = arith.addf %134, %136 : vector<128x16xf32>
    %cst_132 = arith.constant 0.000000e+00 : f32
    %138 = vector.broadcast %cst_132 : f32 to vector<128x16xf32>
    %139 = arith.cmpf ogt, %137, %138 : vector<128x16xf32>
    %cst_133 = arith.constant 0.000000e+00 : f32
    %140 = vector.broadcast %cst_133 : f32 to vector<128x16xf32>
    %141 = arith.minimumf %137, %140 : vector<128x16xf32>
    %142 = math.exp %141 : vector<128x16xf32>
    %cst_134 = arith.constant 1.000000e+00 : f32
    %143 = vector.broadcast %cst_134 : f32 to vector<128x16xf32>
    %144 = arith.subf %142, %143 : vector<128x16xf32>
    %145 = math.exp %144 : vector<128x16xf32>
    %cst_135 = arith.constant 1.000000e+00 : f32
    %146 = vector.broadcast %cst_135 : f32 to vector<128x16xf32>
    %147 = arith.subf %145, %146 : vector<128x16xf32>
    %148 = arith.select %139, %137, %147 : vector<128x16xi1>, vector<128x16xf32>
    %149 = vector.shape_cast %148 : vector<128x16xf32> to vector<2x64x16xf32>
    %c0_136 = arith.constant 0 : index
    %c0_137 = arith.constant 0 : index
    %c0_138 = arith.constant 0 : index
    %150 = vector.load %arg13[%c0_136, %c0_137, %c0_138] : memref<2x64x16xf32, #tpu.memory_space<vmem>>, vector<2x64x16xf32>
    tpu.vector_store %arg13[%c0_136, %c0_137, %c0_138], %149 {strides = array<i32>} : memref<2x64x16xf32, #tpu.memory_space<vmem>>, vector<2x64x16xf32>,
    return
  }
}

</mosaic_0001>

<llo_original>
// kernel: tpu_custom_call.1
$region0: #{tpu_custom_call.1}
  #allocation0 [shape = 'u32[]', space=smem, size = 0x4, offset = 0x4, fixed_abs, tag = 'smem constant byte address 0x4 - core index']
  #allocation1 [shape = 'u32[72,128]{1,0:T(1,128)}', space=vmem, size = 0x9000, scoped, tag = 'internal scratch']
  #allocation2 [shape = 'bf16[2,10,10,8]{3,2,1,0:T(8,128)(2,1)}', space=vmem, size = 0x14000, scoped, tag = 'scratch operand']
  %s0 = inlined_call_operand.vmem [shape: bf16[2,64,36], index: 0, kind: input, shape index: {}]
  %s1 = inlined_call_operand.vmem [shape: bf16[36,8], index: 1, kind: input, shape index: {}]
  %s2 = inlined_call_operand.vmem [shape: f32[1,8], index: 2, kind: input, shape index: {}]
  %s3 = inlined_call_operand.vmem [shape: bf16[72,8], index: 3, kind: input, shape index: {}]
  %s4 = inlined_call_operand.vmem [shape: f32[1,8], index: 4, kind: input, shape index: {}]
  %s5 = inlined_call_operand.vmem [shape: f32[1,8], index: 5, kind: input, shape index: {}]
  %s6 = inlined_call_operand.vmem [shape: f32[1,8], index: 6, kind: input, shape index: {}]
  %s7 = inlined_call_operand.vmem [shape: bf16[72,8], index: 7, kind: input, shape index: {}]
  %s8 = inlined_call_operand.vmem [shape: f32[1,8], index: 8, kind: input, shape index: {}]
  %s9 = inlined_call_operand.vmem [shape: f32[1,8], index: 9, kind: input, shape index: {}]
  %s10 = inlined_call_operand.vmem [shape: f32[1,8], index: 10, kind: input, shape index: {}]
  %s11 = inlined_call_operand.vmem [shape: bf16[8,16], index: 11, kind: input, shape index: {}]
  %s12 = inlined_call_operand.vmem [shape: f32[1,16], index: 12, kind: input, shape index: {}]
  %s13 = inlined_call_operand.vmem [shape: f32[2,64,16], index: 13, kind: output, shape index: {}]
  %s14 = sld [smem:[#allocation0]]
  $region62: #{tpu_custom_call.1} parent=0
    _
  %s16 = ssub.s32 1, %s14
  %s17 = scalar_select 0, %s16, %s14
  // Predicated region
  $region2: #{tpu_custom_call.1} parent=0 // pred_check
    _
  $region3: #{tpu_custom_call.1} parent=0 // pred_check_branch
    %19 = sbr.rel (0) target = $region5
  $region4: #{tpu_custom_call.1} parent=0 // pred_region
    _
  $region5: #{tpu_custom_call.1} parent=0 // pred_fallthru
    _
  // Predicated region
  $region6: #{tpu_custom_call.1} parent=0 // pred_check
    _
  $region7: #{tpu_custom_call.1} parent=0 // pred_check_branch
    %21 = sbr.rel (0) target = $region9
  $region8: #{tpu_custom_call.1} parent=0 // pred_region
    _
  $region9: #{tpu_custom_call.1} parent=0 // pred_fallthru
    _
  // Predicated region
  $region10: #{tpu_custom_call.1} parent=0 // pred_check
    _
  $region11: #{tpu_custom_call.1} parent=0 // pred_check_branch
    %23 = sbr.rel (0) target = $region13
  $region12: #{tpu_custom_call.1} parent=0 // pred_region
    _
  $region13: #{tpu_custom_call.1} parent=0 // pred_fallthru
    _
  // Predicated region
  $region14: #{tpu_custom_call.1} parent=0 // pred_check
    _
  $region15: #{tpu_custom_call.1} parent=0 // pred_check_branch
    %25 = sbr.rel (0) target = $region17
  $region16: #{tpu_custom_call.1} parent=0 // pred_region
    _
  $region17: #{tpu_custom_call.1} parent=0 // pred_fallthru
    _
  // Predicated region
  $region18: #{tpu_custom_call.1} parent=0 // pred_check
    _
  $region19: #{tpu_custom_call.1} parent=0 // pred_check_branch
    %27 = sbr.rel (0) target = $region21
  $region20: #{tpu_custom_call.1} parent=0 // pred_region
    _
  $region21: #{tpu_custom_call.1} parent=0 // pred_fallthru
    _
  // Predicated region
  $region22: #{tpu_custom_call.1} parent=0 // pred_check
    _
  $region23: #{tpu_custom_call.1} parent=0 // pred_check_branch
    %29 = sbr.rel (0) target = $region25
  $region24: #{tpu_custom_call.1} parent=0 // pred_region
    _
  $region25: #{tpu_custom_call.1} parent=0 // pred_fallthru
    _
  // Predicated region
  $region26: #{tpu_custom_call.1} parent=0 // pred_check
    _
  $region27: #{tpu_custom_call.1} parent=0 // pred_check_branch
    %31 = sbr.rel (0) target = $region29
  $region28: #{tpu_custom_call.1} parent=0 // pred_region
    _
  $region29: #{tpu_custom_call.1} parent=0 // pred_fallthru
    _
  // Predicated region
  $region30: #{tpu_custom_call.1} parent=0 // pred_check
    _
  $region31: #{tpu_custom_call.1} parent=0 // pred_check_branch
    %33 = sbr.rel (0) target = $region33
  $region32: #{tpu_custom_call.1} parent=0 // pred_region
    _
  $region33: #{tpu_custom_call.1} parent=0 // pred_fallthru
    _
  // Predicated region
  $region34: #{tpu_custom_call.1} parent=0 // pred_check
    _
  $region35: #{tpu_custom_call.1} parent=0 // pred_check_branch
    %35 = sbr.rel (0) target = $region37
  $region36: #{tpu_custom_call.1} parent=0 // pred_region
    _
  $region37: #{tpu_custom_call.1} parent=0 // pred_fallthru
    _
  // Predicated region
  $region38: #{tpu_custom_call.1} parent=0 // pred_check
    _
  $region39: #{tpu_custom_call.1} parent=0 // pred_check_branch
    %37 = sbr.rel (0) target = $region41
  $region40: #{tpu_custom_call.1} parent=0 // pred_region
    _
  $region41: #{tpu_custom_call.1} parent=0 // pred_fallthru
    _
  // Predicated region
  $region42: #{tpu_custom_call.1} parent=0 // pred_check
    _
  $region43: #{tpu_custom_call.1} parent=0 // pred_check_branch
    %39 = sbr.rel (0) target = $region45
  $region44: #{tpu_custom_call.1} parent=0 // pred_region
    _
  $region45: #{tpu_custom_call.1} parent=0 // pred_fallthru
    _
  // Predicated region
  $region46: #{tpu_custom_call.1} parent=0 // pred_check
    _
  $region47: #{tpu_custom_call.1} parent=0 // pred_check_branch
    %41 = sbr.rel (0) target = $region49
  $region48: #{tpu_custom_call.1} parent=0 // pred_region
    _
  $region49: #{tpu_custom_call.1} parent=0 // pred_fallthru
    _
  // Predicated region
  $region50: #{tpu_custom_call.1} parent=0 // pred_check
    _
  $region51: #{tpu_custom_call.1} parent=0 // pred_check_branch
    %43 = sbr.rel (0) target = $region53
  $region52: #{tpu_custom_call.1} parent=0 // pred_region
    _
  $region53: #{tpu_custom_call.1} parent=0 // pred_fallthru
    _
  %v45 = vld [vmem:[%s0] sm:$0xf]
  %v46 = vld [vmem:[%s0 + $0x4] sm:$0xf]
  %v47 = vld [vmem:[%s0 + $0x8] sm:$0xf]
  %v48 = vld [vmem:[%s0 + $0xc] sm:$0xf]
  %v49 = vld [vmem:[%s0 + $0x10] sm:$0xf]
  %v50 = vld [vmem:[%s0 + $0x14] sm:$0xf]
  %v51 = vld [vmem:[%s0 + $0x18] sm:$0xf]
  %v52 = vld [vmem:[%s0 + $0x1c] sm:$0xf]
  %v53 = vld [vmem:[%s0 + $0x20] sm:$0xf]
  %v54 = vld [vmem:[%s0 + $0x24] sm:$0xf]
  %v55 = vld [vmem:[%s0 + $0x28] sm:$0xf]
  %v56 = vld [vmem:[%s0 + $0x2c] sm:$0xf]
  %v57 = vld [vmem:[%s0 + $0x30] sm:$0xf]
  %v58 = vld [vmem:[%s0 + $0x34] sm:$0xf]
  %v59 = vld [vmem:[%s0 + $0x38] sm:$0xf]
  %v60 = vld [vmem:[%s0 + $0x3c] sm:$0xf]
  %v61 = vld [vmem:[%s1] sm:$0xf]
  %v62 = vld [vmem:[%s1 + $0x4] sm:$0xf]
  %v63 = vld [vmem:[%s1 + $0x8] sm:$0xf]
  %v64 = vld [vmem:[%s1 + $0xc] sm:$0xf]
  %v65 = vld [vmem:[%s1 + $0x10] sm:$0x3]
  %v66 = vld [vmem:[%s2] sm:$0x1]
  %v68 = vperm.slane %v66, 0
  %v86 = vunpack.c.l.b16 %v45
  %v87 = vunpack.c.l.b16 %v46
  %v88 = vunpack.c.l.b16 %v47
  %v89 = vunpack.c.l.b16 %v48
  %v90 = vunpack.c.l.b16 %v49
  %v91 = vunpack.c.l.b16 %v50
  %v92 = vunpack.c.l.b16 %v51
  %v93 = vunpack.c.l.b16 %v52
  %v94 = vunpack.c.l.b16 %v53
  %v95 = vunpack.c.l.b16 %v54
  %v96 = vunpack.c.l.b16 %v55
  %v97 = vunpack.c.l.b16 %v56
  %v98 = vunpack.c.l.b16 %v57
  %v99 = vunpack.c.l.b16 %v58
  %v100 = vunpack.c.l.b16 %v59
  %v101 = vunpack.c.l.b16 %v60
  %v102 = vpack.c.b16 %v87, %v86
  %v103 = vpack.c.b16 %v89, %v88
  %v104 = vpack.c.b16 %v91, %v90
  %v105 = vpack.c.b16 %v93, %v92
  %v106 = vpack.c.b16 %v95, %v94
  %v107 = vpack.c.b16 %v97, %v96
  %v108 = vpack.c.b16 %v99, %v98
  %v109 = vpack.c.b16 %v101, %v100
  %v115 = vunpack.c.l.b16 %v61
  %v116 = vunpack.c.l.b16 %v62
  %v117 = vunpack.c.l.b16 %v63
  %v118 = vunpack.c.l.b16 %v64
  %v119 = vunpack.c.l.b16 %v65
  %v120 = vpack.c.b16 %v116, %v115
  %v121 = vpack.c.b16 %v118, %v117
  %v122 = vpack.c.b16 %v119, %v119
  %vm125 = vcmask 293888
  %v127 = vsel %vm125, %v102, 0
  %v130 = vsel %vm125, %v103, 0
  %v133 = vsel %vm125, %v104, 0
  %v136 = vsel %vm125, %v105, 0
  %v139 = vsel %vm125, %v106, 0
  %v142 = vsel %vm125, %v107, 0
  %v145 = vsel %vm125, %v108, 0
  %v148 = vsel %vm125, %v109, 0
  %vm150 = vcmask 1041408
  %v152 = vsel %vm150, %v122, 0
  %154 = vmatpush.bf16.msra.mxu0 0
  %155 = vmatpush.bf16.msra.mxu0 0
  %156 = vmatpush.bf16.msra.mxu0 0
  %157 = vmatpush.bf16.msra.mxu0 0
  %158 = vmatpush.bf16.msra.mxu0 0
  %159 = vmatpush.bf16.msra.mxu0 %v152
  %160 = vmatpush.bf16.msra.mxu0 %v121
  %161 = vmatpush.bf16.msra.mxu0 %v120
  %162 = vmatmul.bf16.gmra.mxu0 %v127
  %v163 = vpop.f32.mrf.mxu0
  %v164 = vadd.f32 %v68, %v163
  %v165 = vpop.f32.mrf.mxu0
  %v166 = vadd.f32 %v68, %v165
  %167 = vmatmul.bf16.gmra.mxu0 %v130
  %v168 = vpop.f32.mrf.mxu0
  %v169 = vadd.f32 %v68, %v168
  %v170 = vpop.f32.mrf.mxu0
  %v171 = vadd.f32 %v68, %v170
  %172 = vmatmul.bf16.gmra.mxu0 %v133
  %v173 = vpop.f32.mrf.mxu0
  %v174 = vadd.f32 %v68, %v173
  %v175 = vpop.f32.mrf.mxu0
  %v176 = vadd.f32 %v68, %v175
  %177 = vmatmul.bf16.gmra.mxu0 %v136
  %v178 = vpop.f32.mrf.mxu0
  %v179 = vadd.f32 %v68, %v178
  %v180 = vpop.f32.mrf.mxu0
  %v181 = vadd.f32 %v68, %v180
  %182 = vmatmul.bf16.gmra.mxu0 %v139
  %v183 = vpop.f32.mrf.mxu0
  %v184 = vadd.f32 %v68, %v183
  %v185 = vpop.f32.mrf.mxu0
  %v186 = vadd.f32 %v68, %v185
  %187 = vmatmul.bf16.gmra.mxu0 %v142
  %v188 = vpop.f32.mrf.mxu0
  %v189 = vadd.f32 %v68, %v188
  %v190 = vpop.f32.mrf.mxu0
  %v191 = vadd.f32 %v68, %v190
  %192 = vmatmul.bf16.gmra.mxu0 %v145
  %v193 = vpop.f32.mrf.mxu0
  %v194 = vadd.f32 %v68, %v193
  %v195 = vpop.f32.mrf.mxu0
  %v196 = vadd.f32 %v68, %v195
  %197 = vmatmul.bf16.gmra.mxu0 %v148
  %v198 = vpop.f32.mrf.mxu0
  %v199 = vadd.f32 %v68, %v198
  %v200 = vpop.f32.mrf.mxu0
  %v201 = vadd.f32 %v68, %v200
  %202 = vdwg.mxu0
  %vm203 = vcmp.gt.f32.partialorder %v164, 0.0
  %vm204 = vcmp.gt.f32.partialorder %v166, 0.0
  %vm205 = vcmp.gt.f32.partialorder %v169, 0.0
  %vm206 = vcmp.gt.f32.partialorder %v171, 0.0
  %vm207 = vcmp.gt.f32.partialorder %v174, 0.0
  %vm208 = vcmp.gt.f32.partialorder %v176, 0.0
  %vm209 = vcmp.gt.f32.partialorder %v179, 0.0
  %vm210 = vcmp.gt.f32.partialorder %v181, 0.0
  %vm211 = vcmp.gt.f32.partialorder %v184, 0.0
  %vm212 = vcmp.gt.f32.partialorder %v186, 0.0
  %vm213 = vcmp.gt.f32.partialorder %v189, 0.0
  %vm214 = vcmp.gt.f32.partialorder %v191, 0.0
  %vm215 = vcmp.gt.f32.partialorder %v194, 0.0
  %vm216 = vcmp.gt.f32.partialorder %v196, 0.0
  %vm217 = vcmp.gt.f32.partialorder %v199, 0.0
  %vm218 = vcmp.gt.f32.partialorder %v201, 0.0
  %v219 = vmin.f32 %v164, 0.0
  %v220 = vmin.f32 %v166, 0.0
  %v221 = vmin.f32 %v169, 0.0
  %v222 = vmin.f32 %v171, 0.0
  %v223 = vmin.f32 %v174, 0.0
  %v224 = vmin.f32 %v176, 0.0
  %v225 = vmin.f32 %v179, 0.0
  %v226 = vmin.f32 %v181, 0.0
  %v227 = vmin.f32 %v184, 0.0
  %v228 = vmin.f32 %v186, 0.0
  %v229 = vmin.f32 %v189, 0.0
  %v230 = vmin.f32 %v191, 0.0
  %v231 = vmin.f32 %v194, 0.0
  %v232 = vmin.f32 %v196, 0.0
  %v233 = vmin.f32 %v199, 0.0
  %v234 = vmin.f32 %v201, 0.0
  %v235 = vmul.f32 %v219, 1.442695
  %v236 = vpow.pop %v235
  %v237 = vmul.f32 %v220, 1.442695
  %v238 = vpow.pop %v237
  %v239 = vmul.f32 %v221, 1.442695
  %v240 = vpow.pop %v239
  %v241 = vmul.f32 %v222, 1.442695
  %v242 = vpow.pop %v241
  %v243 = vmul.f32 %v223, 1.442695
  %v244 = vpow.pop %v243
  %v245 = vmul.f32 %v224, 1.442695
  %v246 = vpow.pop %v245
  %v247 = vmul.f32 %v225, 1.442695
  %v248 = vpow.pop %v247
  %v249 = vmul.f32 %v226, 1.442695
  %v250 = vpow.pop %v249
  %v251 = vmul.f32 %v227, 1.442695
  %v252 = vpow.pop %v251
  %v253 = vmul.f32 %v228, 1.442695
  %v254 = vpow.pop %v253
  %v255 = vmul.f32 %v229, 1.442695
  %v256 = vpow.pop %v255
  %v257 = vmul.f32 %v230, 1.442695
  %v258 = vpow.pop %v257
  %v259 = vmul.f32 %v231, 1.442695
  %v260 = vpow.pop %v259
  %v261 = vmul.f32 %v232, 1.442695
  %v262 = vpow.pop %v261
  %v263 = vmul.f32 %v233, 1.442695
  %v264 = vpow.pop %v263
  %v265 = vmul.f32 %v234, 1.442695
  %v266 = vpow.pop %v265
  %v267 = vsub.f32 %v236, 1.0
  %v268 = vsub.f32 %v238, 1.0
  %v269 = vsub.f32 %v240, 1.0
  %v270 = vsub.f32 %v242, 1.0
  %v271 = vsub.f32 %v244, 1.0
  %v272 = vsub.f32 %v246, 1.0
  %v273 = vsub.f32 %v248, 1.0
  %v274 = vsub.f32 %v250, 1.0
  %v275 = vsub.f32 %v252, 1.0
  %v276 = vsub.f32 %v254, 1.0
  %v277 = vsub.f32 %v256, 1.0
  %v278 = vsub.f32 %v258, 1.0
  %v279 = vsub.f32 %v260, 1.0
  %v280 = vsub.f32 %v262, 1.0
  %v281 = vsub.f32 %v264, 1.0
  %v282 = vsub.f32 %v266, 1.0
  %v283 = vmul.f32 %v267, 1.442695
  %v284 = vpow.pop %v283
  %v285 = vmul.f32 %v268, 1.442695
  %v286 = vpow.pop %v285
  %v287 = vmul.f32 %v269, 1.442695
  %v288 = vpow.pop %v287
  %v289 = vmul.f32 %v270, 1.442695
  %v290 = vpow.pop %v289
  %v291 = vmul.f32 %v271, 1.442695
  %v292 = vpow.pop %v291
  %v293 = vmul.f32 %v272, 1.442695
  %v294 = vpow.pop %v293
  %v295 = vmul.f32 %v273, 1.442695
  %v296 = vpow.pop %v295
  %v297 = vmul.f32 %v274, 1.442695
  %v298 = vpow.pop %v297
  %v299 = vmul.f32 %v275, 1.442695
  %v300 = vpow.pop %v299
  %v301 = vmul.f32 %v276, 1.442695
  %v302 = vpow.pop %v301
  %v303 = vmul.f32 %v277, 1.442695
  %v304 = vpow.pop %v303
  %v305 = vmul.f32 %v278, 1.442695
  %v306 = vpow.pop %v305
  %v307 = vmul.f32 %v279, 1.442695
  %v308 = vpow.pop %v307
  %v309 = vmul.f32 %v280, 1.442695
  %v310 = vpow.pop %v309
  %v311 = vmul.f32 %v281, 1.442695
  %v312 = vpow.pop %v311
  %v313 = vmul.f32 %v282, 1.442695
  %v314 = vpow.pop %v313
  %v315 = vsub.f32 %v284, 1.0
  %v316 = vsub.f32 %v286, 1.0
  %v317 = vsub.f32 %v288, 1.0
  %v318 = vsub.f32 %v290, 1.0
  %v319 = vsub.f32 %v292, 1.0
  %v320 = vsub.f32 %v294, 1.0
  %v321 = vsub.f32 %v296, 1.0
  %v322 = vsub.f32 %v298, 1.0
  %v323 = vsub.f32 %v300, 1.0
  %v324 = vsub.f32 %v302, 1.0
  %v325 = vsub.f32 %v304, 1.0
  %v326 = vsub.f32 %v306, 1.0
  %v327 = vsub.f32 %v308, 1.0
  %v328 = vsub.f32 %v310, 1.0
  %v329 = vsub.f32 %v312, 1.0
  %v330 = vsub.f32 %v314, 1.0
  %v331 = vsel %vm203, %v164, %v315
  %v332 = vsel %vm204, %v166, %v316
  %v333 = vsel %vm205, %v169, %v317
  %v334 = vsel %vm206, %v171, %v318
  %v335 = vsel %vm207, %v174, %v319
  %v336 = vsel %vm208, %v176, %v320
  %v337 = vsel %vm209, %v179, %v321
  %v338 = vsel %vm210, %v181, %v322
  %v339 = vsel %vm211, %v184, %v323
  %v340 = vsel %vm212, %v186, %v324
  %v341 = vsel %vm213, %v189, %v325
  %v342 = vsel %vm214, %v191, %v326
  %v343 = vsel %vm215, %v194, %v327
  %v344 = vsel %vm216, %v196, %v328
  %v345 = vsel %vm217, %v199, %v329
  %v346 = vsel %vm218, %v201, %v330
  %vm347 = vcmask 60416
  %348 = vst.msk [vmem:[#allocation2] sm:$0xf] %vm347, 0
  %vm349 = vcmask 57344
  %350 = vst.msk [vmem:[#allocation2 + $0x4] sm:$0x1] %vm349, 0
  %351 = vst.msk [vmem:[#allocation2 + $0x8] sm:$0xf] %vm347, 0
  %352 = vst.msk [vmem:[#allocation2 + $0xc] sm:$0x1] %vm349, 0
  %353 = vst.msk [vmem:[#allocation2 + $0x10] sm:$0xf] %vm347, 0
  %354 = vst.msk [vmem:[#allocation2 + $0x14] sm:$0x1] %vm349, 0
  %355 = vst.msk [vmem:[#allocation2 + $0x18] sm:$0xf] %vm347, 0
  %356 = vst.msk [vmem:[#allocation2 + $0x1c] sm:$0x1] %vm349, 0
  %357 = vst.msk [vmem:[#allocation2 + $0x20] sm:$0xf] %vm347, 0
  %358 = vst.msk [vmem:[#allocation2 + $0x24] sm:$0x1] %vm349, 0
  %359 = vst.msk [vmem:[#allocation2 + $0x28] sm:$0xf] %vm347, 0
  %360 = vst.msk [vmem:[#allocation2 + $0x2c] sm:$0x1] %vm349, 0
  %361 = vst.msk [vmem:[#allocation2 + $0x30] sm:$0xf] %vm347, 0
  %362 = vst.msk [vmem:[#allocation2 + $0x34] sm:$0x1] %vm349, 0
  %363 = vst.msk [vmem:[#allocation2 + $0x38] sm:$0xf] %vm347, 0
  %364 = vst.msk [vmem:[#allocation2 + $0x3c] sm:$0x1] %vm349, 0
  %365 = vst.msk [vmem:[#allocation2 + $0x40] sm:$0xf] %vm347, 0
  %366 = vst.msk [vmem:[#allocation2 + $0x44] sm:$0x1] %vm349, 0
  %367 = vst.msk [vmem:[#allocation2 + $0x48] sm:$0xf] %vm347, 0
  %368 = vst.msk [vmem:[#allocation2 + $0x4c] sm:$0x1] %vm349, 0
  %369 = vst.msk [vmem:[#allocation2 + $0x50] sm:$0xf] %vm347, 0
  %370 = vst.msk [vmem:[#allocation2 + $0x54] sm:$0x1] %vm349, 0
  %371 = vst.msk [vmem:[#allocation2 + $0x58] sm:$0xf] %vm347, 0
  %372 = vst.msk [vmem:[#allocation2 + $0x5c] sm:$0x1] %vm349, 0
  %373 = vst.msk [vmem:[#allocation2 + $0x60] sm:$0xf] %vm347, 0
  %374 = vst.msk [vmem:[#allocation2 + $0x64] sm:$0x1] %vm349, 0
  %375 = vst.msk [vmem:[#allocation2 + $0x68] sm:$0xf] %vm347, 0
  %376 = vst.msk [vmem:[#allocation2 + $0x6c] sm:$0x1] %vm349, 0
  %377 = vst.msk [vmem:[#allocation2 + $0x70] sm:$0xf] %vm347, 0
  %378 = vst.msk [vmem:[#allocation2 + $0x74] sm:$0x1] %vm349, 0
  %379 = vst.msk [vmem:[#allocation2 + $0x78] sm:$0xf] %vm347, 0
  %380 = vst.msk [vmem:[#allocation2 + $0x7c] sm:$0x1] %vm349, 0
  %381 = vst.msk [vmem:[#allocation2 + $0x80] sm:$0xf] %vm347, 0
  %382 = vst.msk [vmem:[#allocation2 + $0x84] sm:$0x1] %vm349, 0
  %383 = vst.msk [vmem:[#allocation2 + $0x88] sm:$0xf] %vm347, 0
  %384 = vst.msk [vmem:[#allocation2 + $0x8c] sm:$0x1] %vm349, 0
  %385 = vst.msk [vmem:[#allocation2 + $0x90] sm:$0xf] %vm347, 0
  %386 = vst.msk [vmem:[#allocation2 + $0x94] sm:$0x1] %vm349, 0
  %387 = vst.msk [vmem:[#allocation2 + $0x98] sm:$0xf] %vm347, 0
  %388 = vst.msk [vmem:[#allocation2 + $0x9c] sm:$0x1] %vm349, 0
  %v389 = vpack.c.bf16 %v331, %v331
  %v390 = vpack.c.bf16 %v332, %v332
  %v391 = vpack.c.bf16 %v333, %v333
  %v392 = vpack.c.bf16 %v334, %v334
  %v393 = vpack.c.bf16 %v335, %v335
  %v394 = vpack.c.bf16 %v336, %v336
  %v395 = vpack.c.bf16 %v337, %v337
  %v396 = vpack.c.bf16 %v338, %v338
  %v397 = vpack.c.bf16 %v339, %v339
  %v398 = vpack.c.bf16 %v340, %v340
  %v399 = vpack.c.bf16 %v341, %v341
  %v400 = vpack.c.bf16 %v342, %v342
  %v401 = vpack.c.bf16 %v343, %v343
  %v402 = vpack.c.bf16 %v344, %v344
  %v403 = vpack.c.bf16 %v345, %v345
  %v404 = vpack.c.bf16 %v346, %v346
  %v406 = vshrl.u32 %v389, 16
  %v408 = vrot.slane %v406, 7
  %v409 = vshll.u32 %v389, 16
  %v411 = vor.u32 %v408, %v409
  %v412 = vrot.slane %v408, 4
  %v414 = vshrl.u32 %v390, 16
  %v416 = vrot.slane %v414, 7
  %v417 = vshll.u32 %v390, 16
  %v419 = vor.u32 %v416, %v417
  %v420 = vrot.slane %v416, 4
  %v422 = vshrl.u32 %v391, 16
  %v424 = vrot.slane %v422, 7
  %v425 = vshll.u32 %v391, 16
  %v427 = vor.u32 %v424, %v425
  %v428 = vrot.slane %v424, 4
  %v430 = vshrl.u32 %v392, 16
  %v432 = vrot.slane %v430, 7
  %v433 = vshll.u32 %v392, 16
  %v435 = vor.u32 %v432, %v433
  %v436 = vrot.slane %v432, 4
  %v438 = vshrl.u32 %v393, 16
  %v440 = vrot.slane %v438, 7
  %v441 = vshll.u32 %v393, 16
  %v443 = vor.u32 %v440, %v441
  %v444 = vrot.slane %v440, 4
  %v446 = vshrl.u32 %v394, 16
  %v448 = vrot.slane %v446, 7
  %v449 = vshll.u32 %v394, 16
  %v451 = vor.u32 %v448, %v449
  %v452 = vrot.slane %v448, 4
  %v454 = vshrl.u32 %v395, 16
  %v456 = vrot.slane %v454, 7
  %v457 = vshll.u32 %v395, 16
  %v459 = vor.u32 %v456, %v457
  %v460 = vrot.slane %v456, 4
  %v462 = vshrl.u32 %v396, 16
  %v464 = vrot.slane %v462, 7
  %v465 = vshll.u32 %v396, 16
  %v467 = vor.u32 %v464, %v465
  %v468 = vrot.slane %v464, 4
  %v470 = vshrl.u32 %v397, 16
  %v472 = vrot.slane %v470, 7
  %v473 = vshll.u32 %v397, 16
  %v475 = vor.u32 %v472, %v473
  %v476 = vrot.slane %v472, 4
  %v478 = vshrl.u32 %v398, 16
  %v480 = vrot.slane %v478, 7
  %v481 = vshll.u32 %v398, 16
  %v483 = vor.u32 %v480, %v481
  %v484 = vrot.slane %v480, 4
  %v486 = vshrl.u32 %v399, 16
  %v488 = vrot.slane %v486, 7
  %v489 = vshll.u32 %v399, 16
  %v491 = vor.u32 %v488, %v489
  %v492 = vrot.slane %v488, 4
  %v494 = vshrl.u32 %v400, 16
  %v496 = vrot.slane %v494, 7
  %v497 = vshll.u32 %v400, 16
  %v499 = vor.u32 %v496, %v497
  %v500 = vrot.slane %v496, 4
  %v502 = vshrl.u32 %v401, 16
  %v504 = vrot.slane %v502, 7
  %v505 = vshll.u32 %v401, 16
  %v507 = vor.u32 %v504, %v505
  %v508 = vrot.slane %v504, 4
  %v510 = vshrl.u32 %v402, 16
  %v512 = vrot.slane %v510, 7
  %v513 = vshll.u32 %v402, 16
  %v515 = vor.u32 %v512, %v513
  %v516 = vrot.slane %v512, 4
  %v518 = vshrl.u32 %v403, 16
  %v520 = vrot.slane %v518, 7
  %v521 = vshll.u32 %v403, 16
  %v523 = vor.u32 %v520, %v521
  %v524 = vrot.slane %v520, 4
  %v526 = vshrl.u32 %v404, 16
  %v528 = vrot.slane %v526, 7
  %v529 = vshll.u32 %v404, 16
  %v531 = vor.u32 %v528, %v529
  %v532 = vrot.slane %v528, 4
  %s565 = scalar_lea.vmem [#allocation2], 8
  %vm566 = vcmask 60416
  %vm567 = vsmask.f32 7938
  %vm568 = vmand %vm566, %vm567
  %v569 = vld [vmem:[%s565] sm:$0xf]
  %v570 = vsel %vm568, %v411, %v569
  %571 = vst [vmem:[%s565] sm:$0xf] %v570
  %vm572 = vcmask 57344
  %vm573 = vsmask.f32 256
  %vm574 = vmand %vm572, %vm573
  %v575 = vld [vmem:[%s565 + $0x4] sm:$0x1]
  %v576 = vsel %vm574, %v412, %v575
  %577 = vst [vmem:[%s565 + $0x4] sm:$0x1] %v576
  %v578 = vld [vmem:[%s565 + $0x8] sm:$0xf]
  %v579 = vsel %vm568, %v419, %v578
  %580 = vst [vmem:[%s565 + $0x8] sm:$0xf] %v579
  %v581 = vld [vmem:[%s565 + $0xc] sm:$0x1]
  %v582 = vsel %vm574, %v420, %v581
  %583 = vst [vmem:[%s565 + $0xc] sm:$0x1] %v582
  %v584 = vld [vmem:[%s565 + $0x10] sm:$0xf]
  %v585 = vsel %vm568, %v427, %v584
  %586 = vst [vmem:[%s565 + $0x10] sm:$0xf] %v585
  %v587 = vld [vmem:[%s565 + $0x14] sm:$0x1]
  %v588 = vsel %vm574, %v428, %v587
  %589 = vst [vmem:[%s565 + $0x14] sm:$0x1] %v588
  %v590 = vld [vmem:[%s565 + $0x18] sm:$0xf]
  %v591 = vsel %vm568, %v435, %v590
  %592 = vst [vmem:[%s565 + $0x18] sm:$0xf] %v591
  %v593 = vld [vmem:[%s565 + $0x1c] sm:$0x1]
  %v594 = vsel %vm574, %v436, %v593
  %595 = vst [vmem:[%s565 + $0x1c] sm:$0x1] %v594
  %v596 = vld [vmem:[%s565 + $0x20] sm:$0xf]
  %v597 = vsel %vm568, %v443, %v596
  %598 = vst [vmem:[%s565 + $0x20] sm:$0xf] %v597
  %v599 = vld [vmem:[%s565 + $0x24] sm:$0x1]
  %v600 = vsel %vm574, %v444, %v599
  %601 = vst [vmem:[%s565 + $0x24] sm:$0x1] %v600
  %v602 = vld [vmem:[%s565 + $0x28] sm:$0xf]
  %v603 = vsel %vm568, %v451, %v602
  %604 = vst [vmem:[%s565 + $0x28] sm:$0xf] %v603
  %v605 = vld [vmem:[%s565 + $0x2c] sm:$0x1]
  %v606 = vsel %vm574, %v452, %v605
  %607 = vst [vmem:[%s565 + $0x2c] sm:$0x1] %v606
  %v608 = vld [vmem:[%s565 + $0x30] sm:$0xf]
  %v609 = vsel %vm568, %v459, %v608
  %610 = vst [vmem:[%s565 + $0x30] sm:$0xf] %v609
  %v611 = vld [vmem:[%s565 + $0x34] sm:$0x1]
  %v612 = vsel %vm574, %v460, %v611
  %613 = vst [vmem:[%s565 + $0x34] sm:$0x1] %v612
  %v614 = vld [vmem:[%s565 + $0x38] sm:$0xf]
  %v615 = vsel %vm568, %v467, %v614
  %616 = vst [vmem:[%s565 + $0x38] sm:$0xf] %v615
  %v617 = vld [vmem:[%s565 + $0x3c] sm:$0x1]
  %v618 = vsel %vm574, %v468, %v617
  %619 = vst [vmem:[%s565 + $0x3c] sm:$0x1] %v618
  %v620 = vld [vmem:[%s565 + $0x50] sm:$0xf]
  %v621 = vsel %vm568, %v475, %v620
  %622 = vst [vmem:[%s565 + $0x50] sm:$0xf] %v621
  %v623 = vld [vmem:[%s565 + $0x54] sm:$0x1]
  %v624 = vsel %vm574, %v476, %v623
  %625 = vst [vmem:[%s565 + $0x54] sm:$0x1] %v624
  %v626 = vld [vmem:[%s565 + $0x58] sm:$0xf]
  %v627 = vsel %vm568, %v483, %v626
  %628 = vst [vmem:[%s565 + $0x58] sm:$0xf] %v627
  %v629 = vld [vmem:[%s565 + $0x5c] sm:$0x1]
  %v630 = vsel %vm574, %v484, %v629
  %631 = vst [vmem:[%s565 + $0x5c] sm:$0x1] %v630
  %v632 = vld [vmem:[%s565 + $0x60] sm:$0xf]
  %v633 = vsel %vm568, %v491, %v632
  %634 = vst [vmem:[%s565 + $0x60] sm:$0xf] %v633
  %v635 = vld [vmem:[%s565 + $0x64] sm:$0x1]
  %v636 = vsel %vm574, %v492, %v635
  %637 = vst [vmem:[%s565 + $0x64] sm:$0x1] %v636
  %v638 = vld [vmem:[%s565 + $0x68] sm:$0xf]
  %v639 = vsel %vm568, %v499, %v638
  %640 = vst [vmem:[%s565 + $0x68] sm:$0xf] %v639
  %v641 = vld [vmem:[%s565 + $0x6c] sm:$0x1]
  %v642 = vsel %vm574, %v500, %v641
  %643 = vst [vmem:[%s565 + $0x6c] sm:$0x1] %v642
  %v644 = vld [vmem:[%s565 + $0x70] sm:$0xf]
  %v645 = vsel %vm568, %v507, %v644
  %646 = vst [vmem:[%s565 + $0x70] sm:$0xf] %v645
  %v647 = vld [vmem:[%s565 + $0x74] sm:$0x1]
  %v648 = vsel %vm574, %v508, %v647
  %649 = vst [vmem:[%s565 + $0x74] sm:$0x1] %v648
  %v650 = vld [vmem:[%s565 + $0x78] sm:$0xf]
  %v651 = vsel %vm568, %v515, %v650
  %652 = vst [vmem:[%s565 + $0x78] sm:$0xf] %v651
  %v653 = vld [vmem:[%s565 + $0x7c] sm:$0x1]
  %v654 = vsel %vm574, %v516, %v653
  %655 = vst [vmem:[%s565 + $0x7c] sm:$0x1] %v654
  %v656 = vld [vmem:[%s565 + $0x80] sm:$0xf]
  %v657 = vsel %vm568, %v523, %v656
  %658 = vst [vmem:[%s565 + $0x80] sm:$0xf] %v657
  %v659 = vld [vmem:[%s565 + $0x84] sm:$0x1]
  %v660 = vsel %vm574, %v524, %v659
  %661 = vst [vmem:[%s565 + $0x84] sm:$0x1] %v660
  %v662 = vld [vmem:[%s565 + $0x88] sm:$0xf]
  %v663 = vsel %vm568, %v531, %v662
  %664 = vst [vmem:[%s565 + $0x88] sm:$0xf] %v663
  %v665 = vld [vmem:[%s565 + $0x8c] sm:$0x1]
  %v666 = vsel %vm574, %v532, %v665
  %667 = vst [vmem:[%s565 + $0x8c] sm:$0x1] %v666
  %v668 = vld [vmem:[#allocation2] sm:$0xf]
  %v669 = vld [vmem:[#allocation2 + $0x8] sm:$0xf]
  %v670 = vld [vmem:[#allocation2 + $0x10] sm:$0xf]
  %v671 = vld [vmem:[#allocation2 + $0x18] sm:$0xf]
  %v672 = vld [vmem:[#allocation2 + $0x20] sm:$0xf]
  %v673 = vld [vmem:[#allocation2 + $0x28] sm:$0xf]
  %v674 = vld [vmem:[#allocation2 + $0x30] sm:$0xf]
  %v675 = vld [vmem:[#allocation2 + $0x38] sm:$0xf]
  %v676 = vld [vmem:[#allocation2 + $0x50] sm:$0xf]
  %v677 = vld [vmem:[#allocation2 + $0x58] sm:$0xf]
  %v678 = vld [vmem:[#allocation2 + $0x60] sm:$0xf]
  %v679 = vld [vmem:[#allocation2 + $0x68] sm:$0xf]
  %v680 = vld [vmem:[#allocation2 + $0x70] sm:$0xf]
  %v681 = vld [vmem:[#allocation2 + $0x78] sm:$0xf]
  %v682 = vld [vmem:[#allocation2 + $0x80] sm:$0xf]
  %v683 = vld [vmem:[#allocation2 + $0x88] sm:$0xf]
  %v684 = vld [vmem:[#allocation2 + $0x4] sm:$0x1]
  %v685 = vld [vmem:[#allocation2 + $0xc] sm:$0x1]
  %v686 = vld [vmem:[#allocation2 + $0x14] sm:$0x1]
  %v687 = vld [vmem:[#allocation2 + $0x1c] sm:$0x1]
  %v688 = vld [vmem:[#allocation2 + $0x24] sm:$0x1]
  %v689 = vld [vmem:[#allocation2 + $0x2c] sm:$0x1]
  %v690 = vld [vmem:[#allocation2 + $0x34] sm:$0x1]
  %v691 = vld [vmem:[#allocation2 + $0x3c] sm:$0x1]
  %v692 = vld [vmem:[#allocation2 + $0x54] sm:$0x1]
  %v693 = vld [vmem:[#allocation2 + $0x5c] sm:$0x1]
  %v694 = vld [vmem:[#allocation2 + $0x64] sm:$0x1]
  %v695 = vld [vmem:[#allocation2 + $0x6c] sm:$0x1]
  %v696 = vld [vmem:[#allocation2 + $0x74] sm:$0x1]
  %v697 = vld [vmem:[#allocation2 + $0x7c] sm:$0x1]
  %v698 = vld [vmem:[#allocation2 + $0x84] sm:$0x1]
  %v699 = vld [vmem:[#allocation2 + $0x8c] sm:$0x1]
  %vm700 = vsmask.f32 3328
  %vm701 = vsmask.f32 7440
  %vm702 = vmor %vm700, %vm701
  %v704 = vshrl.u32 %v668, 16
  %v706 = vrot.slane %v704, 4
  %v707 = vshll.u32 %v668, 16
  %v709 = vrot.slane %v707, 5
  %v710 = vor.u32 %v706, %v709
  %v711 = vrot.slane %v710, 4
  %v713 = vshll.u32 %v684, 16
  %v715 = vrot.slane %v713, 5
  %v716 = vsel %vm702, %v711, %v715
  %v718 = vshrl.u32 %v669, 16
  %v720 = vrot.slane %v718, 4
  %v721 = vshll.u32 %v669, 16
  %v723 = vrot.slane %v721, 5
  %v724 = vor.u32 %v720, %v723
  %v725 = vrot.slane %v724, 4
  %v727 = vshll.u32 %v685, 16
  %v729 = vrot.slane %v727, 5
  %v730 = vsel %vm702, %v725, %v729
  %v732 = vshrl.u32 %v670, 16
  %v734 = vrot.slane %v732, 4
  %v735 = vshll.u32 %v670, 16
  %v737 = vrot.slane %v735, 5
  %v738 = vor.u32 %v734, %v737
  %v739 = vrot.slane %v738, 4
  %v741 = vshll.u32 %v686, 16
  %v743 = vrot.slane %v741, 5
  %v744 = vsel %vm702, %v739, %v743
  %v746 = vshrl.u32 %v671, 16
  %v748 = vrot.slane %v746, 4
  %v749 = vshll.u32 %v671, 16
  %v751 = vrot.slane %v749, 5
  %v752 = vor.u32 %v748, %v751
  %v753 = vrot.slane %v752, 4
  %v755 = vshll.u32 %v687, 16
  %v757 = vrot.slane %v755, 5
  %v758 = vsel %vm702, %v753, %v757
  %v760 = vshrl.u32 %v672, 16
  %v762 = vrot.slane %v760, 4
  %v763 = vshll.u32 %v672, 16
  %v765 = vrot.slane %v763, 5
  %v766 = vor.u32 %v762, %v765
  %v767 = vrot.slane %v766, 4
  %v769 = vshll.u32 %v688, 16
  %v771 = vrot.slane %v769, 5
  %v772 = vsel %vm702, %v767, %v771
  %v774 = vshrl.u32 %v673, 16
  %v776 = vrot.slane %v774, 4
  %v777 = vshll.u32 %v673, 16
  %v779 = vrot.slane %v777, 5
  %v780 = vor.u32 %v776, %v779
  %v781 = vrot.slane %v780, 4
  %v783 = vshll.u32 %v689, 16
  %v785 = vrot.slane %v783, 5
  %v786 = vsel %vm702, %v781, %v785
  %v788 = vshrl.u32 %v674, 16
  %v790 = vrot.slane %v788, 4
  %v791 = vshll.u32 %v674, 16
  %v793 = vrot.slane %v791, 5
  %v794 = vor.u32 %v790, %v793
  %v795 = vrot.slane %v794, 4
  %v797 = vshll.u32 %v690, 16
  %v799 = vrot.slane %v797, 5
  %v800 = vsel %vm702, %v795, %v799
  %v802 = vshrl.u32 %v675, 16
  %v804 = vrot.slane %v802, 4
  %v805 = vshll.u32 %v675, 16
  %v807 = vrot.slane %v805, 5
  %v808 = vor.u32 %v804, %v807
  %v809 = vrot.slane %v808, 4
  %v811 = vshll.u32 %v691, 16
  %v813 = vrot.slane %v811, 5
  %v814 = vsel %vm702, %v809, %v813
  %v816 = vshrl.u32 %v676, 16
  %v818 = vrot.slane %v816, 4
  %v819 = vshll.u32 %v676, 16
  %v821 = vrot.slane %v819, 5
  %v822 = vor.u32 %v818, %v821
  %v823 = vrot.slane %v822, 4
  %v825 = vshll.u32 %v692, 16
  %v827 = vrot.slane %v825, 5
  %v828 = vsel %vm702, %v823, %v827
  %v830 = vshrl.u32 %v677, 16
  %v832 = vrot.slane %v830, 4
  %v833 = vshll.u32 %v677, 16
  %v835 = vrot.slane %v833, 5
  %v836 = vor.u32 %v832, %v835
  %v837 = vrot.slane %v836, 4
  %v839 = vshll.u32 %v693, 16
  %v841 = vrot.slane %v839, 5
  %v842 = vsel %vm702, %v837, %v841
  %v844 = vshrl.u32 %v678, 16
  %v846 = vrot.slane %v844, 4
  %v847 = vshll.u32 %v678, 16
  %v849 = vrot.slane %v847, 5
  %v850 = vor.u32 %v846, %v849
  %v851 = vrot.slane %v850, 4
  %v853 = vshll.u32 %v694, 16
  %v855 = vrot.slane %v853, 5
  %v856 = vsel %vm702, %v851, %v855
  %v858 = vshrl.u32 %v679, 16
  %v860 = vrot.slane %v858, 4
  %v861 = vshll.u32 %v679, 16
  %v863 = vrot.slane %v861, 5
  %v864 = vor.u32 %v860, %v863
  %v865 = vrot.slane %v864, 4
  %v867 = vshll.u32 %v695, 16
  %v869 = vrot.slane %v867, 5
  %v870 = vsel %vm702, %v865, %v869
  %v872 = vshrl.u32 %v680, 16
  %v874 = vrot.slane %v872, 4
  %v875 = vshll.u32 %v680, 16
  %v877 = vrot.slane %v875, 5
  %v878 = vor.u32 %v874, %v877
  %v879 = vrot.slane %v878, 4
  %v881 = vshll.u32 %v696, 16
  %v883 = vrot.slane %v881, 5
  %v884 = vsel %vm702, %v879, %v883
  %v886 = vshrl.u32 %v681, 16
  %v888 = vrot.slane %v886, 4
  %v889 = vshll.u32 %v681, 16
  %v891 = vrot.slane %v889, 5
  %v892 = vor.u32 %v888, %v891
  %v893 = vrot.slane %v892, 4
  %v895 = vshll.u32 %v697, 16
  %v897 = vrot.slane %v895, 5
  %v898 = vsel %vm702, %v893, %v897
  %v900 = vshrl.u32 %v682, 16
  %v902 = vrot.slane %v900, 4
  %v903 = vshll.u32 %v682, 16
  %v905 = vrot.slane %v903, 5
  %v906 = vor.u32 %v902, %v905
  %v907 = vrot.slane %v906, 4
  %v909 = vshll.u32 %v698, 16
  %v911 = vrot.slane %v909, 5
  %v912 = vsel %vm702, %v907, %v911
  %v914 = vshrl.u32 %v683, 16
  %v916 = vrot.slane %v914, 4
  %v917 = vshll.u32 %v683, 16
  %v919 = vrot.slane %v917, 5
  %v920 = vor.u32 %v916, %v919
  %v921 = vrot.slane %v920, 4
  %v923 = vshll.u32 %v699, 16
  %v925 = vrot.slane %v923, 5
  %v926 = vsel %vm702, %v921, %v925
  %v927 = vld [vmem:[#allocation2] sm:$0xe]
  %v928 = vld [vmem:[#allocation2 + $0x8] sm:$0xe]
  %v929 = vld [vmem:[#allocation2 + $0x10] sm:$0xe]
  %v930 = vld [vmem:[#allocation2 + $0x18] sm:$0xe]
  %v931 = vld [vmem:[#allocation2 + $0x20] sm:$0xe]
  %v932 = vld [vmem:[#allocation2 + $0x28] sm:$0xe]
  %v933 = vld [vmem:[#allocation2 + $0x30] sm:$0xe]
  %v934 = vld [vmem:[#allocation2 + $0x38] sm:$0xe]
  %v935 = vld [vmem:[#allocation2 + $0x50] sm:$0xe]
  %v936 = vld [vmem:[#allocation2 + $0x58] sm:$0xe]
  %v937 = vld [vmem:[#allocation2 + $0x60] sm:$0xe]
  %v938 = vld [vmem:[#allocation2 + $0x68] sm:$0xe]
  %v939 = vld [vmem:[#allocation2 + $0x70] sm:$0xe]
  %v940 = vld [vmem:[#allocation2 + $0x78] sm:$0xe]
  %v941 = vld [vmem:[#allocation2 + $0x80] sm:$0xe]
  %v942 = vld [vmem:[#allocation2 + $0x88] sm:$0xe]
  %vm975 = vcmask 1042432
  %vm976 = vcmask 1046532
  %vm977 = vmor %vm975, %vm976
  %v978 = vrot.slane %v927, 5
  %v979 = vrot.slane %v978, 4
  %v980 = vrot.slane %v684, 5
  %v981 = vsel %vm977, %v979, %v980
  %v982 = vrot.slane %v928, 5
  %v983 = vrot.slane %v982, 4
  %v984 = vrot.slane %v685, 5
  %v985 = vsel %vm977, %v983, %v984
  %v986 = vrot.slane %v929, 5
  %v987 = vrot.slane %v986, 4
  %v988 = vrot.slane %v686, 5
  %v989 = vsel %vm977, %v987, %v988
  %v990 = vrot.slane %v930, 5
  %v991 = vrot.slane %v990, 4
  %v992 = vrot.slane %v687, 5
  %v993 = vsel %vm977, %v991, %v992
  %v994 = vrot.slane %v931, 5
  %v995 = vrot.slane %v994, 4
  %v996 = vrot.slane %v688, 5
  %v997 = vsel %vm977, %v995, %v996
  %v998 = vrot.slane %v932, 5
  %v999 = vrot.slane %v998, 4
  %v1000 = vrot.slane %v689, 5
  %v1001 = vsel %vm977, %v999, %v1000
  %v1002 = vrot.slane %v933, 5
  %v1003 = vrot.slane %v1002, 4
  %v1004 = vrot.slane %v690, 5
  %v1005 = vsel %vm977, %v1003, %v1004
  %v1006 = vrot.slane %v934, 5
  %v1007 = vrot.slane %v1006, 4
  %v1008 = vrot.slane %v691, 5
  %v1009 = vsel %vm977, %v1007, %v1008
  %v1010 = vrot.slane %v935, 5
  %v1011 = vrot.slane %v1010, 4
  %v1012 = vrot.slane %v692, 5
  %v1013 = vsel %vm977, %v1011, %v1012
  %v1014 = vrot.slane %v936, 5
  %v1015 = vrot.slane %v1014, 4
  %v1016 = vrot.slane %v693, 5
  %v1017 = vsel %vm977, %v1015, %v1016
  %v1018 = vrot.slane %v937, 5
  %v1019 = vrot.slane %v1018, 4
  %v1020 = vrot.slane %v694, 5
  %v1021 = vsel %vm977, %v1019, %v1020
  %v1022 = vrot.slane %v938, 5
  %v1023 = vrot.slane %v1022, 4
  %v1024 = vrot.slane %v695, 5
  %v1025 = vsel %vm977, %v1023, %v1024
  %v1026 = vrot.slane %v939, 5
  %v1027 = vrot.slane %v1026, 4
  %v1028 = vrot.slane %v696, 5
  %v1029 = vsel %vm977, %v1027, %v1028
  %v1030 = vrot.slane %v940, 5
  %v1031 = vrot.slane %v1030, 4
  %v1032 = vrot.slane %v697, 5
  %v1033 = vsel %vm977, %v1031, %v1032
  %v1034 = vrot.slane %v941, 5
  %v1035 = vrot.slane %v1034, 4
  %v1036 = vrot.slane %v698, 5
  %v1037 = vsel %vm977, %v1035, %v1036
  %v1038 = vrot.slane %v942, 5
  %v1039 = vrot.slane %v1038, 4
  %v1040 = vrot.slane %v699, 5
  %v1041 = vsel %vm977, %v1039, %v1040
  %v1042 = vld [vmem:[%s565] sm:$0xf]
  %v1043 = vld [vmem:[%s565 + $0x8] sm:$0xf]
  %v1044 = vld [vmem:[%s565 + $0x10] sm:$0xf]
  %v1045 = vld [vmem:[%s565 + $0x18] sm:$0xf]
  %v1046 = vld [vmem:[%s565 + $0x20] sm:$0xf]
  %v1047 = vld [vmem:[%s565 + $0x28] sm:$0xf]
  %v1048 = vld [vmem:[%s565 + $0x30] sm:$0xf]
  %v1049 = vld [vmem:[%s565 + $0x38] sm:$0xf]
  %v1050 = vld [vmem:[%s565 + $0x50] sm:$0xf]
  %v1051 = vld [vmem:[%s565 + $0x58] sm:$0xf]
  %v1052 = vld [vmem:[%s565 + $0x60] sm:$0xf]
  %v1053 = vld [vmem:[%s565 + $0x68] sm:$0xf]
  %v1054 = vld [vmem:[%s565 + $0x70] sm:$0xf]
  %v1055 = vld [vmem:[%s565 + $0x78] sm:$0xf]
  %v1056 = vld [vmem:[%s565 + $0x80] sm:$0xf]
  %v1057 = vld [vmem:[%s565 + $0x88] sm:$0xf]
  %v1058 = vld [vmem:[%s565 + $0x4] sm:$0x1]
  %v1059 = vld [vmem:[%s565 + $0xc] sm:$0x1]
  %v1060 = vld [vmem:[%s565 + $0x14] sm:$0x1]
  %v1061 = vld [vmem:[%s565 + $0x1c] sm:$0x1]
  %v1062 = vld [vmem:[%s565 + $0x24] sm:$0x1]
  %v1063 = vld [vmem:[%s565 + $0x2c] sm:$0x1]
  %v1064 = vld [vmem:[%s565 + $0x34] sm:$0x1]
  %v1065 = vld [vmem:[%s565 + $0x3c] sm:$0x1]
  %v1066 = vld [vmem:[%s565 + $0x54] sm:$0x1]
  %v1067 = vld [vmem:[%s565 + $0x5c] sm:$0x1]
  %v1068 = vld [vmem:[%s565 + $0x64] sm:$0x1]
  %v1069 = vld [vmem:[%s565 + $0x6c] sm:$0x1]
  %v1070 = vld [vmem:[%s565 + $0x74] sm:$0x1]
  %v1071 = vld [vmem:[%s565 + $0x7c] sm:$0x1]
  %v1072 = vld [vmem:[%s565 + $0x84] sm:$0x1]
  %v1073 = vld [vmem:[%s565 + $0x8c] sm:$0x1]
  %v1075 = vshrl.u32 %v1042, 16
  %v1077 = vrot.slane %v1075, 4
  %v1078 = vshll.u32 %v1042, 16
  %v1080 = vrot.slane %v1078, 5
  %v1081 = vor.u32 %v1077, %v1080
  %v1082 = vrot.slane %v1081, 4
  %v1084 = vshll.u32 %v1058, 16
  %v1086 = vrot.slane %v1084, 5
  %v1087 = vsel %vm702, %v1082, %v1086
  %v1089 = vshrl.u32 %v1043, 16
  %v1091 = vrot.slane %v1089, 4
  %v1092 = vshll.u32 %v1043, 16
  %v1094 = vrot.slane %v1092, 5
  %v1095 = vor.u32 %v1091, %v1094
  %v1096 = vrot.slane %v1095, 4
  %v1098 = vshll.u32 %v1059, 16
  %v1100 = vrot.slane %v1098, 5
  %v1101 = vsel %vm702, %v1096, %v1100
  %v1103 = vshrl.u32 %v1044, 16
  %v1105 = vrot.slane %v1103, 4
  %v1106 = vshll.u32 %v1044, 16
  %v1108 = vrot.slane %v1106, 5
  %v1109 = vor.u32 %v1105, %v1108
  %v1110 = vrot.slane %v1109, 4
  %v1112 = vshll.u32 %v1060, 16
  %v1114 = vrot.slane %v1112, 5
  %v1115 = vsel %vm702, %v1110, %v1114
  %v1117 = vshrl.u32 %v1045, 16
  %v1119 = vrot.slane %v1117, 4
  %v1120 = vshll.u32 %v1045, 16
  %v1122 = vrot.slane %v1120, 5
  %v1123 = vor.u32 %v1119, %v1122
  %v1124 = vrot.slane %v1123, 4
  %v1126 = vshll.u32 %v1061, 16
  %v1128 = vrot.slane %v1126, 5
  %v1129 = vsel %vm702, %v1124, %v1128
  %v1131 = vshrl.u32 %v1046, 16
  %v1133 = vrot.slane %v1131, 4
  %v1134 = vshll.u32 %v1046, 16
  %v1136 = vrot.slane %v1134, 5
  %v1137 = vor.u32 %v1133, %v1136
  %v1138 = vrot.slane %v1137, 4
  %v1140 = vshll.u32 %v1062, 16
  %v1142 = vrot.slane %v1140, 5
  %v1143 = vsel %vm702, %v1138, %v1142
  %v1145 = vshrl.u32 %v1047, 16
  %v1147 = vrot.slane %v1145, 4
  %v1148 = vshll.u32 %v1047, 16
  %v1150 = vrot.slane %v1148, 5
  %v1151 = vor.u32 %v1147, %v1150
  %v1152 = vrot.slane %v1151, 4
  %v1154 = vshll.u32 %v1063, 16
  %v1156 = vrot.slane %v1154, 5
  %v1157 = vsel %vm702, %v1152, %v1156
  %v1159 = vshrl.u32 %v1048, 16
  %v1161 = vrot.slane %v1159, 4
  %v1162 = vshll.u32 %v1048, 16
  %v1164 = vrot.slane %v1162, 5
  %v1165 = vor.u32 %v1161, %v1164
  %v1166 = vrot.slane %v1165, 4
  %v1168 = vshll.u32 %v1064, 16
  %v1170 = vrot.slane %v1168, 5
  %v1171 = vsel %vm702, %v1166, %v1170
  %v1173 = vshrl.u32 %v1049, 16
  %v1175 = vrot.slane %v1173, 4
  %v1176 = vshll.u32 %v1049, 16
  %v1178 = vrot.slane %v1176, 5
  %v1179 = vor.u32 %v1175, %v1178
  %v1180 = vrot.slane %v1179, 4
  %v1182 = vshll.u32 %v1065, 16
  %v1184 = vrot.slane %v1182, 5
  %v1185 = vsel %vm702, %v1180, %v1184
  %v1187 = vshrl.u32 %v1050, 16
  %v1189 = vrot.slane %v1187, 4
  %v1190 = vshll.u32 %v1050, 16
  %v1192 = vrot.slane %v1190, 5
  %v1193 = vor.u32 %v1189, %v1192
  %v1194 = vrot.slane %v1193, 4
  %v1196 = vshll.u32 %v1066, 16
  %v1198 = vrot.slane %v1196, 5
  %v1199 = vsel %vm702, %v1194, %v1198
  %v1201 = vshrl.u32 %v1051, 16
  %v1203 = vrot.slane %v1201, 4
  %v1204 = vshll.u32 %v1051, 16
  %v1206 = vrot.slane %v1204, 5
  %v1207 = vor.u32 %v1203, %v1206
  %v1208 = vrot.slane %v1207, 4
  %v1210 = vshll.u32 %v1067, 16
  %v1212 = vrot.slane %v1210, 5
  %v1213 = vsel %vm702, %v1208, %v1212
  %v1215 = vshrl.u32 %v1052, 16
  %v1217 = vrot.slane %v1215, 4
  %v1218 = vshll.u32 %v1052, 16
  %v1220 = vrot.slane %v1218, 5
  %v1221 = vor.u32 %v1217, %v1220
  %v1222 = vrot.slane %v1221, 4
  %v1224 = vshll.u32 %v1068, 16
  %v1226 = vrot.slane %v1224, 5
  %v1227 = vsel %vm702, %v1222, %v1226
  %v1229 = vshrl.u32 %v1053, 16
  %v1231 = vrot.slane %v1229, 4
  %v1232 = vshll.u32 %v1053, 16
  %v1234 = vrot.slane %v1232, 5
  %v1235 = vor.u32 %v1231, %v1234
  %v1236 = vrot.slane %v1235, 4
  %v1238 = vshll.u32 %v1069, 16
  %v1240 = vrot.slane %v1238, 5
  %v1241 = vsel %vm702, %v1236, %v1240
  %v1243 = vshrl.u32 %v1054, 16
  %v1245 = vrot.slane %v1243, 4
  %v1246 = vshll.u32 %v1054, 16
  %v1248 = vrot.slane %v1246, 5
  %v1249 = vor.u32 %v1245, %v1248
  %v1250 = vrot.slane %v1249, 4
  %v1252 = vshll.u32 %v1070, 16
  %v1254 = vrot.slane %v1252, 5
  %v1255 = vsel %vm702, %v1250, %v1254
  %v1257 = vshrl.u32 %v1055, 16
  %v1259 = vrot.slane %v1257, 4
  %v1260 = vshll.u32 %v1055, 16
  %v1262 = vrot.slane %v1260, 5
  %v1263 = vor.u32 %v1259, %v1262
  %v1264 = vrot.slane %v1263, 4
  %v1266 = vshll.u32 %v1071, 16
  %v1268 = vrot.slane %v1266, 5
  %v1269 = vsel %vm702, %v1264, %v1268
  %v1271 = vshrl.u32 %v1056, 16
  %v1273 = vrot.slane %v1271, 4
  %v1274 = vshll.u32 %v1056, 16
  %v1276 = vrot.slane %v1274, 5
  %v1277 = vor.u32 %v1273, %v1276
  %v1278 = vrot.slane %v1277, 4
  %v1280 = vshll.u32 %v1072, 16
  %v1282 = vrot.slane %v1280, 5
  %v1283 = vsel %vm702, %v1278, %v1282
  %v1285 = vshrl.u32 %v1057, 16
  %v1287 = vrot.slane %v1285, 4
  %v1288 = vshll.u32 %v1057, 16
  %v1290 = vrot.slane %v1288, 5
  %v1291 = vor.u32 %v1287, %v1290
  %v1292 = vrot.slane %v1291, 4
  %v1294 = vshll.u32 %v1073, 16
  %v1296 = vrot.slane %v1294, 5
  %v1297 = vsel %vm702, %v1292, %v1296
  %v1298 = vld [vmem:[%s565] sm:$0xe]
  %v1299 = vld [vmem:[%s565 + $0x8] sm:$0xe]
  %v1300 = vld [vmem:[%s565 + $0x10] sm:$0xe]
  %v1301 = vld [vmem:[%s565 + $0x18] sm:$0xe]
  %v1302 = vld [vmem:[%s565 + $0x20] sm:$0xe]
  %v1303 = vld [vmem:[%s565 + $0x28] sm:$0xe]
  %v1304 = vld [vmem:[%s565 + $0x30] sm:$0xe]
  %v1305 = vld [vmem:[%s565 + $0x38] sm:$0xe]
  %v1306 = vld [vmem:[%s565 + $0x50] sm:$0xe]
  %v1307 = vld [vmem:[%s565 + $0x58] sm:$0xe]
  %v1308 = vld [vmem:[%s565 + $0x60] sm:$0xe]
  %v1309 = vld [vmem:[%s565 + $0x68] sm:$0xe]
  %v1310 = vld [vmem:[%s565 + $0x70] sm:$0xe]
  %v1311 = vld [vmem:[%s565 + $0x78] sm:$0xe]
  %v1312 = vld [vmem:[%s565 + $0x80] sm:$0xe]
  %v1313 = vld [vmem:[%s565 + $0x88] sm:$0xe]
  %v1346 = vrot.slane %v1298, 5
  %v1347 = vrot.slane %v1346, 4
  %v1348 = vrot.slane %v1058, 5
  %v1349 = vsel %vm977, %v1347, %v1348
  %v1350 = vrot.slane %v1299, 5
  %v1351 = vrot.slane %v1350, 4
  %v1352 = vrot.slane %v1059, 5
  %v1353 = vsel %vm977, %v1351, %v1352
  %v1354 = vrot.slane %v1300, 5
  %v1355 = vrot.slane %v1354, 4
  %v1356 = vrot.slane %v1060, 5
  %v1357 = vsel %vm977, %v1355, %v1356
  %v1358 = vrot.slane %v1301, 5
  %v1359 = vrot.slane %v1358, 4
  %v1360 = vrot.slane %v1061, 5
  %v1361 = vsel %vm977, %v1359, %v1360
  %v1362 = vrot.slane %v1302, 5
  %v1363 = vrot.slane %v1362, 4
  %v1364 = vrot.slane %v1062, 5
  %v1365 = vsel %vm977, %v1363, %v1364
  %v1366 = vrot.slane %v1303, 5
  %v1367 = vrot.slane %v1366, 4
  %v1368 = vrot.slane %v1063, 5
  %v1369 = vsel %vm977, %v1367, %v1368
  %v1370 = vrot.slane %v1304, 5
  %v1371 = vrot.slane %v1370, 4
  %v1372 = vrot.slane %v1064, 5
  %v1373 = vsel %vm977, %v1371, %v1372
  %v1374 = vrot.slane %v1305, 5
  %v1375 = vrot.slane %v1374, 4
  %v1376 = vrot.slane %v1065, 5
  %v1377 = vsel %vm977, %v1375, %v1376
  %v1378 = vrot.slane %v1306, 5
  %v1379 = vrot.slane %v1378, 4
  %v1380 = vrot.slane %v1066, 5
  %v1381 = vsel %vm977, %v1379, %v1380
  %v1382 = vrot.slane %v1307, 5
  %v1383 = vrot.slane %v1382, 4
  %v1384 = vrot.slane %v1067, 5
  %v1385 = vsel %vm977, %v1383, %v1384
  %v1386 = vrot.slane %v1308, 5
  %v1387 = vrot.slane %v1386, 4
  %v1388 = vrot.slane %v1068, 5
  %v1389 = vsel %vm977, %v1387, %v1388
  %v1390 = vrot.slane %v1309, 5
  %v1391 = vrot.slane %v1390, 4
  %v1392 = vrot.slane %v1069, 5
  %v1393 = vsel %vm977, %v1391, %v1392
  %v1394 = vrot.slane %v1310, 5
  %v1395 = vrot.slane %v1394, 4
  %v1396 = vrot.slane %v1070, 5
  %v1397 = vsel %vm977, %v1395, %v1396
  %v1398 = vrot.slane %v1311, 5
  %v1399 = vrot.slane %v1398, 4
  %v1400 = vrot.slane %v1071, 5
  %v1401 = vsel %vm977, %v1399, %v1400
  %v1402 = vrot.slane %v1312, 5
  %v1403 = vrot.slane %v1402, 4
  %v1404 = vrot.slane %v1072, 5
  %v1405 = vsel %vm977, %v1403, %v1404
  %v1406 = vrot.slane %v1313, 5
  %v1407 = vrot.slane %v1406, 4
  %v1408 = vrot.slane %v1073, 5
  %v1409 = vsel %vm977, %v1407, %v1408
  %s1410 = scalar_lea.vmem [#allocation2], 16
  %v1411 = vld [vmem:[%s1410] sm:$0xf]
  %v1412 = vld [vmem:[%s1410 + $0x8] sm:$0xf]
  %v1413 = vld [vmem:[%s1410 + $0x10] sm:$0xf]
  %v1414 = vld [vmem:[%s1410 + $0x18] sm:$0xf]
  %v1415 = vld [vmem:[%s1410 + $0x20] sm:$0xf]
  %v1416 = vld [vmem:[%s1410 + $0x28] sm:$0xf]
  %v1417 = vld [vmem:[%s1410 + $0x30] sm:$0xf]
  %v1418 = vld [vmem:[%s1410 + $0x38] sm:$0xf]
  %v1419 = vld [vmem:[%s1410 + $0x50] sm:$0xf]
  %v1420 = vld [vmem:[%s1410 + $0x58] sm:$0xf]
  %v1421 = vld [vmem:[%s1410 + $0x60] sm:$0xf]
  %v1422 = vld [vmem:[%s1410 + $0x68] sm:$0xf]
  %v1423 = vld [vmem:[%s1410 + $0x70] sm:$0xf]
  %v1424 = vld [vmem:[%s1410 + $0x78] sm:$0xf]
  %v1425 = vld [vmem:[%s1410 + $0x80] sm:$0xf]
  %v1426 = vld [vmem:[%s1410 + $0x88] sm:$0xf]
  %v1427 = vld [vmem:[%s1410 + $0x4] sm:$0x1]
  %v1428 = vld [vmem:[%s1410 + $0xc] sm:$0x1]
  %v1429 = vld [vmem:[%s1410 + $0x14] sm:$0x1]
  %v1430 = vld [vmem:[%s1410 + $0x1c] sm:$0x1]
  %v1431 = vld [vmem:[%s1410 + $0x24] sm:$0x1]
  %v1432 = vld [vmem:[%s1410 + $0x2c] sm:$0x1]
  %v1433 = vld [vmem:[%s1410 + $0x34] sm:$0x1]
  %v1434 = vld [vmem:[%s1410 + $0x3c] sm:$0x1]
  %v1435 = vld [vmem:[%s1410 + $0x54] sm:$0x1]
  %v1436 = vld [vmem:[%s1410 + $0x5c] sm:$0x1]
  %v1437 = vld [vmem:[%s1410 + $0x64] sm:$0x1]
  %v1438 = vld [vmem:[%s1410 + $0x6c] sm:$0x1]
  %v1439 = vld [vmem:[%s1410 + $0x74] sm:$0x1]
  %v1440 = vld [vmem:[%s1410 + $0x7c] sm:$0x1]
  %v1441 = vld [vmem:[%s1410 + $0x84] sm:$0x1]
  %v1442 = vld [vmem:[%s1410 + $0x8c] sm:$0x1]
  %v1444 = vshrl.u32 %v1411, 16
  %v1446 = vrot.slane %v1444, 4
  %v1447 = vshll.u32 %v1411, 16
  %v1449 = vrot.slane %v1447, 5
  %v1450 = vor.u32 %v1446, %v1449
  %v1451 = vrot.slane %v1450, 4
  %v1453 = vshll.u32 %v1427, 16
  %v1455 = vrot.slane %v1453, 5
  %v1456 = vsel %vm702, %v1451, %v1455
  %v1458 = vshrl.u32 %v1412, 16
  %v1460 = vrot.slane %v1458, 4
  %v1461 = vshll.u32 %v1412, 16
  %v1463 = vrot.slane %v1461, 5
  %v1464 = vor.u32 %v1460, %v1463
  %v1465 = vrot.slane %v1464, 4
  %v1467 = vshll.u32 %v1428, 16
  %v1469 = vrot.slane %v1467, 5
  %v1470 = vsel %vm702, %v1465, %v1469
  %v1472 = vshrl.u32 %v1413, 16
  %v1474 = vrot.slane %v1472, 4
  %v1475 = vshll.u32 %v1413, 16
  %v1477 = vrot.slane %v1475, 5
  %v1478 = vor.u32 %v1474, %v1477
  %v1479 = vrot.slane %v1478, 4
  %v1481 = vshll.u32 %v1429, 16
  %v1483 = vrot.slane %v1481, 5
  %v1484 = vsel %vm702, %v1479, %v1483
  %v1486 = vshrl.u32 %v1414, 16
  %v1488 = vrot.slane %v1486, 4
  %v1489 = vshll.u32 %v1414, 16
  %v1491 = vrot.slane %v1489, 5
  %v1492 = vor.u32 %v1488, %v1491
  %v1493 = vrot.slane %v1492, 4
  %v1495 = vshll.u32 %v1430, 16
  %v1497 = vrot.slane %v1495, 5
  %v1498 = vsel %vm702, %v1493, %v1497
  %v1500 = vshrl.u32 %v1415, 16
  %v1502 = vrot.slane %v1500, 4
  %v1503 = vshll.u32 %v1415, 16
  %v1505 = vrot.slane %v1503, 5
  %v1506 = vor.u32 %v1502, %v1505
  %v1507 = vrot.slane %v1506, 4
  %v1509 = vshll.u32 %v1431, 16
  %v1511 = vrot.slane %v1509, 5
  %v1512 = vsel %vm702, %v1507, %v1511
  %v1514 = vshrl.u32 %v1416, 16
  %v1516 = vrot.slane %v1514, 4
  %v1517 = vshll.u32 %v1416, 16
  %v1519 = vrot.slane %v1517, 5
  %v1520 = vor.u32 %v1516, %v1519
  %v1521 = vrot.slane %v1520, 4
  %v1523 = vshll.u32 %v1432, 16
  %v1525 = vrot.slane %v1523, 5
  %v1526 = vsel %vm702, %v1521, %v1525
  %v1528 = vshrl.u32 %v1417, 16
  %v1530 = vrot.slane %v1528, 4
  %v1531 = vshll.u32 %v1417, 16
  %v1533 = vrot.slane %v1531, 5
  %v1534 = vor.u32 %v1530, %v1533
  %v1535 = vrot.slane %v1534, 4
  %v1537 = vshll.u32 %v1433, 16
  %v1539 = vrot.slane %v1537, 5
  %v1540 = vsel %vm702, %v1535, %v1539
  %v1542 = vshrl.u32 %v1418, 16
  %v1544 = vrot.slane %v1542, 4
  %v1545 = vshll.u32 %v1418, 16
  %v1547 = vrot.slane %v1545, 5
  %v1548 = vor.u32 %v1544, %v1547
  %v1549 = vrot.slane %v1548, 4
  %v1551 = vshll.u32 %v1434, 16
  %v1553 = vrot.slane %v1551, 5
  %v1554 = vsel %vm702, %v1549, %v1553
  %v1556 = vshrl.u32 %v1419, 16
  %v1558 = vrot.slane %v1556, 4
  %v1559 = vshll.u32 %v1419, 16
  %v1561 = vrot.slane %v1559, 5
  %v1562 = vor.u32 %v1558, %v1561
  %v1563 = vrot.slane %v1562, 4
  %v1565 = vshll.u32 %v1435, 16
  %v1567 = vrot.slane %v1565, 5
  %v1568 = vsel %vm702, %v1563, %v1567
  %v1570 = vshrl.u32 %v1420, 16
  %v1572 = vrot.slane %v1570, 4
  %v1573 = vshll.u32 %v1420, 16
  %v1575 = vrot.slane %v1573, 5
  %v1576 = vor.u32 %v1572, %v1575
  %v1577 = vrot.slane %v1576, 4
  %v1579 = vshll.u32 %v1436, 16
  %v1581 = vrot.slane %v1579, 5
  %v1582 = vsel %vm702, %v1577, %v1581
  %v1584 = vshrl.u32 %v1421, 16
  %v1586 = vrot.slane %v1584, 4
  %v1587 = vshll.u32 %v1421, 16
  %v1589 = vrot.slane %v1587, 5
  %v1590 = vor.u32 %v1586, %v1589
  %v1591 = vrot.slane %v1590, 4
  %v1593 = vshll.u32 %v1437, 16
  %v1595 = vrot.slane %v1593, 5
  %v1596 = vsel %vm702, %v1591, %v1595
  %v1598 = vshrl.u32 %v1422, 16
  %v1600 = vrot.slane %v1598, 4
  %v1601 = vshll.u32 %v1422, 16
  %v1603 = vrot.slane %v1601, 5
  %v1604 = vor.u32 %v1600, %v1603
  %v1605 = vrot.slane %v1604, 4
  %v1607 = vshll.u32 %v1438, 16
  %v1609 = vrot.slane %v1607, 5
  %v1610 = vsel %vm702, %v1605, %v1609
  %v1612 = vshrl.u32 %v1423, 16
  %v1614 = vrot.slane %v1612, 4
  %v1615 = vshll.u32 %v1423, 16
  %v1617 = vrot.slane %v1615, 5
  %v1618 = vor.u32 %v1614, %v1617
  %v1619 = vrot.slane %v1618, 4
  %v1621 = vshll.u32 %v1439, 16
  %v1623 = vrot.slane %v1621, 5
  %v1624 = vsel %vm702, %v1619, %v1623
  %v1626 = vshrl.u32 %v1424, 16
  %v1628 = vrot.slane %v1626, 4
  %v1629 = vshll.u32 %v1424, 16
  %v1631 = vrot.slane %v1629, 5
  %v1632 = vor.u32 %v1628, %v1631
  %v1633 = vrot.slane %v1632, 4
  %v1635 = vshll.u32 %v1440, 16
  %v1637 = vrot.slane %v1635, 5
  %v1638 = vsel %vm702, %v1633, %v1637
  %v1640 = vshrl.u32 %v1425, 16
  %v1642 = vrot.slane %v1640, 4
  %v1643 = vshll.u32 %v1425, 16
  %v1645 = vrot.slane %v1643, 5
  %v1646 = vor.u32 %v1642, %v1645
  %v1647 = vrot.slane %v1646, 4
  %v1649 = vshll.u32 %v1441, 16
  %v1651 = vrot.slane %v1649, 5
  %v1652 = vsel %vm702, %v1647, %v1651
  %v1654 = vshrl.u32 %v1426, 16
  %v1656 = vrot.slane %v1654, 4
  %v1657 = vshll.u32 %v1426, 16
  %v1659 = vrot.slane %v1657, 5
  %v1660 = vor.u32 %v1656, %v1659
  %v1661 = vrot.slane %v1660, 4
  %v1663 = vshll.u32 %v1442, 16
  %v1665 = vrot.slane %v1663, 5
  %v1666 = vsel %vm702, %v1661, %v1665
  %v1667 = vld [vmem:[%s1410] sm:$0xe]
  %v1668 = vld [vmem:[%s1410 + $0x8] sm:$0xe]
  %v1669 = vld [vmem:[%s1410 + $0x10] sm:$0xe]
  %v1670 = vld [vmem:[%s1410 + $0x18] sm:$0xe]
  %v1671 = vld [vmem:[%s1410 + $0x20] sm:$0xe]
  %v1672 = vld [vmem:[%s1410 + $0x28] sm:$0xe]
  %v1673 = vld [vmem:[%s1410 + $0x30] sm:$0xe]
  %v1674 = vld [vmem:[%s1410 + $0x38] sm:$0xe]
  %v1675 = vld [vmem:[%s1410 + $0x50] sm:$0xe]
  %v1676 = vld [vmem:[%s1410 + $0x58] sm:$0xe]
  %v1677 = vld [vmem:[%s1410 + $0x60] sm:$0xe]
  %v1678 = vld [vmem:[%s1410 + $0x68] sm:$0xe]
  %v1679 = vld [vmem:[%s1410 + $0x70] sm:$0xe]
  %v1680 = vld [vmem:[%s1410 + $0x78] sm:$0xe]
  %v1681 = vld [vmem:[%s1410 + $0x80] sm:$0xe]
  %v1682 = vld [vmem:[%s1410 + $0x88] sm:$0xe]
  %v1715 = vrot.slane %v1667, 5
  %v1716 = vrot.slane %v1715, 4
  %v1717 = vrot.slane %v1427, 5
  %v1718 = vsel %vm977, %v1716, %v1717
  %v1719 = vrot.slane %v1668, 5
  %v1720 = vrot.slane %v1719, 4
  %v1721 = vrot.slane %v1428, 5
  %v1722 = vsel %vm977, %v1720, %v1721
  %v1723 = vrot.slane %v1669, 5
  %v1724 = vrot.slane %v1723, 4
  %v1725 = vrot.slane %v1429, 5
  %v1726 = vsel %vm977, %v1724, %v1725
  %v1727 = vrot.slane %v1670, 5
  %v1728 = vrot.slane %v1727, 4
  %v1729 = vrot.slane %v1430, 5
  %v1730 = vsel %vm977, %v1728, %v1729
  %v1731 = vrot.slane %v1671, 5
  %v1732 = vrot.slane %v1731, 4
  %v1733 = vrot.slane %v1431, 5
  %v1734 = vsel %vm977, %v1732, %v1733
  %v1735 = vrot.slane %v1672, 5
  %v1736 = vrot.slane %v1735, 4
  %v1737 = vrot.slane %v1432, 5
  %v1738 = vsel %vm977, %v1736, %v1737
  %v1739 = vrot.slane %v1673, 5
  %v1740 = vrot.slane %v1739, 4
  %v1741 = vrot.slane %v1433, 5
  %v1742 = vsel %vm977, %v1740, %v1741
  %v1743 = vrot.slane %v1674, 5
  %v1744 = vrot.slane %v1743, 4
  %v1745 = vrot.slane %v1434, 5
  %v1746 = vsel %vm977, %v1744, %v1745
  %v1747 = vrot.slane %v1675, 5
  %v1748 = vrot.slane %v1747, 4
  %v1749 = vrot.slane %v1435, 5
  %v1750 = vsel %vm977, %v1748, %v1749
  %v1751 = vrot.slane %v1676, 5
  %v1752 = vrot.slane %v1751, 4
  %v1753 = vrot.slane %v1436, 5
  %v1754 = vsel %vm977, %v1752, %v1753
  %v1755 = vrot.slane %v1677, 5
  %v1756 = vrot.slane %v1755, 4
  %v1757 = vrot.slane %v1437, 5
  %v1758 = vsel %vm977, %v1756, %v1757
  %v1759 = vrot.slane %v1678, 5
  %v1760 = vrot.slane %v1759, 4
  %v1761 = vrot.slane %v1438, 5
  %v1762 = vsel %vm977, %v1760, %v1761
  %v1763 = vrot.slane %v1679, 5
  %v1764 = vrot.slane %v1763, 4
  %v1765 = vrot.slane %v1439, 5
  %v1766 = vsel %vm977, %v1764, %v1765
  %v1767 = vrot.slane %v1680, 5
  %v1768 = vrot.slane %v1767, 4
  %v1769 = vrot.slane %v1440, 5
  %v1770 = vsel %vm977, %v1768, %v1769
  %v1771 = vrot.slane %v1681, 5
  %v1772 = vrot.slane %v1771, 4
  %v1773 = vrot.slane %v1441, 5
  %v1774 = vsel %vm977, %v1772, %v1773
  %v1775 = vrot.slane %v1682, 5
  %v1776 = vrot.slane %v1775, 4
  %v1777 = vrot.slane %v1442, 5
  %v1778 = vsel %vm977, %v1776, %v1777
  %v1795 = vunpack.c.l.b16 %v668
  %v1796 = vunpack.c.l.b16 %v669
  %v1797 = vunpack.c.l.b16 %v670
  %v1798 = vunpack.c.l.b16 %v671
  %v1799 = vunpack.c.l.b16 %v672
  %v1800 = vunpack.c.l.b16 %v673
  %v1801 = vunpack.c.l.b16 %v674
  %v1802 = vunpack.c.l.b16 %v675
  %v1803 = vunpack.c.l.b16 %v676
  %v1804 = vunpack.c.l.b16 %v677
  %v1805 = vunpack.c.l.b16 %v678
  %v1806 = vunpack.c.l.b16 %v679
  %v1807 = vunpack.c.l.b16 %v680
  %v1808 = vunpack.c.l.b16 %v681
  %v1809 = vunpack.c.l.b16 %v682
  %v1810 = vunpack.c.l.b16 %v683
  %v1811 = vpack.c.b16 %v1796, %v1795
  %v1812 = vpack.c.b16 %v1798, %v1797
  %v1813 = vpack.c.b16 %v1800, %v1799
  %v1814 = vpack.c.b16 %v1802, %v1801
  %v1815 = vpack.c.b16 %v1804, %v1803
  %v1816 = vpack.c.b16 %v1806, %v1805
  %v1817 = vpack.c.b16 %v1808, %v1807
  %v1818 = vpack.c.b16 %v1810, %v1809
  %v1819 = vunpack.c.l.b16 %v716
  %v1820 = vunpack.c.l.b16 %v730
  %v1821 = vunpack.c.l.b16 %v744
  %v1822 = vunpack.c.l.b16 %v758
  %v1823 = vunpack.c.l.b16 %v772
  %v1824 = vunpack.c.l.b16 %v786
  %v1825 = vunpack.c.l.b16 %v800
  %v1826 = vunpack.c.l.b16 %v814
  %v1827 = vunpack.c.l.b16 %v828
  %v1828 = vunpack.c.l.b16 %v842
  %v1829 = vunpack.c.l.b16 %v856
  %v1830 = vunpack.c.l.b16 %v870
  %v1831 = vunpack.c.l.b16 %v884
  %v1832 = vunpack.c.l.b16 %v898
  %v1833 = vunpack.c.l.b16 %v912
  %v1834 = vunpack.c.l.b16 %v926
  %v1835 = vpack.c.b16 %v1820, %v1819
  %v1836 = vpack.c.b16 %v1822, %v1821
  %v1837 = vpack.c.b16 %v1824, %v1823
  %v1838 = vpack.c.b16 %v1826, %v1825
  %v1839 = vpack.c.b16 %v1828, %v1827
  %v1840 = vpack.c.b16 %v1830, %v1829
  %v1841 = vpack.c.b16 %v1832, %v1831
  %v1842 = vpack.c.b16 %v1834, %v1833
  %1843 = vrot.lane.b32.xlu0 %v1835, 8
  %v1844 = vpop.permute.xlu0 %1843
  %1845 = vrot.lane.b32.xlu0 %v1836, 8
  %v1846 = vpop.permute.xlu0 %1845
  %1847 = vrot.lane.b32.xlu0 %v1837, 8
  %v1848 = vpop.permute.xlu0 %1847
  %1849 = vrot.lane.b32.xlu0 %v1838, 8
  %v1850 = vpop.permute.xlu0 %1849
  %1851 = vrot.lane.b32.xlu0 %v1839, 8
  %v1852 = vpop.permute.xlu0 %1851
  %1853 = vrot.lane.b32.xlu0 %v1840, 8
  %v1854 = vpop.permute.xlu0 %1853
  %1855 = vrot.lane.b32.xlu0 %v1841, 8
  %v1856 = vpop.permute.xlu0 %1855
  %1857 = vrot.lane.b32.xlu0 %v1842, 8
  %v1858 = vpop.permute.xlu0 %1857
  %v1859 = vunpack.c.l.b16 %v981
  %v1860 = vunpack.c.l.b16 %v985
  %v1861 = vunpack.c.l.b16 %v989
  %v1862 = vunpack.c.l.b16 %v993
  %v1863 = vunpack.c.l.b16 %v997
  %v1864 = vunpack.c.l.b16 %v1001
  %v1865 = vunpack.c.l.b16 %v1005
  %v1866 = vunpack.c.l.b16 %v1009
  %v1867 = vunpack.c.l.b16 %v1013
  %v1868 = vunpack.c.l.b16 %v1017
  %v1869 = vunpack.c.l.b16 %v1021
  %v1870 = vunpack.c.l.b16 %v1025
  %v1871 = vunpack.c.l.b16 %v1029
  %v1872 = vunpack.c.l.b16 %v1033
  %v1873 = vunpack.c.l.b16 %v1037
  %v1874 = vunpack.c.l.b16 %v1041
  %v1875 = vpack.c.b16 %v1860, %v1859
  %v1876 = vpack.c.b16 %v1862, %v1861
  %v1877 = vpack.c.b16 %v1864, %v1863
  %v1878 = vpack.c.b16 %v1866, %v1865
  %v1879 = vpack.c.b16 %v1868, %v1867
  %v1880 = vpack.c.b16 %v1870, %v1869
  %v1881 = vpack.c.b16 %v1872, %v1871
  %v1882 = vpack.c.b16 %v1874, %v1873
  %1883 = vrot.lane.b32.xlu0 %v1875, 16
  %v1884 = vpop.permute.xlu0 %1883
  %1885 = vrot.lane.b32.xlu0 %v1876, 16
  %v1886 = vpop.permute.xlu0 %1885
  %1887 = vrot.lane.b32.xlu0 %v1877, 16
  %v1888 = vpop.permute.xlu0 %1887
  %1889 = vrot.lane.b32.xlu0 %v1878, 16
  %v1890 = vpop.permute.xlu0 %1889
  %1891 = vrot.lane.b32.xlu0 %v1879, 16
  %v1892 = vpop.permute.xlu0 %1891
  %1893 = vrot.lane.b32.xlu0 %v1880, 16
  %v1894 = vpop.permute.xlu0 %1893
  %1895 = vrot.lane.b32.xlu0 %v1881, 16
  %v1896 = vpop.permute.xlu0 %1895
  %1897 = vrot.lane.b32.xlu0 %v1882, 16
  %v1898 = vpop.permute.xlu0 %1897
  %v1915 = vunpack.c.l.b16 %v1042
  %v1916 = vunpack.c.l.b16 %v1043
  %v1917 = vunpack.c.l.b16 %v1044
  %v1918 = vunpack.c.l.b16 %v1045
  %v1919 = vunpack.c.l.b16 %v1046
  %v1920 = vunpack.c.l.b16 %v1047
  %v1921 = vunpack.c.l.b16 %v1048
  %v1922 = vunpack.c.l.b16 %v1049
  %v1923 = vunpack.c.l.b16 %v1050
  %v1924 = vunpack.c.l.b16 %v1051
  %v1925 = vunpack.c.l.b16 %v1052
  %v1926 = vunpack.c.l.b16 %v1053
  %v1927 = vunpack.c.l.b16 %v1054
  %v1928 = vunpack.c.l.b16 %v1055
  %v1929 = vunpack.c.l.b16 %v1056
  %v1930 = vunpack.c.l.b16 %v1057
  %v1931 = vpack.c.b16 %v1916, %v1915
  %v1932 = vpack.c.b16 %v1918, %v1917
  %v1933 = vpack.c.b16 %v1920, %v1919
  %v1934 = vpack.c.b16 %v1922, %v1921
  %v1935 = vpack.c.b16 %v1924, %v1923
  %v1936 = vpack.c.b16 %v1926, %v1925
  %v1937 = vpack.c.b16 %v1928, %v1927
  %v1938 = vpack.c.b16 %v1930, %v1929
  %1939 = vrot.lane.b32.xlu0 %v1931, 24
  %v1940 = vpop.permute.xlu0 %1939
  %1941 = vrot.lane.b32.xlu0 %v1932, 24
  %v1942 = vpop.permute.xlu0 %1941
  %1943 = vrot.lane.b32.xlu0 %v1933, 24
  %v1944 = vpop.permute.xlu0 %1943
  %1945 = vrot.lane.b32.xlu0 %v1934, 24
  %v1946 = vpop.permute.xlu0 %1945
  %1947 = vrot.lane.b32.xlu0 %v1935, 24
  %v1948 = vpop.permute.xlu0 %1947
  %1949 = vrot.lane.b32.xlu0 %v1936, 24
  %v1950 = vpop.permute.xlu0 %1949
  %1951 = vrot.lane.b32.xlu0 %v1937, 24
  %v1952 = vpop.permute.xlu0 %1951
  %1953 = vrot.lane.b32.xlu0 %v1938, 24
  %v1954 = vpop.permute.xlu0 %1953
  %v1955 = vunpack.c.l.b16 %v1087
  %v1956 = vunpack.c.l.b16 %v1101
  %v1957 = vunpack.c.l.b16 %v1115
  %v1958 = vunpack.c.l.b16 %v1129
  %v1959 = vunpack.c.l.b16 %v1143
  %v1960 = vunpack.c.l.b16 %v1157
  %v1961 = vunpack.c.l.b16 %v1171
  %v1962 = vunpack.c.l.b16 %v1185
  %v1963 = vunpack.c.l.b16 %v1199
  %v1964 = vunpack.c.l.b16 %v1213
  %v1965 = vunpack.c.l.b16 %v1227
  %v1966 = vunpack.c.l.b16 %v1241
  %v1967 = vunpack.c.l.b16 %v1255
  %v1968 = vunpack.c.l.b16 %v1269
  %v1969 = vunpack.c.l.b16 %v1283
  %v1970 = vunpack.c.l.b16 %v1297
  %v1971 = vpack.c.b16 %v1956, %v1955
  %v1972 = vpack.c.b16 %v1958, %v1957
  %v1973 = vpack.c.b16 %v1960, %v1959
  %v1974 = vpack.c.b16 %v1962, %v1961
  %v1975 = vpack.c.b16 %v1964, %v1963
  %v1976 = vpack.c.b16 %v1966, %v1965
  %v1977 = vpack.c.b16 %v1968, %v1967
  %v1978 = vpack.c.b16 %v1970, %v1969
  %1979 = vrot.lane.b32.xlu0 %v1971, 32
  %v1980 = vpop.permute.xlu0 %1979
  %1981 = vrot.lane.b32.xlu0 %v1972, 32
  %v1982 = vpop.permute.xlu0 %1981
  %1983 = vrot.lane.b32.xlu0 %v1973, 32
  %v1984 = vpop.permute.xlu0 %1983
  %1985 = vrot.lane.b32.xlu0 %v1974, 32
  %v1986 = vpop.permute.xlu0 %1985
  %1987 = vrot.lane.b32.xlu0 %v1975, 32
  %v1988 = vpop.permute.xlu0 %1987
  %1989 = vrot.lane.b32.xlu0 %v1976, 32
  %v1990 = vpop.permute.xlu0 %1989
  %1991 = vrot.lane.b32.xlu0 %v1977, 32
  %v1992 = vpop.permute.xlu0 %1991
  %1993 = vrot.lane.b32.xlu0 %v1978, 32
  %v1994 = vpop.permute.xlu0 %1993
  %v1995 = vunpack.c.l.b16 %v1349
  %v1996 = vunpack.c.l.b16 %v1353
  %v1997 = vunpack.c.l.b16 %v1357
  %v1998 = vunpack.c.l.b16 %v1361
  %v1999 = vunpack.c.l.b16 %v1365
  %v2000 = vunpack.c.l.b16 %v1369
  %v2001 = vunpack.c.l.b16 %v1373
  %v2002 = vunpack.c.l.b16 %v1377
  %v2003 = vunpack.c.l.b16 %v1381
  %v2004 = vunpack.c.l.b16 %v1385
  %v2005 = vunpack.c.l.b16 %v1389
  %v2006 = vunpack.c.l.b16 %v1393
  %v2007 = vunpack.c.l.b16 %v1397
  %v2008 = vunpack.c.l.b16 %v1401
  %v2009 = vunpack.c.l.b16 %v1405
  %v2010 = vunpack.c.l.b16 %v1409
  %v2011 = vpack.c.b16 %v1996, %v1995
  %v2012 = vpack.c.b16 %v1998, %v1997
  %v2013 = vpack.c.b16 %v2000, %v1999
  %v2014 = vpack.c.b16 %v2002, %v2001
  %v2015 = vpack.c.b16 %v2004, %v2003
  %v2016 = vpack.c.b16 %v2006, %v2005
  %v2017 = vpack.c.b16 %v2008, %v2007
  %v2018 = vpack.c.b16 %v2010, %v2009
  %2019 = vrot.lane.b32.xlu0 %v2011, 40
  %v2020 = vpop.permute.xlu0 %2019
  %2021 = vrot.lane.b32.xlu0 %v2012, 40
  %v2022 = vpop.permute.xlu0 %2021
  %2023 = vrot.lane.b32.xlu0 %v2013, 40
  %v2024 = vpop.permute.xlu0 %2023
  %2025 = vrot.lane.b32.xlu0 %v2014, 40
  %v2026 = vpop.permute.xlu0 %2025
  %2027 = vrot.lane.b32.xlu0 %v2015, 40
  %v2028 = vpop.permute.xlu0 %2027
  %2029 = vrot.lane.b32.xlu0 %v2016, 40
  %v2030 = vpop.permute.xlu0 %2029
  %2031 = vrot.lane.b32.xlu0 %v2017, 40
  %v2032 = vpop.permute.xlu0 %2031
  %2033 = vrot.lane.b32.xlu0 %v2018, 40
  %v2034 = vpop.permute.xlu0 %2033
  %v2051 = vunpack.c.l.b16 %v1411
  %v2052 = vunpack.c.l.b16 %v1412
  %v2053 = vunpack.c.l.b16 %v1413
  %v2054 = vunpack.c.l.b16 %v1414
  %v2055 = vunpack.c.l.b16 %v1415
  %v2056 = vunpack.c.l.b16 %v1416
  %v2057 = vunpack.c.l.b16 %v1417
  %v2058 = vunpack.c.l.b16 %v1418
  %v2059 = vunpack.c.l.b16 %v1419
  %v2060 = vunpack.c.l.b16 %v1420
  %v2061 = vunpack.c.l.b16 %v1421
  %v2062 = vunpack.c.l.b16 %v1422
  %v2063 = vunpack.c.l.b16 %v1423
  %v2064 = vunpack.c.l.b16 %v1424
  %v2065 = vunpack.c.l.b16 %v1425
  %v2066 = vunpack.c.l.b16 %v1426
  %v2067 = vpack.c.b16 %v2052, %v2051
  %v2068 = vpack.c.b16 %v2054, %v2053
  %v2069 = vpack.c.b16 %v2056, %v2055
  %v2070 = vpack.c.b16 %v2058, %v2057
  %v2071 = vpack.c.b16 %v2060, %v2059
  %v2072 = vpack.c.b16 %v2062, %v2061
  %v2073 = vpack.c.b16 %v2064, %v2063
  %v2074 = vpack.c.b16 %v2066, %v2065
  %2075 = vrot.lane.b32.xlu0 %v2067, 48
  %v2076 = vpop.permute.xlu0 %2075
  %2077 = vrot.lane.b32.xlu0 %v2068, 48
  %v2078 = vpop.permute.xlu0 %2077
  %2079 = vrot.lane.b32.xlu0 %v2069, 48
  %v2080 = vpop.permute.xlu0 %2079
  %2081 = vrot.lane.b32.xlu0 %v2070, 48
  %v2082 = vpop.permute.xlu0 %2081
  %2083 = vrot.lane.b32.xlu0 %v2071, 48
  %v2084 = vpop.permute.xlu0 %2083
  %2085 = vrot.lane.b32.xlu0 %v2072, 48
  %v2086 = vpop.permute.xlu0 %2085
  %2087 = vrot.lane.b32.xlu0 %v2073, 48
  %v2088 = vpop.permute.xlu0 %2087
  %2089 = vrot.lane.b32.xlu0 %v2074, 48
  %v2090 = vpop.permute.xlu0 %2089
  %v2091 = vunpack.c.l.b16 %v1456
  %v2092 = vunpack.c.l.b16 %v1470
  %v2093 = vunpack.c.l.b16 %v1484
  %v2094 = vunpack.c.l.b16 %v1498
  %v2095 = vunpack.c.l.b16 %v1512
  %v2096 = vunpack.c.l.b16 %v1526
  %v2097 = vunpack.c.l.b16 %v1540
  %v2098 = vunpack.c.l.b16 %v1554
  %v2099 = vunpack.c.l.b16 %v1568
  %v2100 = vunpack.c.l.b16 %v1582
  %v2101 = vunpack.c.l.b16 %v1596
  %v2102 = vunpack.c.l.b16 %v1610
  %v2103 = vunpack.c.l.b16 %v1624
  %v2104 = vunpack.c.l.b16 %v1638
  %v2105 = vunpack.c.l.b16 %v1652
  %v2106 = vunpack.c.l.b16 %v1666
  %v2107 = vpack.c.b16 %v2092, %v2091
  %v2108 = vpack.c.b16 %v2094, %v2093
  %v2109 = vpack.c.b16 %v2096, %v2095
  %v2110 = vpack.c.b16 %v2098, %v2097
  %v2111 = vpack.c.b16 %v2100, %v2099
  %v2112 = vpack.c.b16 %v2102, %v2101
  %v2113 = vpack.c.b16 %v2104, %v2103
  %v2114 = vpack.c.b16 %v2106, %v2105
  %2115 = vrot.lane.b32.xlu0 %v2107, 56
  %v2116 = vpop.permute.xlu0 %2115
  %2117 = vrot.lane.b32.xlu0 %v2108, 56
  %v2118 = vpop.permute.xlu0 %2117
  %2119 = vrot.lane.b32.xlu0 %v2109, 56
  %v2120 = vpop.permute.xlu0 %2119
  %2121 = vrot.lane.b32.xlu0 %v2110, 56
  %v2122 = vpop.permute.xlu0 %2121
  %2123 = vrot.lane.b32.xlu0 %v2111, 56
  %v2124 = vpop.permute.xlu0 %2123
  %2125 = vrot.lane.b32.xlu0 %v2112, 56
  %v2126 = vpop.permute.xlu0 %2125
  %2127 = vrot.lane.b32.xlu0 %v2113, 56
  %v2128 = vpop.permute.xlu0 %2127
  %2129 = vrot.lane.b32.xlu0 %v2114, 56
  %v2130 = vpop.permute.xlu0 %2129
  %v2131 = vunpack.c.l.b16 %v1718
  %v2132 = vunpack.c.l.b16 %v1722
  %v2133 = vunpack.c.l.b16 %v1726
  %v2134 = vunpack.c.l.b16 %v1730
  %v2135 = vunpack.c.l.b16 %v1734
  %v2136 = vunpack.c.l.b16 %v1738
  %v2137 = vunpack.c.l.b16 %v1742
  %v2138 = vunpack.c.l.b16 %v1746
  %v2139 = vunpack.c.l.b16 %v1750
  %v2140 = vunpack.c.l.b16 %v1754
  %v2141 = vunpack.c.l.b16 %v1758
  %v2142 = vunpack.c.l.b16 %v1762
  %v2143 = vunpack.c.l.b16 %v1766
  %v2144 = vunpack.c.l.b16 %v1770
  %v2145 = vunpack.c.l.b16 %v1774
  %v2146 = vunpack.c.l.b16 %v1778
  %v2147 = vpack.c.b16 %v2132, %v2131
  %v2148 = vpack.c.b16 %v2134, %v2133
  %v2149 = vpack.c.b16 %v2136, %v2135
  %v2150 = vpack.c.b16 %v2138, %v2137
  %v2151 = vpack.c.b16 %v2140, %v2139
  %v2152 = vpack.c.b16 %v2142, %v2141
  %v2153 = vpack.c.b16 %v2144, %v2143
  %v2154 = vpack.c.b16 %v2146, %v2145
  %2155 = vrot.lane.b32.xlu0 %v2147, 64
  %v2156 = vpop.permute.xlu0 %2155
  %2157 = vrot.lane.b32.xlu0 %v2148, 64
  %v2158 = vpop.permute.xlu0 %2157
  %2159 = vrot.lane.b32.xlu0 %v2149, 64
  %v2160 = vpop.permute.xlu0 %2159
  %2161 = vrot.lane.b32.xlu0 %v2150, 64
  %v2162 = vpop.permute.xlu0 %2161
  %2163 = vrot.lane.b32.xlu0 %v2151, 64
  %v2164 = vpop.permute.xlu0 %2163
  %2165 = vrot.lane.b32.xlu0 %v2152, 64
  %v2166 = vpop.permute.xlu0 %2165
  %2167 = vrot.lane.b32.xlu0 %v2153, 64
  %v2168 = vpop.permute.xlu0 %2167
  %2169 = vrot.lane.b32.xlu0 %v2154, 64
  %v2170 = vpop.permute.xlu0 %2169
  %vm2171 = vcmask 64512
  %v2174 = vsel %vm2171, %v1811, %v1844
  %v2177 = vsel %vm2171, %v1812, %v1846
  %v2180 = vsel %vm2171, %v1813, %v1848
  %v2183 = vsel %vm2171, %v1814, %v1850
  %v2186 = vsel %vm2171, %v1815, %v1852
  %v2189 = vsel %vm2171, %v1816, %v1854
  %v2192 = vsel %vm2171, %v1817, %v1856
  %v2195 = vsel %vm2171, %v1818, %v1858
  %vm2196 = vcmask 130048
  %v2198 = vsel %vm2196, %v2174, %v1884
  %v2200 = vsel %vm2196, %v2177, %v1886
  %v2202 = vsel %vm2196, %v2180, %v1888
  %v2204 = vsel %vm2196, %v2183, %v1890
  %v2206 = vsel %vm2196, %v2186, %v1892
  %v2208 = vsel %vm2196, %v2189, %v1894
  %v2210 = vsel %vm2196, %v2192, %v1896
  %v2212 = vsel %vm2196, %v2195, %v1898
  %vm2213 = vcmask 195584
  %v2215 = vsel %vm2213, %v2198, %v1940
  %v2217 = vsel %vm2213, %v2200, %v1942
  %v2219 = vsel %vm2213, %v2202, %v1944
  %v2221 = vsel %vm2213, %v2204, %v1946
  %v2223 = vsel %vm2213, %v2206, %v1948
  %v2225 = vsel %vm2213, %v2208, %v1950
  %v2227 = vsel %vm2213, %v2210, %v1952
  %v2229 = vsel %vm2213, %v2212, %v1954
  %vm2230 = vcmask 261120
  %v2232 = vsel %vm2230, %v2215, %v1980
  %v2234 = vsel %vm2230, %v2217, %v1982
  %v2236 = vsel %vm2230, %v2219, %v1984
  %v2238 = vsel %vm2230, %v2221, %v1986
  %v2240 = vsel %vm2230, %v2223, %v1988
  %v2242 = vsel %vm2230, %v2225, %v1990
  %v2244 = vsel %vm2230, %v2227, %v1992
  %v2246 = vsel %vm2230, %v2229, %v1994
  %vm2247 = vcmask 326656
  %v2249 = vsel %vm2247, %v2232, %v2020
  %v2251 = vsel %vm2247, %v2234, %v2022
  %v2253 = vsel %vm2247, %v2236, %v2024
  %v2255 = vsel %vm2247, %v2238, %v2026
  %v2257 = vsel %vm2247, %v2240, %v2028
  %v2259 = vsel %vm2247, %v2242, %v2030
  %v2261 = vsel %vm2247, %v2244, %v2032
  %v2263 = vsel %vm2247, %v2246, %v2034
  %vm2264 = vcmask 392192
  %v2266 = vsel %vm2264, %v2249, %v2076
  %v2268 = vsel %vm2264, %v2251, %v2078
  %v2270 = vsel %vm2264, %v2253, %v2080
  %v2272 = vsel %vm2264, %v2255, %v2082
  %v2274 = vsel %vm2264, %v2257, %v2084
  %v2276 = vsel %vm2264, %v2259, %v2086
  %v2278 = vsel %vm2264, %v2261, %v2088
  %v2280 = vsel %vm2264, %v2263, %v2090
  %vm2281 = vcmask 457728
  %v2283 = vsel %vm2281, %v2266, %v2116
  %v2285 = vsel %vm2281, %v2268, %v2118
  %v2287 = vsel %vm2281, %v2270, %v2120
  %v2289 = vsel %vm2281, %v2272, %v2122
  %v2291 = vsel %vm2281, %v2274, %v2124
  %v2293 = vsel %vm2281, %v2276, %v2126
  %v2295 = vsel %vm2281, %v2278, %v2128
  %v2297 = vsel %vm2281, %v2280, %v2130
  %vm2298 = vcmask 523264
  %v2300 = vsel %vm2298, %v2283, %v2156
  %v2302 = vsel %vm2298, %v2285, %v2158
  %v2304 = vsel %vm2298, %v2287, %v2160
  %v2306 = vsel %vm2298, %v2289, %v2162
  %v2308 = vsel %vm2298, %v2291, %v2164
  %v2310 = vsel %vm2298, %v2293, %v2166
  %v2312 = vsel %vm2298, %v2295, %v2168
  %v2314 = vsel %vm2298, %v2297, %v2170
  %v2315 = vld [vmem:[%s3] sm:$0xf]
  %v2316 = vld [vmem:[%s3 + $0x4] sm:$0xf]
  %v2317 = vld [vmem:[%s3 + $0x8] sm:$0xf]
  %v2318 = vld [vmem:[%s3 + $0xc] sm:$0xf]
  %v2319 = vld [vmem:[%s3 + $0x10] sm:$0xf]
  %v2320 = vld [vmem:[%s3 + $0x14] sm:$0xf]
  %v2321 = vld [vmem:[%s3 + $0x18] sm:$0xf]
  %v2322 = vld [vmem:[%s3 + $0x1c] sm:$0xf]
  %v2323 = vld [vmem:[%s3 + $0x20] sm:$0xf]
  %v2324 = vld [vmem:[%s4] sm:$0x1]
  %v2326 = vperm.slane %v2324, 0
  %v2337 = vunpack.c.l.b16 %v2315
  %v2338 = vunpack.c.l.b16 %v2316
  %v2339 = vunpack.c.l.b16 %v2317
  %v2340 = vunpack.c.l.b16 %v2318
  %v2341 = vunpack.c.l.b16 %v2319
  %v2342 = vunpack.c.l.b16 %v2320
  %v2343 = vunpack.c.l.b16 %v2321
  %v2344 = vunpack.c.l.b16 %v2322
  %v2345 = vunpack.c.l.b16 %v2323
  %v2346 = vpack.c.b16 %v2338, %v2337
  %v2347 = vpack.c.b16 %v2340, %v2339
  %v2348 = vpack.c.b16 %v2342, %v2341
  %v2349 = vpack.c.b16 %v2344, %v2343
  %v2350 = vpack.c.b16 %v2345, %v2345
  %vm2355 = vcmask 588800
  %v2356 = vsel %vm2355, %v2300, 0
  %v2358 = vsel %vm2355, %v2302, 0
  %v2360 = vsel %vm2355, %v2304, 0
  %v2362 = vsel %vm2355, %v2306, 0
  %v2364 = vsel %vm2355, %v2308, 0
  %v2366 = vsel %vm2355, %v2310, 0
  %v2368 = vsel %vm2355, %v2312, 0
  %v2370 = vsel %vm2355, %v2314, 0
  %vm2372 = vcmask 1043456
  %v2374 = vsel %vm2372, %v2350, 0
  %2376 = vmatpush.bf16.msra.mxu0 0
  %2377 = vmatpush.bf16.msra.mxu0 0
  %2378 = vmatpush.bf16.msra.mxu0 0
  %2379 = vmatpush.bf16.msra.mxu0 %v2374
  %2380 = vmatpush.bf16.msra.mxu0 %v2349
  %2381 = vmatpush.bf16.msra.mxu0 %v2348
  %2382 = vmatpush.bf16.msra.mxu0 %v2347
  %2383 = vmatpush.bf16.msra.mxu0 %v2346
  %2384 = vmatmul.bf16.gmra.mxu0 %v2356
  %v2385 = vpop.f32.mrf.mxu0
  %v2386 = vadd.f32 %v2326, %v2385
  %v2387 = vpop.f32.mrf.mxu0
  %v2388 = vadd.f32 %v2326, %v2387
  %2389 = vmatmul.bf16.gmra.mxu0 %v2358
  %v2390 = vpop.f32.mrf.mxu0
  %v2391 = vadd.f32 %v2326, %v2390
  %v2392 = vpop.f32.mrf.mxu0
  %v2393 = vadd.f32 %v2326, %v2392
  %2394 = vmatmul.bf16.gmra.mxu0 %v2360
  %v2395 = vpop.f32.mrf.mxu0
  %v2396 = vadd.f32 %v2326, %v2395
  %v2397 = vpop.f32.mrf.mxu0
  %v2398 = vadd.f32 %v2326, %v2397
  %2399 = vmatmul.bf16.gmra.mxu0 %v2362
  %v2400 = vpop.f32.mrf.mxu0
  %v2401 = vadd.f32 %v2326, %v2400
  %v2402 = vpop.f32.mrf.mxu0
  %v2403 = vadd.f32 %v2326, %v2402
  %2404 = vmatmul.bf16.gmra.mxu0 %v2364
  %v2405 = vpop.f32.mrf.mxu0
  %v2406 = vadd.f32 %v2326, %v2405
  %v2407 = vpop.f32.mrf.mxu0
  %v2408 = vadd.f32 %v2326, %v2407
  %2409 = vmatmul.bf16.gmra.mxu0 %v2366
  %v2410 = vpop.f32.mrf.mxu0
  %v2411 = vadd.f32 %v2326, %v2410
  %v2412 = vpop.f32.mrf.mxu0
  %v2413 = vadd.f32 %v2326, %v2412
  %2414 = vmatmul.bf16.gmra.mxu0 %v2368
  %v2415 = vpop.f32.mrf.mxu0
  %v2416 = vadd.f32 %v2326, %v2415
  %v2417 = vpop.f32.mrf.mxu0
  %v2418 = vadd.f32 %v2326, %v2417
  %2419 = vmatmul.bf16.gmra.mxu0 %v2370
  %v2420 = vpop.f32.mrf.mxu0
  %v2421 = vadd.f32 %v2326, %v2420
  %v2422 = vpop.f32.mrf.mxu0
  %v2423 = vadd.f32 %v2326, %v2422
  %2424 = vdwg.mxu0
  %v2425 = vsel %vm2171, %v2386, 0.0
  %v2426 = vsel %vm2171, %v2388, 0.0
  %v2427 = vadd.f32 %v2425, %v2426
  %v2428 = vsel %vm2171, %v2391, 0.0
  %v2429 = vadd.f32 %v2427, %v2428
  %v2430 = vsel %vm2171, %v2393, 0.0
  %v2431 = vadd.f32 %v2429, %v2430
  %v2432 = vsel %vm2171, %v2396, 0.0
  %v2433 = vadd.f32 %v2431, %v2432
  %v2434 = vsel %vm2171, %v2398, 0.0
  %v2435 = vadd.f32 %v2433, %v2434
  %v2436 = vsel %vm2171, %v2401, 0.0
  %v2437 = vadd.f32 %v2435, %v2436
  %v2438 = vsel %vm2171, %v2403, 0.0
  %v2439 = vadd.f32 %v2437, %v2438
  %v2440 = vsel %vm2171, %v2406, 0.0
  %v2441 = vadd.f32 %v2439, %v2440
  %v2442 = vsel %vm2171, %v2408, 0.0
  %v2443 = vadd.f32 %v2441, %v2442
  %v2444 = vsel %vm2171, %v2411, 0.0
  %v2445 = vadd.f32 %v2443, %v2444
  %v2446 = vsel %vm2171, %v2413, 0.0
  %v2447 = vadd.f32 %v2445, %v2446
  %v2448 = vsel %vm2171, %v2416, 0.0
  %v2449 = vadd.f32 %v2447, %v2448
  %v2450 = vsel %vm2171, %v2418, 0.0
  %v2451 = vadd.f32 %v2449, %v2450
  %v2452 = vsel %vm2171, %v2421, 0.0
  %v2453 = vadd.f32 %v2451, %v2452
  %v2454 = vsel %vm2171, %v2423, 0.0
  %v2455 = vadd.f32 %v2453, %v2454
  %v2456 = vrot.slane %v2455, 4
  %v2457 = vadd.f32 %v2455, %v2456
  %v2458 = vrot.slane %v2457, 2
  %v2459 = vadd.f32 %v2457, %v2458
  %v2460 = vrot.slane %v2459, 1
  %v2461 = vadd.f32 %v2459, %v2460
  %v2462 = vrcp.pop 128.0
  %v2463 = vmul.f32 128.0, %v2462
  %v2464 = vsub.f32 1.0, %v2463
  %v2465 = vmul.f32 %v2462, %v2464
  %v2466 = vadd.f32 %v2462, %v2465
  %vm2467 = vweird.f32 %v2462
  %v2468 = vsel %vm2467, %v2462, %v2466
  %v2469 = vmul.f32 %v2461, %v2468
  %v2470 = vsub.f32 %v2386, %v2469
  %v2471 = vsub.f32 %v2388, %v2469
  %v2472 = vsub.f32 %v2391, %v2469
  %v2473 = vsub.f32 %v2393, %v2469
  %v2474 = vsub.f32 %v2396, %v2469
  %v2475 = vsub.f32 %v2398, %v2469
  %v2476 = vsub.f32 %v2401, %v2469
  %v2477 = vsub.f32 %v2403, %v2469
  %v2478 = vsub.f32 %v2406, %v2469
  %v2479 = vsub.f32 %v2408, %v2469
  %v2480 = vsub.f32 %v2411, %v2469
  %v2481 = vsub.f32 %v2413, %v2469
  %v2482 = vsub.f32 %v2416, %v2469
  %v2483 = vsub.f32 %v2418, %v2469
  %v2484 = vsub.f32 %v2421, %v2469
  %v2485 = vsub.f32 %v2423, %v2469
  %v2486 = vmul.f32 %v2470, %v2470
  %v2487 = vmul.f32 %v2471, %v2471
  %v2488 = vmul.f32 %v2472, %v2472
  %v2489 = vmul.f32 %v2473, %v2473
  %v2490 = vmul.f32 %v2474, %v2474
  %v2491 = vmul.f32 %v2475, %v2475
  %v2492 = vmul.f32 %v2476, %v2476
  %v2493 = vmul.f32 %v2477, %v2477
  %v2494 = vmul.f32 %v2478, %v2478
  %v2495 = vmul.f32 %v2479, %v2479
  %v2496 = vmul.f32 %v2480, %v2480
  %v2497 = vmul.f32 %v2481, %v2481
  %v2498 = vmul.f32 %v2482, %v2482
  %v2499 = vmul.f32 %v2483, %v2483
  %v2500 = vmul.f32 %v2484, %v2484
  %v2501 = vmul.f32 %v2485, %v2485
  %v2502 = vsel %vm2171, %v2486, 0.0
  %v2503 = vsel %vm2171, %v2487, 0.0
  %v2504 = vadd.f32 %v2502, %v2503
  %v2505 = vsel %vm2171, %v2488, 0.0
  %v2506 = vadd.f32 %v2504, %v2505
  %v2507 = vsel %vm2171, %v2489, 0.0
  %v2508 = vadd.f32 %v2506, %v2507
  %v2509 = vsel %vm2171, %v2490, 0.0
  %v2510 = vadd.f32 %v2508, %v2509
  %v2511 = vsel %vm2171, %v2491, 0.0
  %v2512 = vadd.f32 %v2510, %v2511
  %v2513 = vsel %vm2171, %v2492, 0.0
  %v2514 = vadd.f32 %v2512, %v2513
  %v2515 = vsel %vm2171, %v2493, 0.0
  %v2516 = vadd.f32 %v2514, %v2515
  %v2517 = vsel %vm2171, %v2494, 0.0
  %v2518 = vadd.f32 %v2516, %v2517
  %v2519 = vsel %vm2171, %v2495, 0.0
  %v2520 = vadd.f32 %v2518, %v2519
  %v2521 = vsel %vm2171, %v2496, 0.0
  %v2522 = vadd.f32 %v2520, %v2521
  %v2523 = vsel %vm2171, %v2497, 0.0
  %v2524 = vadd.f32 %v2522, %v2523
  %v2525 = vsel %vm2171, %v2498, 0.0
  %v2526 = vadd.f32 %v2524, %v2525
  %v2527 = vsel %vm2171, %v2499, 0.0
  %v2528 = vadd.f32 %v2526, %v2527
  %v2529 = vsel %vm2171, %v2500, 0.0
  %v2530 = vadd.f32 %v2528, %v2529
  %v2531 = vsel %vm2171, %v2501, 0.0
  %v2532 = vadd.f32 %v2530, %v2531
  %v2533 = vrot.slane %v2532, 4
  %v2534 = vadd.f32 %v2532, %v2533
  %v2535 = vrot.slane %v2534, 2
  %v2536 = vadd.f32 %v2534, %v2535
  %v2537 = vrot.slane %v2536, 1
  %v2538 = vadd.f32 %v2536, %v2537
  %v2539 = vmul.f32 %v2538, %v2468
  %v2540 = vld [vmem:[%s5] sm:$0x1]
  %v2541 = vadd.f32 %v2539, 1e-05
  %v2542 = vrsqrt.pop %v2541
  %v2543 = vmul.f32 %v2542, %v2541
  %v2544 = vmul.f32 %v2543, %v2542
  %v2545 = vmul.f32 0.5, %v2544
  %v2546 = vsub.f32 1.5, %v2545
  %v2547 = vmul.f32 %v2542, %v2546
  %vm2548 = vweird.f32 %v2541
  %vm2549 = vweird.f32 %v2542
  %vm2550 = vmor %vm2548, %vm2549
  %v2551 = vsel %vm2550, %v2542, %v2547
  %v2552 = vmul.f32 %v2540, %v2551
  %v2554 = vperm.slane %v2552, 0
  %v2556 = vmul.f32 %v2470, %v2554
  %v2557 = vmul.f32 %v2471, %v2554
  %v2558 = vmul.f32 %v2472, %v2554
  %v2559 = vmul.f32 %v2473, %v2554
  %v2560 = vmul.f32 %v2474, %v2554
  %v2561 = vmul.f32 %v2475, %v2554
  %v2562 = vmul.f32 %v2476, %v2554
  %v2563 = vmul.f32 %v2477, %v2554
  %v2564 = vmul.f32 %v2478, %v2554
  %v2565 = vmul.f32 %v2479, %v2554
  %v2566 = vmul.f32 %v2480, %v2554
  %v2567 = vmul.f32 %v2481, %v2554
  %v2568 = vmul.f32 %v2482, %v2554
  %v2569 = vmul.f32 %v2483, %v2554
  %v2570 = vmul.f32 %v2484, %v2554
  %v2571 = vmul.f32 %v2485, %v2554
  %v2572 = vld [vmem:[%s6] sm:$0x1]
  %v2574 = vperm.slane %v2572, 0
  %v2576 = vadd.f32 %v2556, %v2574
  %v2577 = vadd.f32 %v2557, %v2574
  %v2578 = vadd.f32 %v2558, %v2574
  %v2579 = vadd.f32 %v2559, %v2574
  %v2580 = vadd.f32 %v2560, %v2574
  %v2581 = vadd.f32 %v2561, %v2574
  %v2582 = vadd.f32 %v2562, %v2574
  %v2583 = vadd.f32 %v2563, %v2574
  %v2584 = vadd.f32 %v2564, %v2574
  %v2585 = vadd.f32 %v2565, %v2574
  %v2586 = vadd.f32 %v2566, %v2574
  %v2587 = vadd.f32 %v2567, %v2574
  %v2588 = vadd.f32 %v2568, %v2574
  %v2589 = vadd.f32 %v2569, %v2574
  %v2590 = vadd.f32 %v2570, %v2574
  %v2591 = vadd.f32 %v2571, %v2574
  %vm2592 = vcmp.gt.f32.partialorder %v2576, 0.0
  %vm2593 = vcmp.gt.f32.partialorder %v2577, 0.0
  %vm2594 = vcmp.gt.f32.partialorder %v2578, 0.0
  %vm2595 = vcmp.gt.f32.partialorder %v2579, 0.0
  %vm2596 = vcmp.gt.f32.partialorder %v2580, 0.0
  %vm2597 = vcmp.gt.f32.partialorder %v2581, 0.0
  %vm2598 = vcmp.gt.f32.partialorder %v2582, 0.0
  %vm2599 = vcmp.gt.f32.partialorder %v2583, 0.0
  %vm2600 = vcmp.gt.f32.partialorder %v2584, 0.0
  %vm2601 = vcmp.gt.f32.partialorder %v2585, 0.0
  %vm2602 = vcmp.gt.f32.partialorder %v2586, 0.0
  %vm2603 = vcmp.gt.f32.partialorder %v2587, 0.0
  %vm2604 = vcmp.gt.f32.partialorder %v2588, 0.0
  %vm2605 = vcmp.gt.f32.partialorder %v2589, 0.0
  %vm2606 = vcmp.gt.f32.partialorder %v2590, 0.0
  %vm2607 = vcmp.gt.f32.partialorder %v2591, 0.0
  %v2608 = vmin.f32 %v2576, 0.0
  %v2609 = vmin.f32 %v2577, 0.0
  %v2610 = vmin.f32 %v2578, 0.0
  %v2611 = vmin.f32 %v2579, 0.0
  %v2612 = vmin.f32 %v2580, 0.0
  %v2613 = vmin.f32 %v2581, 0.0
  %v2614 = vmin.f32 %v2582, 0.0
  %v2615 = vmin.f32 %v2583, 0.0
  %v2616 = vmin.f32 %v2584, 0.0
  %v2617 = vmin.f32 %v2585, 0.0
  %v2618 = vmin.f32 %v2586, 0.0
  %v2619 = vmin.f32 %v2587, 0.0
  %v2620 = vmin.f32 %v2588, 0.0
  %v2621 = vmin.f32 %v2589, 0.0
  %v2622 = vmin.f32 %v2590, 0.0
  %v2623 = vmin.f32 %v2591, 0.0
  %v2624 = vmul.f32 %v2608, 1.442695
  %v2625 = vpow.pop %v2624
  %v2626 = vmul.f32 %v2609, 1.442695
  %v2627 = vpow.pop %v2626
  %v2628 = vmul.f32 %v2610, 1.442695
  %v2629 = vpow.pop %v2628
  %v2630 = vmul.f32 %v2611, 1.442695
  %v2631 = vpow.pop %v2630
  %v2632 = vmul.f32 %v2612, 1.442695
  %v2633 = vpow.pop %v2632
  %v2634 = vmul.f32 %v2613, 1.442695
  %v2635 = vpow.pop %v2634
  %v2636 = vmul.f32 %v2614, 1.442695
  %v2637 = vpow.pop %v2636
  %v2638 = vmul.f32 %v2615, 1.442695
  %v2639 = vpow.pop %v2638
  %v2640 = vmul.f32 %v2616, 1.442695
  %v2641 = vpow.pop %v2640
  %v2642 = vmul.f32 %v2617, 1.442695
  %v2643 = vpow.pop %v2642
  %v2644 = vmul.f32 %v2618, 1.442695
  %v2645 = vpow.pop %v2644
  %v2646 = vmul.f32 %v2619, 1.442695
  %v2647 = vpow.pop %v2646
  %v2648 = vmul.f32 %v2620, 1.442695
  %v2649 = vpow.pop %v2648
  %v2650 = vmul.f32 %v2621, 1.442695
  %v2651 = vpow.pop %v2650
  %v2652 = vmul.f32 %v2622, 1.442695
  %v2653 = vpow.pop %v2652
  %v2654 = vmul.f32 %v2623, 1.442695
  %v2655 = vpow.pop %v2654
  %v2656 = vsub.f32 %v2625, 1.0
  %v2657 = vsub.f32 %v2627, 1.0
  %v2658 = vsub.f32 %v2629, 1.0
  %v2659 = vsub.f32 %v2631, 1.0
  %v2660 = vsub.f32 %v2633, 1.0
  %v2661 = vsub.f32 %v2635, 1.0
  %v2662 = vsub.f32 %v2637, 1.0
  %v2663 = vsub.f32 %v2639, 1.0
  %v2664 = vsub.f32 %v2641, 1.0
  %v2665 = vsub.f32 %v2643, 1.0
  %v2666 = vsub.f32 %v2645, 1.0
  %v2667 = vsub.f32 %v2647, 1.0
  %v2668 = vsub.f32 %v2649, 1.0
  %v2669 = vsub.f32 %v2651, 1.0
  %v2670 = vsub.f32 %v2653, 1.0
  %v2671 = vsub.f32 %v2655, 1.0
  %v2672 = vsel %vm2592, %v2576, %v2656
  %v2673 = vsel %vm2593, %v2577, %v2657
  %v2674 = vsel %vm2594, %v2578, %v2658
  %v2675 = vsel %vm2595, %v2579, %v2659
  %v2676 = vsel %vm2596, %v2580, %v2660
  %v2677 = vsel %vm2597, %v2581, %v2661
  %v2678 = vsel %vm2598, %v2582, %v2662
  %v2679 = vsel %vm2599, %v2583, %v2663
  %v2680 = vsel %vm2600, %v2584, %v2664
  %v2681 = vsel %vm2601, %v2585, %v2665
  %v2682 = vsel %vm2602, %v2586, %v2666
  %v2683 = vsel %vm2603, %v2587, %v2667
  %v2684 = vsel %vm2604, %v2588, %v2668
  %v2685 = vsel %vm2605, %v2589, %v2669
  %v2686 = vsel %vm2606, %v2590, %v2670
  %v2687 = vsel %vm2607, %v2591, %v2671
  %v2688 = vpack.c.bf16 %v2672, %v2672
  %v2689 = vpack.c.bf16 %v2673, %v2673
  %v2690 = vpack.c.bf16 %v2674, %v2674
  %v2691 = vpack.c.bf16 %v2675, %v2675
  %v2692 = vpack.c.bf16 %v2676, %v2676
  %v2693 = vpack.c.bf16 %v2677, %v2677
  %v2694 = vpack.c.bf16 %v2678, %v2678
  %v2695 = vpack.c.bf16 %v2679, %v2679
  %v2696 = vpack.c.bf16 %v2680, %v2680
  %v2697 = vpack.c.bf16 %v2681, %v2681
  %v2698 = vpack.c.bf16 %v2682, %v2682
  %v2699 = vpack.c.bf16 %v2683, %v2683
  %v2700 = vpack.c.bf16 %v2684, %v2684
  %v2701 = vpack.c.bf16 %v2685, %v2685
  %v2702 = vpack.c.bf16 %v2686, %v2686
  %v2703 = vpack.c.bf16 %v2687, %v2687
  %v2705 = vshrl.u32 %v2688, 16
  %v2707 = vrot.slane %v2705, 7
  %v2708 = vshll.u32 %v2688, 16
  %v2710 = vor.u32 %v2707, %v2708
  %v2711 = vrot.slane %v2707, 4
  %v2713 = vshrl.u32 %v2689, 16
  %v2715 = vrot.slane %v2713, 7
  %v2716 = vshll.u32 %v2689, 16
  %v2718 = vor.u32 %v2715, %v2716
  %v2719 = vrot.slane %v2715, 4
  %v2721 = vshrl.u32 %v2690, 16
  %v2723 = vrot.slane %v2721, 7
  %v2724 = vshll.u32 %v2690, 16
  %v2726 = vor.u32 %v2723, %v2724
  %v2727 = vrot.slane %v2723, 4
  %v2729 = vshrl.u32 %v2691, 16
  %v2731 = vrot.slane %v2729, 7
  %v2732 = vshll.u32 %v2691, 16
  %v2734 = vor.u32 %v2731, %v2732
  %v2735 = vrot.slane %v2731, 4
  %v2737 = vshrl.u32 %v2692, 16
  %v2739 = vrot.slane %v2737, 7
  %v2740 = vshll.u32 %v2692, 16
  %v2742 = vor.u32 %v2739, %v2740
  %v2743 = vrot.slane %v2739, 4
  %v2745 = vshrl.u32 %v2693, 16
  %v2747 = vrot.slane %v2745, 7
  %v2748 = vshll.u32 %v2693, 16
  %v2750 = vor.u32 %v2747, %v2748
  %v2751 = vrot.slane %v2747, 4
  %v2753 = vshrl.u32 %v2694, 16
  %v2755 = vrot.slane %v2753, 7
  %v2756 = vshll.u32 %v2694, 16
  %v2758 = vor.u32 %v2755, %v2756
  %v2759 = vrot.slane %v2755, 4
  %v2761 = vshrl.u32 %v2695, 16
  %v2763 = vrot.slane %v2761, 7
  %v2764 = vshll.u32 %v2695, 16
  %v2766 = vor.u32 %v2763, %v2764
  %v2767 = vrot.slane %v2763, 4
  %v2769 = vshrl.u32 %v2696, 16
  %v2771 = vrot.slane %v2769, 7
  %v2772 = vshll.u32 %v2696, 16
  %v2774 = vor.u32 %v2771, %v2772
  %v2775 = vrot.slane %v2771, 4
  %v2777 = vshrl.u32 %v2697, 16
  %v2779 = vrot.slane %v2777, 7
  %v2780 = vshll.u32 %v2697, 16
  %v2782 = vor.u32 %v2779, %v2780
  %v2783 = vrot.slane %v2779, 4
  %v2785 = vshrl.u32 %v2698, 16
  %v2787 = vrot.slane %v2785, 7
  %v2788 = vshll.u32 %v2698, 16
  %v2790 = vor.u32 %v2787, %v2788
  %v2791 = vrot.slane %v2787, 4
  %v2793 = vshrl.u32 %v2699, 16
  %v2795 = vrot.slane %v2793, 7
  %v2796 = vshll.u32 %v2699, 16
  %v2798 = vor.u32 %v2795, %v2796
  %v2799 = vrot.slane %v2795, 4
  %v2801 = vshrl.u32 %v2700, 16
  %v2803 = vrot.slane %v2801, 7
  %v2804 = vshll.u32 %v2700, 16
  %v2806 = vor.u32 %v2803, %v2804
  %v2807 = vrot.slane %v2803, 4
  %v2809 = vshrl.u32 %v2701, 16
  %v2811 = vrot.slane %v2809, 7
  %v2812 = vshll.u32 %v2701, 16
  %v2814 = vor.u32 %v2811, %v2812
  %v2815 = vrot.slane %v2811, 4
  %v2817 = vshrl.u32 %v2702, 16
  %v2819 = vrot.slane %v2817, 7
  %v2820 = vshll.u32 %v2702, 16
  %v2822 = vor.u32 %v2819, %v2820
  %v2823 = vrot.slane %v2819, 4
  %v2825 = vshrl.u32 %v2703, 16
  %v2827 = vrot.slane %v2825, 7
  %v2828 = vshll.u32 %v2703, 16
  %v2830 = vor.u32 %v2827, %v2828
  %v2831 = vrot.slane %v2827, 4
  %v2864 = vsel %vm568, %v2710, %v1042
  %2865 = vst [vmem:[%s565] sm:$0xf] %v2864
  %v2866 = vld [vmem:[%s565 + $0x4] sm:$0x1]
  %v2867 = vsel %vm574, %v2711, %v2866
  %2868 = vst [vmem:[%s565 + $0x4] sm:$0x1] %v2867
  %v2869 = vld [vmem:[%s565 + $0x8] sm:$0xf]
  %v2870 = vsel %vm568, %v2718, %v2869
  %2871 = vst [vmem:[%s565 + $0x8] sm:$0xf] %v2870
  %v2872 = vld [vmem:[%s565 + $0xc] sm:$0x1]
  %v2873 = vsel %vm574, %v2719, %v2872
  %2874 = vst [vmem:[%s565 + $0xc] sm:$0x1] %v2873
  %v2875 = vld [vmem:[%s565 + $0x10] sm:$0xf]
  %v2876 = vsel %vm568, %v2726, %v2875
  %2877 = vst [vmem:[%s565 + $0x10] sm:$0xf] %v2876
  %v2878 = vld [vmem:[%s565 + $0x14] sm:$0x1]
  %v2879 = vsel %vm574, %v2727, %v2878
  %2880 = vst [vmem:[%s565 + $0x14] sm:$0x1] %v2879
  %v2881 = vld [vmem:[%s565 + $0x18] sm:$0xf]
  %v2882 = vsel %vm568, %v2734, %v2881
  %2883 = vst [vmem:[%s565 + $0x18] sm:$0xf] %v2882
  %v2884 = vld [vmem:[%s565 + $0x1c] sm:$0x1]
  %v2885 = vsel %vm574, %v2735, %v2884
  %2886 = vst [vmem:[%s565 + $0x1c] sm:$0x1] %v2885
  %v2887 = vld [vmem:[%s565 + $0x20] sm:$0xf]
  %v2888 = vsel %vm568, %v2742, %v2887
  %2889 = vst [vmem:[%s565 + $0x20] sm:$0xf] %v2888
  %v2890 = vld [vmem:[%s565 + $0x24] sm:$0x1]
  %v2891 = vsel %vm574, %v2743, %v2890
  %2892 = vst [vmem:[%s565 + $0x24] sm:$0x1] %v2891
  %v2893 = vld [vmem:[%s565 + $0x28] sm:$0xf]
  %v2894 = vsel %vm568, %v2750, %v2893
  %2895 = vst [vmem:[%s565 + $0x28] sm:$0xf] %v2894
  %v2896 = vld [vmem:[%s565 + $0x2c] sm:$0x1]
  %v2897 = vsel %vm574, %v2751, %v2896
  %2898 = vst [vmem:[%s565 + $0x2c] sm:$0x1] %v2897
  %v2899 = vld [vmem:[%s565 + $0x30] sm:$0xf]
  %v2900 = vsel %vm568, %v2758, %v2899
  %2901 = vst [vmem:[%s565 + $0x30] sm:$0xf] %v2900
  %v2902 = vld [vmem:[%s565 + $0x34] sm:$0x1]
  %v2903 = vsel %vm574, %v2759, %v2902
  %2904 = vst [vmem:[%s565 + $0x34] sm:$0x1] %v2903
  %v2905 = vld [vmem:[%s565 + $0x38] sm:$0xf]
  %v2906 = vsel %vm568, %v2766, %v2905
  %2907 = vst [vmem:[%s565 + $0x38] sm:$0xf] %v2906
  %v2908 = vld [vmem:[%s565 + $0x3c] sm:$0x1]
  %v2909 = vsel %vm574, %v2767, %v2908
  %2910 = vst [vmem:[%s565 + $0x3c] sm:$0x1] %v2909
  %v2911 = vld [vmem:[%s565 + $0x50] sm:$0xf]
  %v2912 = vsel %vm568, %v2774, %v2911
  %2913 = vst [vmem:[%s565 + $0x50] sm:$0xf] %v2912
  %v2914 = vld [vmem:[%s565 + $0x54] sm:$0x1]
  %v2915 = vsel %vm574, %v2775, %v2914
  %2916 = vst [vmem:[%s565 + $0x54] sm:$0x1] %v2915
  %v2917 = vld [vmem:[%s565 + $0x58] sm:$0xf]
  %v2918 = vsel %vm568, %v2782, %v2917
  %2919 = vst [vmem:[%s565 + $0x58] sm:$0xf] %v2918
  %v2920 = vld [vmem:[%s565 + $0x5c] sm:$0x1]
  %v2921 = vsel %vm574, %v2783, %v2920
  %2922 = vst [vmem:[%s565 + $0x5c] sm:$0x1] %v2921
  %v2923 = vld [vmem:[%s565 + $0x60] sm:$0xf]
  %v2924 = vsel %vm568, %v2790, %v2923
  %2925 = vst [vmem:[%s565 + $0x60] sm:$0xf] %v2924
  %v2926 = vld [vmem:[%s565 + $0x64] sm:$0x1]
  %v2927 = vsel %vm574, %v2791, %v2926
  %2928 = vst [vmem:[%s565 + $0x64] sm:$0x1] %v2927
  %v2929 = vld [vmem:[%s565 + $0x68] sm:$0xf]
  %v2930 = vsel %vm568, %v2798, %v2929
  %2931 = vst [vmem:[%s565 + $0x68] sm:$0xf] %v2930
  %v2932 = vld [vmem:[%s565 + $0x6c] sm:$0x1]
  %v2933 = vsel %vm574, %v2799, %v2932
  %2934 = vst [vmem:[%s565 + $0x6c] sm:$0x1] %v2933
  %v2935 = vld [vmem:[%s565 + $0x70] sm:$0xf]
  %v2936 = vsel %vm568, %v2806, %v2935
  %2937 = vst [vmem:[%s565 + $0x70] sm:$0xf] %v2936
  %v2938 = vld [vmem:[%s565 + $0x74] sm:$0x1]
  %v2939 = vsel %vm574, %v2807, %v2938
  %2940 = vst [vmem:[%s565 + $0x74] sm:$0x1] %v2939
  %v2941 = vld [vmem:[%s565 + $0x78] sm:$0xf]
  %v2942 = vsel %vm568, %v2814, %v2941
  %2943 = vst [vmem:[%s565 + $0x78] sm:$0xf] %v2942
  %v2944 = vld [vmem:[%s565 + $0x7c] sm:$0x1]
  %v2945 = vsel %vm574, %v2815, %v2944
  %2946 = vst [vmem:[%s565 + $0x7c] sm:$0x1] %v2945
  %v2947 = vld [vmem:[%s565 + $0x80] sm:$0xf]
  %v2948 = vsel %vm568, %v2822, %v2947
  %2949 = vst [vmem:[%s565 + $0x80] sm:$0xf] %v2948
  %v2950 = vld [vmem:[%s565 + $0x84] sm:$0x1]
  %v2951 = vsel %vm574, %v2823, %v2950
  %2952 = vst [vmem:[%s565 + $0x84] sm:$0x1] %v2951
  %v2953 = vld [vmem:[%s565 + $0x88] sm:$0xf]
  %v2954 = vsel %vm568, %v2830, %v2953
  %2955 = vst [vmem:[%s565 + $0x88] sm:$0xf] %v2954
  %v2956 = vld [vmem:[%s565 + $0x8c] sm:$0x1]
  %v2957 = vsel %vm574, %v2831, %v2956
  %2958 = vst [vmem:[%s565 + $0x8c] sm:$0x1] %v2957
  %v2959 = vld [vmem:[#allocation2] sm:$0xf]
  %v2960 = vld [vmem:[#allocation2 + $0x8] sm:$0xf]
  %v2961 = vld [vmem:[#allocation2 + $0x10] sm:$0xf]
  %v2962 = vld [vmem:[#allocation2 + $0x18] sm:$0xf]
  %v2963 = vld [vmem:[#allocation2 + $0x20] sm:$0xf]
  %v2964 = vld [vmem:[#allocation2 + $0x28] sm:$0xf]
  %v2965 = vld [vmem:[#allocation2 + $0x30] sm:$0xf]
  %v2966 = vld [vmem:[#allocation2 + $0x38] sm:$0xf]
  %v2967 = vld [vmem:[#allocation2 + $0x50] sm:$0xf]
  %v2968 = vld [vmem:[#allocation2 + $0x58] sm:$0xf]
  %v2969 = vld [vmem:[#allocation2 + $0x60] sm:$0xf]
  %v2970 = vld [vmem:[#allocation2 + $0x68] sm:$0xf]
  %v2971 = vld [vmem:[#allocation2 + $0x70] sm:$0xf]
  %v2972 = vld [vmem:[#allocation2 + $0x78] sm:$0xf]
  %v2973 = vld [vmem:[#allocation2 + $0x80] sm:$0xf]
  %v2974 = vld [vmem:[#allocation2 + $0x88] sm:$0xf]
  %v2975 = vld [vmem:[#allocation2 + $0x4] sm:$0x1]
  %v2976 = vld [vmem:[#allocation2 + $0xc] sm:$0x1]
  %v2977 = vld [vmem:[#allocation2 + $0x14] sm:$0x1]
  %v2978 = vld [vmem:[#allocation2 + $0x1c] sm:$0x1]
  %v2979 = vld [vmem:[#allocation2 + $0x24] sm:$0x1]
  %v2980 = vld [vmem:[#allocation2 + $0x2c] sm:$0x1]
  %v2981 = vld [vmem:[#allocation2 + $0x34] sm:$0x1]
  %v2982 = vld [vmem:[#allocation2 + $0x3c] sm:$0x1]
  %v2983 = vld [vmem:[#allocation2 + $0x54] sm:$0x1]
  %v2984 = vld [vmem:[#allocation2 + $0x5c] sm:$0x1]
  %v2985 = vld [vmem:[#allocation2 + $0x64] sm:$0x1]
  %v2986 = vld [vmem:[#allocation2 + $0x6c] sm:$0x1]
  %v2987 = vld [vmem:[#allocation2 + $0x74] sm:$0x1]
  %v2988 = vld [vmem:[#allocation2 + $0x7c] sm:$0x1]
  %v2989 = vld [vmem:[#allocation2 + $0x84] sm:$0x1]
  %v2990 = vld [vmem:[#allocation2 + $0x8c] sm:$0x1]
  %v2992 = vshrl.u32 %v2959, 16
  %v2994 = vrot.slane %v2992, 4
  %v2995 = vshll.u32 %v2959, 16
  %v2997 = vrot.slane %v2995, 5
  %v2998 = vor.u32 %v2994, %v2997
  %v2999 = vrot.slane %v2998, 4
  %v3001 = vshll.u32 %v2975, 16
  %v3003 = vrot.slane %v3001, 5
  %v3004 = vsel %vm702, %v2999, %v3003
  %v3006 = vshrl.u32 %v2960, 16
  %v3008 = vrot.slane %v3006, 4
  %v3009 = vshll.u32 %v2960, 16
  %v3011 = vrot.slane %v3009, 5
  %v3012 = vor.u32 %v3008, %v3011
  %v3013 = vrot.slane %v3012, 4
  %v3015 = vshll.u32 %v2976, 16
  %v3017 = vrot.slane %v3015, 5
  %v3018 = vsel %vm702, %v3013, %v3017
  %v3020 = vshrl.u32 %v2961, 16
  %v3022 = vrot.slane %v3020, 4
  %v3023 = vshll.u32 %v2961, 16
  %v3025 = vrot.slane %v3023, 5
  %v3026 = vor.u32 %v3022, %v3025
  %v3027 = vrot.slane %v3026, 4
  %v3029 = vshll.u32 %v2977, 16
  %v3031 = vrot.slane %v3029, 5
  %v3032 = vsel %vm702, %v3027, %v3031
  %v3034 = vshrl.u32 %v2962, 16
  %v3036 = vrot.slane %v3034, 4
  %v3037 = vshll.u32 %v2962, 16
  %v3039 = vrot.slane %v3037, 5
  %v3040 = vor.u32 %v3036, %v3039
  %v3041 = vrot.slane %v3040, 4
  %v3043 = vshll.u32 %v2978, 16
  %v3045 = vrot.slane %v3043, 5
  %v3046 = vsel %vm702, %v3041, %v3045
  %v3048 = vshrl.u32 %v2963, 16
  %v3050 = vrot.slane %v3048, 4
  %v3051 = vshll.u32 %v2963, 16
  %v3053 = vrot.slane %v3051, 5
  %v3054 = vor.u32 %v3050, %v3053
  %v3055 = vrot.slane %v3054, 4
  %v3057 = vshll.u32 %v2979, 16
  %v3059 = vrot.slane %v3057, 5
  %v3060 = vsel %vm702, %v3055, %v3059
  %v3062 = vshrl.u32 %v2964, 16
  %v3064 = vrot.slane %v3062, 4
  %v3065 = vshll.u32 %v2964, 16
  %v3067 = vrot.slane %v3065, 5
  %v3068 = vor.u32 %v3064, %v3067
  %v3069 = vrot.slane %v3068, 4
  %v3071 = vshll.u32 %v2980, 16
  %v3073 = vrot.slane %v3071, 5
  %v3074 = vsel %vm702, %v3069, %v3073
  %v3076 = vshrl.u32 %v2965, 16
  %v3078 = vrot.slane %v3076, 4
  %v3079 = vshll.u32 %v2965, 16
  %v3081 = vrot.slane %v3079, 5
  %v3082 = vor.u32 %v3078, %v3081
  %v3083 = vrot.slane %v3082, 4
  %v3085 = vshll.u32 %v2981, 16
  %v3087 = vrot.slane %v3085, 5
  %v3088 = vsel %vm702, %v3083, %v3087
  %v3090 = vshrl.u32 %v2966, 16
  %v3092 = vrot.slane %v3090, 4
  %v3093 = vshll.u32 %v2966, 16
  %v3095 = vrot.slane %v3093, 5
  %v3096 = vor.u32 %v3092, %v3095
  %v3097 = vrot.slane %v3096, 4
  %v3099 = vshll.u32 %v2982, 16
  %v3101 = vrot.slane %v3099, 5
  %v3102 = vsel %vm702, %v3097, %v3101
  %v3104 = vshrl.u32 %v2967, 16
  %v3106 = vrot.slane %v3104, 4
  %v3107 = vshll.u32 %v2967, 16
  %v3109 = vrot.slane %v3107, 5
  %v3110 = vor.u32 %v3106, %v3109
  %v3111 = vrot.slane %v3110, 4
  %v3113 = vshll.u32 %v2983, 16
  %v3115 = vrot.slane %v3113, 5
  %v3116 = vsel %vm702, %v3111, %v3115
  %v3118 = vshrl.u32 %v2968, 16
  %v3120 = vrot.slane %v3118, 4
  %v3121 = vshll.u32 %v2968, 16
  %v3123 = vrot.slane %v3121, 5
  %v3124 = vor.u32 %v3120, %v3123
  %v3125 = vrot.slane %v3124, 4
  %v3127 = vshll.u32 %v2984, 16
  %v3129 = vrot.slane %v3127, 5
  %v3130 = vsel %vm702, %v3125, %v3129
  %v3132 = vshrl.u32 %v2969, 16
  %v3134 = vrot.slane %v3132, 4
  %v3135 = vshll.u32 %v2969, 16
  %v3137 = vrot.slane %v3135, 5
  %v3138 = vor.u32 %v3134, %v3137
  %v3139 = vrot.slane %v3138, 4
  %v3141 = vshll.u32 %v2985, 16
  %v3143 = vrot.slane %v3141, 5
  %v3144 = vsel %vm702, %v3139, %v3143
  %v3146 = vshrl.u32 %v2970, 16
  %v3148 = vrot.slane %v3146, 4
  %v3149 = vshll.u32 %v2970, 16
  %v3151 = vrot.slane %v3149, 5
  %v3152 = vor.u32 %v3148, %v3151
  %v3153 = vrot.slane %v3152, 4
  %v3155 = vshll.u32 %v2986, 16
  %v3157 = vrot.slane %v3155, 5
  %v3158 = vsel %vm702, %v3153, %v3157
  %v3160 = vshrl.u32 %v2971, 16
  %v3162 = vrot.slane %v3160, 4
  %v3163 = vshll.u32 %v2971, 16
  %v3165 = vrot.slane %v3163, 5
  %v3166 = vor.u32 %v3162, %v3165
  %v3167 = vrot.slane %v3166, 4
  %v3169 = vshll.u32 %v2987, 16
  %v3171 = vrot.slane %v3169, 5
  %v3172 = vsel %vm702, %v3167, %v3171
  %v3174 = vshrl.u32 %v2972, 16
  %v3176 = vrot.slane %v3174, 4
  %v3177 = vshll.u32 %v2972, 16
  %v3179 = vrot.slane %v3177, 5
  %v3180 = vor.u32 %v3176, %v3179
  %v3181 = vrot.slane %v3180, 4
  %v3183 = vshll.u32 %v2988, 16
  %v3185 = vrot.slane %v3183, 5
  %v3186 = vsel %vm702, %v3181, %v3185
  %v3188 = vshrl.u32 %v2973, 16
  %v3190 = vrot.slane %v3188, 4
  %v3191 = vshll.u32 %v2973, 16
  %v3193 = vrot.slane %v3191, 5
  %v3194 = vor.u32 %v3190, %v3193
  %v3195 = vrot.slane %v3194, 4
  %v3197 = vshll.u32 %v2989, 16
  %v3199 = vrot.slane %v3197, 5
  %v3200 = vsel %vm702, %v3195, %v3199
  %v3202 = vshrl.u32 %v2974, 16
  %v3204 = vrot.slane %v3202, 4
  %v3205 = vshll.u32 %v2974, 16
  %v3207 = vrot.slane %v3205, 5
  %v3208 = vor.u32 %v3204, %v3207
  %v3209 = vrot.slane %v3208, 4
  %v3211 = vshll.u32 %v2990, 16
  %v3213 = vrot.slane %v3211, 5
  %v3214 = vsel %vm702, %v3209, %v3213
  %v3215 = vld [vmem:[#allocation2] sm:$0xe]
  %v3216 = vld [vmem:[#allocation2 + $0x8] sm:$0xe]
  %v3217 = vld [vmem:[#allocation2 + $0x10] sm:$0xe]
  %v3218 = vld [vmem:[#allocation2 + $0x18] sm:$0xe]
  %v3219 = vld [vmem:[#allocation2 + $0x20] sm:$0xe]
  %v3220 = vld [vmem:[#allocation2 + $0x28] sm:$0xe]
  %v3221 = vld [vmem:[#allocation2 + $0x30] sm:$0xe]
  %v3222 = vld [vmem:[#allocation2 + $0x38] sm:$0xe]
  %v3223 = vld [vmem:[#allocation2 + $0x50] sm:$0xe]
  %v3224 = vld [vmem:[#allocation2 + $0x58] sm:$0xe]
  %v3225 = vld [vmem:[#allocation2 + $0x60] sm:$0xe]
  %v3226 = vld [vmem:[#allocation2 + $0x68] sm:$0xe]
  %v3227 = vld [vmem:[#allocation2 + $0x70] sm:$0xe]
  %v3228 = vld [vmem:[#allocation2 + $0x78] sm:$0xe]
  %v3229 = vld [vmem:[#allocation2 + $0x80] sm:$0xe]
  %v3230 = vld [vmem:[#allocation2 + $0x88] sm:$0xe]
  %v3263 = vrot.slane %v3215, 5
  %v3264 = vrot.slane %v3263, 4
  %v3265 = vrot.slane %v2975, 5
  %v3266 = vsel %vm977, %v3264, %v3265
  %v3267 = vrot.slane %v3216, 5
  %v3268 = vrot.slane %v3267, 4
  %v3269 = vrot.slane %v2976, 5
  %v3270 = vsel %vm977, %v3268, %v3269
  %v3271 = vrot.slane %v3217, 5
  %v3272 = vrot.slane %v3271, 4
  %v3273 = vrot.slane %v2977, 5
  %v3274 = vsel %vm977, %v3272, %v3273
  %v3275 = vrot.slane %v3218, 5
  %v3276 = vrot.slane %v3275, 4
  %v3277 = vrot.slane %v2978, 5
  %v3278 = vsel %vm977, %v3276, %v3277
  %v3279 = vrot.slane %v3219, 5
  %v3280 = vrot.slane %v3279, 4
  %v3281 = vrot.slane %v2979, 5
  %v3282 = vsel %vm977, %v3280, %v3281
  %v3283 = vrot.slane %v3220, 5
  %v3284 = vrot.slane %v3283, 4
  %v3285 = vrot.slane %v2980, 5
  %v3286 = vsel %vm977, %v3284, %v3285
  %v3287 = vrot.slane %v3221, 5
  %v3288 = vrot.slane %v3287, 4
  %v3289 = vrot.slane %v2981, 5
  %v3290 = vsel %vm977, %v3288, %v3289
  %v3291 = vrot.slane %v3222, 5
  %v3292 = vrot.slane %v3291, 4
  %v3293 = vrot.slane %v2982, 5
  %v3294 = vsel %vm977, %v3292, %v3293
  %v3295 = vrot.slane %v3223, 5
  %v3296 = vrot.slane %v3295, 4
  %v3297 = vrot.slane %v2983, 5
  %v3298 = vsel %vm977, %v3296, %v3297
  %v3299 = vrot.slane %v3224, 5
  %v3300 = vrot.slane %v3299, 4
  %v3301 = vrot.slane %v2984, 5
  %v3302 = vsel %vm977, %v3300, %v3301
  %v3303 = vrot.slane %v3225, 5
  %v3304 = vrot.slane %v3303, 4
  %v3305 = vrot.slane %v2985, 5
  %v3306 = vsel %vm977, %v3304, %v3305
  %v3307 = vrot.slane %v3226, 5
  %v3308 = vrot.slane %v3307, 4
  %v3309 = vrot.slane %v2986, 5
  %v3310 = vsel %vm977, %v3308, %v3309
  %v3311 = vrot.slane %v3227, 5
  %v3312 = vrot.slane %v3311, 4
  %v3313 = vrot.slane %v2987, 5
  %v3314 = vsel %vm977, %v3312, %v3313
  %v3315 = vrot.slane %v3228, 5
  %v3316 = vrot.slane %v3315, 4
  %v3317 = vrot.slane %v2988, 5
  %v3318 = vsel %vm977, %v3316, %v3317
  %v3319 = vrot.slane %v3229, 5
  %v3320 = vrot.slane %v3319, 4
  %v3321 = vrot.slane %v2989, 5
  %v3322 = vsel %vm977, %v3320, %v3321
  %v3323 = vrot.slane %v3230, 5
  %v3324 = vrot.slane %v3323, 4
  %v3325 = vrot.slane %v2990, 5
  %v3326 = vsel %vm977, %v3324, %v3325
  %v3327 = vld [vmem:[%s565] sm:$0xf]
  %v3328 = vld [vmem:[%s565 + $0x8] sm:$0xf]
  %v3329 = vld [vmem:[%s565 + $0x10] sm:$0xf]
  %v3330 = vld [vmem:[%s565 + $0x18] sm:$0xf]
  %v3331 = vld [vmem:[%s565 + $0x20] sm:$0xf]
  %v3332 = vld [vmem:[%s565 + $0x28] sm:$0xf]
  %v3333 = vld [vmem:[%s565 + $0x30] sm:$0xf]
  %v3334 = vld [vmem:[%s565 + $0x38] sm:$0xf]
  %v3335 = vld [vmem:[%s565 + $0x50] sm:$0xf]
  %v3336 = vld [vmem:[%s565 + $0x58] sm:$0xf]
  %v3337 = vld [vmem:[%s565 + $0x60] sm:$0xf]
  %v3338 = vld [vmem:[%s565 + $0x68] sm:$0xf]
  %v3339 = vld [vmem:[%s565 + $0x70] sm:$0xf]
  %v3340 = vld [vmem:[%s565 + $0x78] sm:$0xf]
  %v3341 = vld [vmem:[%s565 + $0x80] sm:$0xf]
  %v3342 = vld [vmem:[%s565 + $0x88] sm:$0xf]
  %v3343 = vld [vmem:[%s565 + $0x4] sm:$0x1]
  %v3344 = vld [vmem:[%s565 + $0xc] sm:$0x1]
  %v3345 = vld [vmem:[%s565 + $0x14] sm:$0x1]
  %v3346 = vld [vmem:[%s565 + $0x1c] sm:$0x1]
  %v3347 = vld [vmem:[%s565 + $0x24] sm:$0x1]
  %v3348 = vld [vmem:[%s565 + $0x2c] sm:$0x1]
  %v3349 = vld [vmem:[%s565 + $0x34] sm:$0x1]
  %v3350 = vld [vmem:[%s565 + $0x3c] sm:$0x1]
  %v3351 = vld [vmem:[%s565 + $0x54] sm:$0x1]
  %v3352 = vld [vmem:[%s565 + $0x5c] sm:$0x1]
  %v3353 = vld [vmem:[%s565 + $0x64] sm:$0x1]
  %v3354 = vld [vmem:[%s565 + $0x6c] sm:$0x1]
  %v3355 = vld [vmem:[%s565 + $0x74] sm:$0x1]
  %v3356 = vld [vmem:[%s565 + $0x7c] sm:$0x1]
  %v3357 = vld [vmem:[%s565 + $0x84] sm:$0x1]
  %v3358 = vld [vmem:[%s565 + $0x8c] sm:$0x1]
  %v3360 = vshrl.u32 %v3327, 16
  %v3362 = vrot.slane %v3360, 4
  %v3363 = vshll.u32 %v3327, 16
  %v3365 = vrot.slane %v3363, 5
  %v3366 = vor.u32 %v3362, %v3365
  %v3367 = vrot.slane %v3366, 4
  %v3369 = vshll.u32 %v3343, 16
  %v3371 = vrot.slane %v3369, 5
  %v3372 = vsel %vm702, %v3367, %v3371
  %v3374 = vshrl.u32 %v3328, 16
  %v3376 = vrot.slane %v3374, 4
  %v3377 = vshll.u32 %v3328, 16
  %v3379 = vrot.slane %v3377, 5
  %v3380 = vor.u32 %v3376, %v3379
  %v3381 = vrot.slane %v3380, 4
  %v3383 = vshll.u32 %v3344, 16
  %v3385 = vrot.slane %v3383, 5
  %v3386 = vsel %vm702, %v3381, %v3385
  %v3388 = vshrl.u32 %v3329, 16
  %v3390 = vrot.slane %v3388, 4
  %v3391 = vshll.u32 %v3329, 16
  %v3393 = vrot.slane %v3391, 5
  %v3394 = vor.u32 %v3390, %v3393
  %v3395 = vrot.slane %v3394, 4
  %v3397 = vshll.u32 %v3345, 16
  %v3399 = vrot.slane %v3397, 5
  %v3400 = vsel %vm702, %v3395, %v3399
  %v3402 = vshrl.u32 %v3330, 16
  %v3404 = vrot.slane %v3402, 4
  %v3405 = vshll.u32 %v3330, 16
  %v3407 = vrot.slane %v3405, 5
  %v3408 = vor.u32 %v3404, %v3407
  %v3409 = vrot.slane %v3408, 4
  %v3411 = vshll.u32 %v3346, 16
  %v3413 = vrot.slane %v3411, 5
  %v3414 = vsel %vm702, %v3409, %v3413
  %v3416 = vshrl.u32 %v3331, 16
  %v3418 = vrot.slane %v3416, 4
  %v3419 = vshll.u32 %v3331, 16
  %v3421 = vrot.slane %v3419, 5
  %v3422 = vor.u32 %v3418, %v3421
  %v3423 = vrot.slane %v3422, 4
  %v3425 = vshll.u32 %v3347, 16
  %v3427 = vrot.slane %v3425, 5
  %v3428 = vsel %vm702, %v3423, %v3427
  %v3430 = vshrl.u32 %v3332, 16
  %v3432 = vrot.slane %v3430, 4
  %v3433 = vshll.u32 %v3332, 16
  %v3435 = vrot.slane %v3433, 5
  %v3436 = vor.u32 %v3432, %v3435
  %v3437 = vrot.slane %v3436, 4
  %v3439 = vshll.u32 %v3348, 16
  %v3441 = vrot.slane %v3439, 5
  %v3442 = vsel %vm702, %v3437, %v3441
  %v3444 = vshrl.u32 %v3333, 16
  %v3446 = vrot.slane %v3444, 4
  %v3447 = vshll.u32 %v3333, 16
  %v3449 = vrot.slane %v3447, 5
  %v3450 = vor.u32 %v3446, %v3449
  %v3451 = vrot.slane %v3450, 4
  %v3453 = vshll.u32 %v3349, 16
  %v3455 = vrot.slane %v3453, 5
  %v3456 = vsel %vm702, %v3451, %v3455
  %v3458 = vshrl.u32 %v3334, 16
  %v3460 = vrot.slane %v3458, 4
  %v3461 = vshll.u32 %v3334, 16
  %v3463 = vrot.slane %v3461, 5
  %v3464 = vor.u32 %v3460, %v3463
  %v3465 = vrot.slane %v3464, 4
  %v3467 = vshll.u32 %v3350, 16
  %v3469 = vrot.slane %v3467, 5
  %v3470 = vsel %vm702, %v3465, %v3469
  %v3472 = vshrl.u32 %v3335, 16
  %v3474 = vrot.slane %v3472, 4
  %v3475 = vshll.u32 %v3335, 16
  %v3477 = vrot.slane %v3475, 5
  %v3478 = vor.u32 %v3474, %v3477
  %v3479 = vrot.slane %v3478, 4
  %v3481 = vshll.u32 %v3351, 16
  %v3483 = vrot.slane %v3481, 5
  %v3484 = vsel %vm702, %v3479, %v3483
  %v3486 = vshrl.u32 %v3336, 16
  %v3488 = vrot.slane %v3486, 4
  %v3489 = vshll.u32 %v3336, 16
  %v3491 = vrot.slane %v3489, 5
  %v3492 = vor.u32 %v3488, %v3491
  %v3493 = vrot.slane %v3492, 4
  %v3495 = vshll.u32 %v3352, 16
  %v3497 = vrot.slane %v3495, 5
  %v3498 = vsel %vm702, %v3493, %v3497
  %v3500 = vshrl.u32 %v3337, 16
  %v3502 = vrot.slane %v3500, 4
  %v3503 = vshll.u32 %v3337, 16
  %v3505 = vrot.slane %v3503, 5
  %v3506 = vor.u32 %v3502, %v3505
  %v3507 = vrot.slane %v3506, 4
  %v3509 = vshll.u32 %v3353, 16
  %v3511 = vrot.slane %v3509, 5
  %v3512 = vsel %vm702, %v3507, %v3511
  %v3514 = vshrl.u32 %v3338, 16
  %v3516 = vrot.slane %v3514, 4
  %v3517 = vshll.u32 %v3338, 16
  %v3519 = vrot.slane %v3517, 5
  %v3520 = vor.u32 %v3516, %v3519
  %v3521 = vrot.slane %v3520, 4
  %v3523 = vshll.u32 %v3354, 16
  %v3525 = vrot.slane %v3523, 5
  %v3526 = vsel %vm702, %v3521, %v3525
  %v3528 = vshrl.u32 %v3339, 16
  %v3530 = vrot.slane %v3528, 4
  %v3531 = vshll.u32 %v3339, 16
  %v3533 = vrot.slane %v3531, 5
  %v3534 = vor.u32 %v3530, %v3533
  %v3535 = vrot.slane %v3534, 4
  %v3537 = vshll.u32 %v3355, 16
  %v3539 = vrot.slane %v3537, 5
  %v3540 = vsel %vm702, %v3535, %v3539
  %v3542 = vshrl.u32 %v3340, 16
  %v3544 = vrot.slane %v3542, 4
  %v3545 = vshll.u32 %v3340, 16
  %v3547 = vrot.slane %v3545, 5
  %v3548 = vor.u32 %v3544, %v3547
  %v3549 = vrot.slane %v3548, 4
  %v3551 = vshll.u32 %v3356, 16
  %v3553 = vrot.slane %v3551, 5
  %v3554 = vsel %vm702, %v3549, %v3553
  %v3556 = vshrl.u32 %v3341, 16
  %v3558 = vrot.slane %v3556, 4
  %v3559 = vshll.u32 %v3341, 16
  %v3561 = vrot.slane %v3559, 5
  %v3562 = vor.u32 %v3558, %v3561
  %v3563 = vrot.slane %v3562, 4
  %v3565 = vshll.u32 %v3357, 16
  %v3567 = vrot.slane %v3565, 5
  %v3568 = vsel %vm702, %v3563, %v3567
  %v3570 = vshrl.u32 %v3342, 16
  %v3572 = vrot.slane %v3570, 4
  %v3573 = vshll.u32 %v3342, 16
  %v3575 = vrot.slane %v3573, 5
  %v3576 = vor.u32 %v3572, %v3575
  %v3577 = vrot.slane %v3576, 4
  %v3579 = vshll.u32 %v3358, 16
  %v3581 = vrot.slane %v3579, 5
  %v3582 = vsel %vm702, %v3577, %v3581
  %v3583 = vld [vmem:[%s565] sm:$0xe]
  %v3584 = vld [vmem:[%s565 + $0x8] sm:$0xe]
  %v3585 = vld [vmem:[%s565 + $0x10] sm:$0xe]
  %v3586 = vld [vmem:[%s565 + $0x18] sm:$0xe]
  %v3587 = vld [vmem:[%s565 + $0x20] sm:$0xe]
  %v3588 = vld [vmem:[%s565 + $0x28] sm:$0xe]
  %v3589 = vld [vmem:[%s565 + $0x30] sm:$0xe]
  %v3590 = vld [vmem:[%s565 + $0x38] sm:$0xe]
  %v3591 = vld [vmem:[%s565 + $0x50] sm:$0xe]
  %v3592 = vld [vmem:[%s565 + $0x58] sm:$0xe]
  %v3593 = vld [vmem:[%s565 + $0x60] sm:$0xe]
  %v3594 = vld [vmem:[%s565 + $0x68] sm:$0xe]
  %v3595 = vld [vmem:[%s565 + $0x70] sm:$0xe]
  %v3596 = vld [vmem:[%s565 + $0x78] sm:$0xe]
  %v3597 = vld [vmem:[%s565 + $0x80] sm:$0xe]
  %v3598 = vld [vmem:[%s565 + $0x88] sm:$0xe]
  %v3631 = vrot.slane %v3583, 5
  %v3632 = vrot.slane %v3631, 4
  %v3633 = vrot.slane %v3343, 5
  %v3634 = vsel %vm977, %v3632, %v3633
  %v3635 = vrot.slane %v3584, 5
  %v3636 = vrot.slane %v3635, 4
  %v3637 = vrot.slane %v3344, 5
  %v3638 = vsel %vm977, %v3636, %v3637
  %v3639 = vrot.slane %v3585, 5
  %v3640 = vrot.slane %v3639, 4
  %v3641 = vrot.slane %v3345, 5
  %v3642 = vsel %vm977, %v3640, %v3641
  %v3643 = vrot.slane %v3586, 5
  %v3644 = vrot.slane %v3643, 4
  %v3645 = vrot.slane %v3346, 5
  %v3646 = vsel %vm977, %v3644, %v3645
  %v3647 = vrot.slane %v3587, 5
  %v3648 = vrot.slane %v3647, 4
  %v3649 = vrot.slane %v3347, 5
  %v3650 = vsel %vm977, %v3648, %v3649
  %v3651 = vrot.slane %v3588, 5
  %v3652 = vrot.slane %v3651, 4
  %v3653 = vrot.slane %v3348, 5
  %v3654 = vsel %vm977, %v3652, %v3653
  %v3655 = vrot.slane %v3589, 5
  %v3656 = vrot.slane %v3655, 4
  %v3657 = vrot.slane %v3349, 5
  %v3658 = vsel %vm977, %v3656, %v3657
  %v3659 = vrot.slane %v3590, 5
  %v3660 = vrot.slane %v3659, 4
  %v3661 = vrot.slane %v3350, 5
  %v3662 = vsel %vm977, %v3660, %v3661
  %v3663 = vrot.slane %v3591, 5
  %v3664 = vrot.slane %v3663, 4
  %v3665 = vrot.slane %v3351, 5
  %v3666 = vsel %vm977, %v3664, %v3665
  %v3667 = vrot.slane %v3592, 5
  %v3668 = vrot.slane %v3667, 4
  %v3669 = vrot.slane %v3352, 5
  %v3670 = vsel %vm977, %v3668, %v3669
  %v3671 = vrot.slane %v3593, 5
  %v3672 = vrot.slane %v3671, 4
  %v3673 = vrot.slane %v3353, 5
  %v3674 = vsel %vm977, %v3672, %v3673
  %v3675 = vrot.slane %v3594, 5
  %v3676 = vrot.slane %v3675, 4
  %v3677 = vrot.slane %v3354, 5
  %v3678 = vsel %vm977, %v3676, %v3677
  %v3679 = vrot.slane %v3595, 5
  %v3680 = vrot.slane %v3679, 4
  %v3681 = vrot.slane %v3355, 5
  %v3682 = vsel %vm977, %v3680, %v3681
  %v3683 = vrot.slane %v3596, 5
  %v3684 = vrot.slane %v3683, 4
  %v3685 = vrot.slane %v3356, 5
  %v3686 = vsel %vm977, %v3684, %v3685
  %v3687 = vrot.slane %v3597, 5
  %v3688 = vrot.slane %v3687, 4
  %v3689 = vrot.slane %v3357, 5
  %v3690 = vsel %vm977, %v3688, %v3689
  %v3691 = vrot.slane %v3598, 5
  %v3692 = vrot.slane %v3691, 4
  %v3693 = vrot.slane %v3358, 5
  %v3694 = vsel %vm977, %v3692, %v3693
  %v3695 = vld [vmem:[%s1410] sm:$0xf]
  %v3696 = vld [vmem:[%s1410 + $0x8] sm:$0xf]
  %v3697 = vld [vmem:[%s1410 + $0x10] sm:$0xf]
  %v3698 = vld [vmem:[%s1410 + $0x18] sm:$0xf]
  %v3699 = vld [vmem:[%s1410 + $0x20] sm:$0xf]
  %v3700 = vld [vmem:[%s1410 + $0x28] sm:$0xf]
  %v3701 = vld [vmem:[%s1410 + $0x30] sm:$0xf]
  %v3702 = vld [vmem:[%s1410 + $0x38] sm:$0xf]
  %v3703 = vld [vmem:[%s1410 + $0x50] sm:$0xf]
  %v3704 = vld [vmem:[%s1410 + $0x58] sm:$0xf]
  %v3705 = vld [vmem:[%s1410 + $0x60] sm:$0xf]
  %v3706 = vld [vmem:[%s1410 + $0x68] sm:$0xf]
  %v3707 = vld [vmem:[%s1410 + $0x70] sm:$0xf]
  %v3708 = vld [vmem:[%s1410 + $0x78] sm:$0xf]
  %v3709 = vld [vmem:[%s1410 + $0x80] sm:$0xf]
  %v3710 = vld [vmem:[%s1410 + $0x88] sm:$0xf]
  %v3711 = vld [vmem:[%s1410 + $0x4] sm:$0x1]
  %v3712 = vld [vmem:[%s1410 + $0xc] sm:$0x1]
  %v3713 = vld [vmem:[%s1410 + $0x14] sm:$0x1]
  %v3714 = vld [vmem:[%s1410 + $0x1c] sm:$0x1]
  %v3715 = vld [vmem:[%s1410 + $0x24] sm:$0x1]
  %v3716 = vld [vmem:[%s1410 + $0x2c] sm:$0x1]
  %v3717 = vld [vmem:[%s1410 + $0x34] sm:$0x1]
  %v3718 = vld [vmem:[%s1410 + $0x3c] sm:$0x1]
  %v3719 = vld [vmem:[%s1410 + $0x54] sm:$0x1]
  %v3720 = vld [vmem:[%s1410 + $0x5c] sm:$0x1]
  %v3721 = vld [vmem:[%s1410 + $0x64] sm:$0x1]
  %v3722 = vld [vmem:[%s1410 + $0x6c] sm:$0x1]
  %v3723 = vld [vmem:[%s1410 + $0x74] sm:$0x1]
  %v3724 = vld [vmem:[%s1410 + $0x7c] sm:$0x1]
  %v3725 = vld [vmem:[%s1410 + $0x84] sm:$0x1]
  %v3726 = vld [vmem:[%s1410 + $0x8c] sm:$0x1]
  %v3728 = vshrl.u32 %v3695, 16
  %v3730 = vrot.slane %v3728, 4
  %v3731 = vshll.u32 %v3695, 16
  %v3733 = vrot.slane %v3731, 5
  %v3734 = vor.u32 %v3730, %v3733
  %v3735 = vrot.slane %v3734, 4
  %v3737 = vshll.u32 %v3711, 16
  %v3739 = vrot.slane %v3737, 5
  %v3740 = vsel %vm702, %v3735, %v3739
  %v3742 = vshrl.u32 %v3696, 16
  %v3744 = vrot.slane %v3742, 4
  %v3745 = vshll.u32 %v3696, 16
  %v3747 = vrot.slane %v3745, 5
  %v3748 = vor.u32 %v3744, %v3747
  %v3749 = vrot.slane %v3748, 4
  %v3751 = vshll.u32 %v3712, 16
  %v3753 = vrot.slane %v3751, 5
  %v3754 = vsel %vm702, %v3749, %v3753
  %v3756 = vshrl.u32 %v3697, 16
  %v3758 = vrot.slane %v3756, 4
  %v3759 = vshll.u32 %v3697, 16
  %v3761 = vrot.slane %v3759, 5
  %v3762 = vor.u32 %v3758, %v3761
  %v3763 = vrot.slane %v3762, 4
  %v3765 = vshll.u32 %v3713, 16
  %v3767 = vrot.slane %v3765, 5
  %v3768 = vsel %vm702, %v3763, %v3767
  %v3770 = vshrl.u32 %v3698, 16
  %v3772 = vrot.slane %v3770, 4
  %v3773 = vshll.u32 %v3698, 16
  %v3775 = vrot.slane %v3773, 5
  %v3776 = vor.u32 %v3772, %v3775
  %v3777 = vrot.slane %v3776, 4
  %v3779 = vshll.u32 %v3714, 16
  %v3781 = vrot.slane %v3779, 5
  %v3782 = vsel %vm702, %v3777, %v3781
  %v3784 = vshrl.u32 %v3699, 16
  %v3786 = vrot.slane %v3784, 4
  %v3787 = vshll.u32 %v3699, 16
  %v3789 = vrot.slane %v3787, 5
  %v3790 = vor.u32 %v3786, %v3789
  %v3791 = vrot.slane %v3790, 4
  %v3793 = vshll.u32 %v3715, 16
  %v3795 = vrot.slane %v3793, 5
  %v3796 = vsel %vm702, %v3791, %v3795
  %v3798 = vshrl.u32 %v3700, 16
  %v3800 = vrot.slane %v3798, 4
  %v3801 = vshll.u32 %v3700, 16
  %v3803 = vrot.slane %v3801, 5
  %v3804 = vor.u32 %v3800, %v3803
  %v3805 = vrot.slane %v3804, 4
  %v3807 = vshll.u32 %v3716, 16
  %v3809 = vrot.slane %v3807, 5
  %v3810 = vsel %vm702, %v3805, %v3809
  %v3812 = vshrl.u32 %v3701, 16
  %v3814 = vrot.slane %v3812, 4
  %v3815 = vshll.u32 %v3701, 16
  %v3817 = vrot.slane %v3815, 5
  %v3818 = vor.u32 %v3814, %v3817
  %v3819 = vrot.slane %v3818, 4
  %v3821 = vshll.u32 %v3717, 16
  %v3823 = vrot.slane %v3821, 5
  %v3824 = vsel %vm702, %v3819, %v3823
  %v3826 = vshrl.u32 %v3702, 16
  %v3828 = vrot.slane %v3826, 4
  %v3829 = vshll.u32 %v3702, 16
  %v3831 = vrot.slane %v3829, 5
  %v3832 = vor.u32 %v3828, %v3831
  %v3833 = vrot.slane %v3832, 4
  %v3835 = vshll.u32 %v3718, 16
  %v3837 = vrot.slane %v3835, 5
  %v3838 = vsel %vm702, %v3833, %v3837
  %v3840 = vshrl.u32 %v3703, 16
  %v3842 = vrot.slane %v3840, 4
  %v3843 = vshll.u32 %v3703, 16
  %v3845 = vrot.slane %v3843, 5
  %v3846 = vor.u32 %v3842, %v3845
  %v3847 = vrot.slane %v3846, 4
  %v3849 = vshll.u32 %v3719, 16
  %v3851 = vrot.slane %v3849, 5
  %v3852 = vsel %vm702, %v3847, %v3851
  %v3854 = vshrl.u32 %v3704, 16
  %v3856 = vrot.slane %v3854, 4
  %v3857 = vshll.u32 %v3704, 16
  %v3859 = vrot.slane %v3857, 5
  %v3860 = vor.u32 %v3856, %v3859
  %v3861 = vrot.slane %v3860, 4
  %v3863 = vshll.u32 %v3720, 16
  %v3865 = vrot.slane %v3863, 5
  %v3866 = vsel %vm702, %v3861, %v3865
  %v3868 = vshrl.u32 %v3705, 16
  %v3870 = vrot.slane %v3868, 4
  %v3871 = vshll.u32 %v3705, 16
  %v3873 = vrot.slane %v3871, 5
  %v3874 = vor.u32 %v3870, %v3873
  %v3875 = vrot.slane %v3874, 4
  %v3877 = vshll.u32 %v3721, 16
  %v3879 = vrot.slane %v3877, 5
  %v3880 = vsel %vm702, %v3875, %v3879
  %v3882 = vshrl.u32 %v3706, 16
  %v3884 = vrot.slane %v3882, 4
  %v3885 = vshll.u32 %v3706, 16
  %v3887 = vrot.slane %v3885, 5
  %v3888 = vor.u32 %v3884, %v3887
  %v3889 = vrot.slane %v3888, 4
  %v3891 = vshll.u32 %v3722, 16
  %v3893 = vrot.slane %v3891, 5
  %v3894 = vsel %vm702, %v3889, %v3893
  %v3896 = vshrl.u32 %v3707, 16
  %v3898 = vrot.slane %v3896, 4
  %v3899 = vshll.u32 %v3707, 16
  %v3901 = vrot.slane %v3899, 5
  %v3902 = vor.u32 %v3898, %v3901
  %v3903 = vrot.slane %v3902, 4
  %v3905 = vshll.u32 %v3723, 16
  %v3907 = vrot.slane %v3905, 5
  %v3908 = vsel %vm702, %v3903, %v3907
  %v3910 = vshrl.u32 %v3708, 16
  %v3912 = vrot.slane %v3910, 4
  %v3913 = vshll.u32 %v3708, 16
  %v3915 = vrot.slane %v3913, 5
  %v3916 = vor.u32 %v3912, %v3915
  %v3917 = vrot.slane %v3916, 4
  %v3919 = vshll.u32 %v3724, 16
  %v3921 = vrot.slane %v3919, 5
  %v3922 = vsel %vm702, %v3917, %v3921
  %v3924 = vshrl.u32 %v3709, 16
  %v3926 = vrot.slane %v3924, 4
  %v3927 = vshll.u32 %v3709, 16
  %v3929 = vrot.slane %v3927, 5
  %v3930 = vor.u32 %v3926, %v3929
  %v3931 = vrot.slane %v3930, 4
  %v3933 = vshll.u32 %v3725, 16
  %v3935 = vrot.slane %v3933, 5
  %v3936 = vsel %vm702, %v3931, %v3935
  %v3938 = vshrl.u32 %v3710, 16
  %v3940 = vrot.slane %v3938, 4
  %v3941 = vshll.u32 %v3710, 16
  %v3943 = vrot.slane %v3941, 5
  %v3944 = vor.u32 %v3940, %v3943
  %v3945 = vrot.slane %v3944, 4
  %v3947 = vshll.u32 %v3726, 16
  %v3949 = vrot.slane %v3947, 5
  %v3950 = vsel %vm702, %v3945, %v3949
  %v3951 = vld [vmem:[%s1410] sm:$0xe]
  %v3952 = vld [vmem:[%s1410 + $0x8] sm:$0xe]
  %v3953 = vld [vmem:[%s1410 + $0x10] sm:$0xe]
  %v3954 = vld [vmem:[%s1410 + $0x18] sm:$0xe]
  %v3955 = vld [vmem:[%s1410 + $0x20] sm:$0xe]
  %v3956 = vld [vmem:[%s1410 + $0x28] sm:$0xe]
  %v3957 = vld [vmem:[%s1410 + $0x30] sm:$0xe]
  %v3958 = vld [vmem:[%s1410 + $0x38] sm:$0xe]
  %v3959 = vld [vmem:[%s1410 + $0x50] sm:$0xe]
  %v3960 = vld [vmem:[%s1410 + $0x58] sm:$0xe]
  %v3961 = vld [vmem:[%s1410 + $0x60] sm:$0xe]
  %v3962 = vld [vmem:[%s1410 + $0x68] sm:$0xe]
  %v3963 = vld [vmem:[%s1410 + $0x70] sm:$0xe]
  %v3964 = vld [vmem:[%s1410 + $0x78] sm:$0xe]
  %v3965 = vld [vmem:[%s1410 + $0x80] sm:$0xe]
  %v3966 = vld [vmem:[%s1410 + $0x88] sm:$0xe]
  %v3999 = vrot.slane %v3951, 5
  %v4000 = vrot.slane %v3999, 4
  %v4001 = vrot.slane %v3711, 5
  %v4002 = vsel %vm977, %v4000, %v4001
  %v4003 = vrot.slane %v3952, 5
  %v4004 = vrot.slane %v4003, 4
  %v4005 = vrot.slane %v3712, 5
  %v4006 = vsel %vm977, %v4004, %v4005
  %v4007 = vrot.slane %v3953, 5
  %v4008 = vrot.slane %v4007, 4
  %v4009 = vrot.slane %v3713, 5
  %v4010 = vsel %vm977, %v4008, %v4009
  %v4011 = vrot.slane %v3954, 5
  %v4012 = vrot.slane %v4011, 4
  %v4013 = vrot.slane %v3714, 5
  %v4014 = vsel %vm977, %v4012, %v4013
  %v4015 = vrot.slane %v3955, 5
  %v4016 = vrot.slane %v4015, 4
  %v4017 = vrot.slane %v3715, 5
  %v4018 = vsel %vm977, %v4016, %v4017
  %v4019 = vrot.slane %v3956, 5
  %v4020 = vrot.slane %v4019, 4
  %v4021 = vrot.slane %v3716, 5
  %v4022 = vsel %vm977, %v4020, %v4021
  %v4023 = vrot.slane %v3957, 5
  %v4024 = vrot.slane %v4023, 4
  %v4025 = vrot.slane %v3717, 5
  %v4026 = vsel %vm977, %v4024, %v4025
  %v4027 = vrot.slane %v3958, 5
  %v4028 = vrot.slane %v4027, 4
  %v4029 = vrot.slane %v3718, 5
  %v4030 = vsel %vm977, %v4028, %v4029
  %v4031 = vrot.slane %v3959, 5
  %v4032 = vrot.slane %v4031, 4
  %v4033 = vrot.slane %v3719, 5
  %v4034 = vsel %vm977, %v4032, %v4033
  %v4035 = vrot.slane %v3960, 5
  %v4036 = vrot.slane %v4035, 4
  %v4037 = vrot.slane %v3720, 5
  %v4038 = vsel %vm977, %v4036, %v4037
  %v4039 = vrot.slane %v3961, 5
  %v4040 = vrot.slane %v4039, 4
  %v4041 = vrot.slane %v3721, 5
  %v4042 = vsel %vm977, %v4040, %v4041
  %v4043 = vrot.slane %v3962, 5
  %v4044 = vrot.slane %v4043, 4
  %v4045 = vrot.slane %v3722, 5
  %v4046 = vsel %vm977, %v4044, %v4045
  %v4047 = vrot.slane %v3963, 5
  %v4048 = vrot.slane %v4047, 4
  %v4049 = vrot.slane %v3723, 5
  %v4050 = vsel %vm977, %v4048, %v4049
  %v4051 = vrot.slane %v3964, 5
  %v4052 = vrot.slane %v4051, 4
  %v4053 = vrot.slane %v3724, 5
  %v4054 = vsel %vm977, %v4052, %v4053
  %v4055 = vrot.slane %v3965, 5
  %v4056 = vrot.slane %v4055, 4
  %v4057 = vrot.slane %v3725, 5
  %v4058 = vsel %vm977, %v4056, %v4057
  %v4059 = vrot.slane %v3966, 5
  %v4060 = vrot.slane %v4059, 4
  %v4061 = vrot.slane %v3726, 5
  %v4062 = vsel %vm977, %v4060, %v4061
  %v4079 = vunpack.c.l.b16 %v2959
  %v4080 = vunpack.c.l.b16 %v2960
  %v4081 = vunpack.c.l.b16 %v2961
  %v4082 = vunpack.c.l.b16 %v2962
  %v4083 = vunpack.c.l.b16 %v2963
  %v4084 = vunpack.c.l.b16 %v2964
  %v4085 = vunpack.c.l.b16 %v2965
  %v4086 = vunpack.c.l.b16 %v2966
  %v4087 = vunpack.c.l.b16 %v2967
  %v4088 = vunpack.c.l.b16 %v2968
  %v4089 = vunpack.c.l.b16 %v2969
  %v4090 = vunpack.c.l.b16 %v2970
  %v4091 = vunpack.c.l.b16 %v2971
  %v4092 = vunpack.c.l.b16 %v2972
  %v4093 = vunpack.c.l.b16 %v2973
  %v4094 = vunpack.c.l.b16 %v2974
  %v4095 = vpack.c.b16 %v4080, %v4079
  %v4096 = vpack.c.b16 %v4082, %v4081
  %v4097 = vpack.c.b16 %v4084, %v4083
  %v4098 = vpack.c.b16 %v4086, %v4085
  %v4099 = vpack.c.b16 %v4088, %v4087
  %v4100 = vpack.c.b16 %v4090, %v4089
  %v4101 = vpack.c.b16 %v4092, %v4091
  %v4102 = vpack.c.b16 %v4094, %v4093
  %v4103 = vunpack.c.l.b16 %v3004
  %v4104 = vunpack.c.l.b16 %v3018
  %v4105 = vunpack.c.l.b16 %v3032
  %v4106 = vunpack.c.l.b16 %v3046
  %v4107 = vunpack.c.l.b16 %v3060
  %v4108 = vunpack.c.l.b16 %v3074
  %v4109 = vunpack.c.l.b16 %v3088
  %v4110 = vunpack.c.l.b16 %v3102
  %v4111 = vunpack.c.l.b16 %v3116
  %v4112 = vunpack.c.l.b16 %v3130
  %v4113 = vunpack.c.l.b16 %v3144
  %v4114 = vunpack.c.l.b16 %v3158
  %v4115 = vunpack.c.l.b16 %v3172
  %v4116 = vunpack.c.l.b16 %v3186
  %v4117 = vunpack.c.l.b16 %v3200
  %v4118 = vunpack.c.l.b16 %v3214
  %v4119 = vpack.c.b16 %v4104, %v4103
  %v4120 = vpack.c.b16 %v4106, %v4105
  %v4121 = vpack.c.b16 %v4108, %v4107
  %v4122 = vpack.c.b16 %v4110, %v4109
  %v4123 = vpack.c.b16 %v4112, %v4111
  %v4124 = vpack.c.b16 %v4114, %v4113
  %v4125 = vpack.c.b16 %v4116, %v4115
  %v4126 = vpack.c.b16 %v4118, %v4117
  %4127 = vrot.lane.b32.xlu0 %v4119, 8
  %v4128 = vpop.permute.xlu0 %4127
  %4129 = vrot.lane.b32.xlu0 %v4120, 8
  %v4130 = vpop.permute.xlu0 %4129
  %4131 = vrot.lane.b32.xlu0 %v4121, 8
  %v4132 = vpop.permute.xlu0 %4131
  %4133 = vrot.lane.b32.xlu0 %v4122, 8
  %v4134 = vpop.permute.xlu0 %4133
  %4135 = vrot.lane.b32.xlu0 %v4123, 8
  %v4136 = vpop.permute.xlu0 %4135
  %4137 = vrot.lane.b32.xlu0 %v4124, 8
  %v4138 = vpop.permute.xlu0 %4137
  %4139 = vrot.lane.b32.xlu0 %v4125, 8
  %v4140 = vpop.permute.xlu0 %4139
  %4141 = vrot.lane.b32.xlu0 %v4126, 8
  %v4142 = vpop.permute.xlu0 %4141
  %v4143 = vunpack.c.l.b16 %v3266
  %v4144 = vunpack.c.l.b16 %v3270
  %v4145 = vunpack.c.l.b16 %v3274
  %v4146 = vunpack.c.l.b16 %v3278
  %v4147 = vunpack.c.l.b16 %v3282
  %v4148 = vunpack.c.l.b16 %v3286
  %v4149 = vunpack.c.l.b16 %v3290
  %v4150 = vunpack.c.l.b16 %v3294
  %v4151 = vunpack.c.l.b16 %v3298
  %v4152 = vunpack.c.l.b16 %v3302
  %v4153 = vunpack.c.l.b16 %v3306
  %v4154 = vunpack.c.l.b16 %v3310
  %v4155 = vunpack.c.l.b16 %v3314
  %v4156 = vunpack.c.l.b16 %v3318
  %v4157 = vunpack.c.l.b16 %v3322
  %v4158 = vunpack.c.l.b16 %v3326
  %v4159 = vpack.c.b16 %v4144, %v4143
  %v4160 = vpack.c.b16 %v4146, %v4145
  %v4161 = vpack.c.b16 %v4148, %v4147
  %v4162 = vpack.c.b16 %v4150, %v4149
  %v4163 = vpack.c.b16 %v4152, %v4151
  %v4164 = vpack.c.b16 %v4154, %v4153
  %v4165 = vpack.c.b16 %v4156, %v4155
  %v4166 = vpack.c.b16 %v4158, %v4157
  %4167 = vrot.lane.b32.xlu0 %v4159, 16
  %v4168 = vpop.permute.xlu0 %4167
  %4169 = vrot.lane.b32.xlu0 %v4160, 16
  %v4170 = vpop.permute.xlu0 %4169
  %4171 = vrot.lane.b32.xlu0 %v4161, 16
  %v4172 = vpop.permute.xlu0 %4171
  %4173 = vrot.lane.b32.xlu0 %v4162, 16
  %v4174 = vpop.permute.xlu0 %4173
  %4175 = vrot.lane.b32.xlu0 %v4163, 16
  %v4176 = vpop.permute.xlu0 %4175
  %4177 = vrot.lane.b32.xlu0 %v4164, 16
  %v4178 = vpop.permute.xlu0 %4177
  %4179 = vrot.lane.b32.xlu0 %v4165, 16
  %v4180 = vpop.permute.xlu0 %4179
  %4181 = vrot.lane.b32.xlu0 %v4166, 16
  %v4182 = vpop.permute.xlu0 %4181
  %v4199 = vunpack.c.l.b16 %v3327
  %v4200 = vunpack.c.l.b16 %v3328
  %v4201 = vunpack.c.l.b16 %v3329
  %v4202 = vunpack.c.l.b16 %v3330
  %v4203 = vunpack.c.l.b16 %v3331
  %v4204 = vunpack.c.l.b16 %v3332
  %v4205 = vunpack.c.l.b16 %v3333
  %v4206 = vunpack.c.l.b16 %v3334
  %v4207 = vunpack.c.l.b16 %v3335
  %v4208 = vunpack.c.l.b16 %v3336
  %v4209 = vunpack.c.l.b16 %v3337
  %v4210 = vunpack.c.l.b16 %v3338
  %v4211 = vunpack.c.l.b16 %v3339
  %v4212 = vunpack.c.l.b16 %v3340
  %v4213 = vunpack.c.l.b16 %v3341
  %v4214 = vunpack.c.l.b16 %v3342
  %v4215 = vpack.c.b16 %v4200, %v4199
  %v4216 = vpack.c.b16 %v4202, %v4201
  %v4217 = vpack.c.b16 %v4204, %v4203
  %v4218 = vpack.c.b16 %v4206, %v4205
  %v4219 = vpack.c.b16 %v4208, %v4207
  %v4220 = vpack.c.b16 %v4210, %v4209
  %v4221 = vpack.c.b16 %v4212, %v4211
  %v4222 = vpack.c.b16 %v4214, %v4213
  %4223 = vrot.lane.b32.xlu0 %v4215, 24
  %v4224 = vpop.permute.xlu0 %4223
  %4225 = vrot.lane.b32.xlu0 %v4216, 24
  %v4226 = vpop.permute.xlu0 %4225
  %4227 = vrot.lane.b32.xlu0 %v4217, 24
  %v4228 = vpop.permute.xlu0 %4227
  %4229 = vrot.lane.b32.xlu0 %v4218, 24
  %v4230 = vpop.permute.xlu0 %4229
  %4231 = vrot.lane.b32.xlu0 %v4219, 24
  %v4232 = vpop.permute.xlu0 %4231
  %4233 = vrot.lane.b32.xlu0 %v4220, 24
  %v4234 = vpop.permute.xlu0 %4233
  %4235 = vrot.lane.b32.xlu0 %v4221, 24
  %v4236 = vpop.permute.xlu0 %4235
  %4237 = vrot.lane.b32.xlu0 %v4222, 24
  %v4238 = vpop.permute.xlu0 %4237
  %v4239 = vunpack.c.l.b16 %v3372
  %v4240 = vunpack.c.l.b16 %v3386
  %v4241 = vunpack.c.l.b16 %v3400
  %v4242 = vunpack.c.l.b16 %v3414
  %v4243 = vunpack.c.l.b16 %v3428
  %v4244 = vunpack.c.l.b16 %v3442
  %v4245 = vunpack.c.l.b16 %v3456
  %v4246 = vunpack.c.l.b16 %v3470
  %v4247 = vunpack.c.l.b16 %v3484
  %v4248 = vunpack.c.l.b16 %v3498
  %v4249 = vunpack.c.l.b16 %v3512
  %v4250 = vunpack.c.l.b16 %v3526
  %v4251 = vunpack.c.l.b16 %v3540
  %v4252 = vunpack.c.l.b16 %v3554
  %v4253 = vunpack.c.l.b16 %v3568
  %v4254 = vunpack.c.l.b16 %v3582
  %v4255 = vpack.c.b16 %v4240, %v4239
  %v4256 = vpack.c.b16 %v4242, %v4241
  %v4257 = vpack.c.b16 %v4244, %v4243
  %v4258 = vpack.c.b16 %v4246, %v4245
  %v4259 = vpack.c.b16 %v4248, %v4247
  %v4260 = vpack.c.b16 %v4250, %v4249
  %v4261 = vpack.c.b16 %v4252, %v4251
  %v4262 = vpack.c.b16 %v4254, %v4253
  %4263 = vrot.lane.b32.xlu0 %v4255, 32
  %v4264 = vpop.permute.xlu0 %4263
  %4265 = vrot.lane.b32.xlu0 %v4256, 32
  %v4266 = vpop.permute.xlu0 %4265
  %4267 = vrot.lane.b32.xlu0 %v4257, 32
  %v4268 = vpop.permute.xlu0 %4267
  %4269 = vrot.lane.b32.xlu0 %v4258, 32
  %v4270 = vpop.permute.xlu0 %4269
  %4271 = vrot.lane.b32.xlu0 %v4259, 32
  %v4272 = vpop.permute.xlu0 %4271
  %4273 = vrot.lane.b32.xlu0 %v4260, 32
  %v4274 = vpop.permute.xlu0 %4273
  %4275 = vrot.lane.b32.xlu0 %v4261, 32
  %v4276 = vpop.permute.xlu0 %4275
  %4277 = vrot.lane.b32.xlu0 %v4262, 32
  %v4278 = vpop.permute.xlu0 %4277
  %v4279 = vunpack.c.l.b16 %v3634
  %v4280 = vunpack.c.l.b16 %v3638
  %v4281 = vunpack.c.l.b16 %v3642
  %v4282 = vunpack.c.l.b16 %v3646
  %v4283 = vunpack.c.l.b16 %v3650
  %v4284 = vunpack.c.l.b16 %v3654
  %v4285 = vunpack.c.l.b16 %v3658
  %v4286 = vunpack.c.l.b16 %v3662
  %v4287 = vunpack.c.l.b16 %v3666
  %v4288 = vunpack.c.l.b16 %v3670
  %v4289 = vunpack.c.l.b16 %v3674
  %v4290 = vunpack.c.l.b16 %v3678
  %v4291 = vunpack.c.l.b16 %v3682
  %v4292 = vunpack.c.l.b16 %v3686
  %v4293 = vunpack.c.l.b16 %v3690
  %v4294 = vunpack.c.l.b16 %v3694
  %v4295 = vpack.c.b16 %v4280, %v4279
  %v4296 = vpack.c.b16 %v4282, %v4281
  %v4297 = vpack.c.b16 %v4284, %v4283
  %v4298 = vpack.c.b16 %v4286, %v4285
  %v4299 = vpack.c.b16 %v4288, %v4287
  %v4300 = vpack.c.b16 %v4290, %v4289
  %v4301 = vpack.c.b16 %v4292, %v4291
  %v4302 = vpack.c.b16 %v4294, %v4293
  %4303 = vrot.lane.b32.xlu0 %v4295, 40
  %v4304 = vpop.permute.xlu0 %4303
  %4305 = vrot.lane.b32.xlu0 %v4296, 40
  %v4306 = vpop.permute.xlu0 %4305
  %4307 = vrot.lane.b32.xlu0 %v4297, 40
  %v4308 = vpop.permute.xlu0 %4307
  %4309 = vrot.lane.b32.xlu0 %v4298, 40
  %v4310 = vpop.permute.xlu0 %4309
  %4311 = vrot.lane.b32.xlu0 %v4299, 40
  %v4312 = vpop.permute.xlu0 %4311
  %4313 = vrot.lane.b32.xlu0 %v4300, 40
  %v4314 = vpop.permute.xlu0 %4313
  %4315 = vrot.lane.b32.xlu0 %v4301, 40
  %v4316 = vpop.permute.xlu0 %4315
  %4317 = vrot.lane.b32.xlu0 %v4302, 40
  %v4318 = vpop.permute.xlu0 %4317
  %v4335 = vunpack.c.l.b16 %v3695
  %v4336 = vunpack.c.l.b16 %v3696
  %v4337 = vunpack.c.l.b16 %v3697
  %v4338 = vunpack.c.l.b16 %v3698
  %v4339 = vunpack.c.l.b16 %v3699
  %v4340 = vunpack.c.l.b16 %v3700
  %v4341 = vunpack.c.l.b16 %v3701
  %v4342 = vunpack.c.l.b16 %v3702
  %v4343 = vunpack.c.l.b16 %v3703
  %v4344 = vunpack.c.l.b16 %v3704
  %v4345 = vunpack.c.l.b16 %v3705
  %v4346 = vunpack.c.l.b16 %v3706
  %v4347 = vunpack.c.l.b16 %v3707
  %v4348 = vunpack.c.l.b16 %v3708
  %v4349 = vunpack.c.l.b16 %v3709
  %v4350 = vunpack.c.l.b16 %v3710
  %v4351 = vpack.c.b16 %v4336, %v4335
  %v4352 = vpack.c.b16 %v4338, %v4337
  %v4353 = vpack.c.b16 %v4340, %v4339
  %v4354 = vpack.c.b16 %v4342, %v4341
  %v4355 = vpack.c.b16 %v4344, %v4343
  %v4356 = vpack.c.b16 %v4346, %v4345
  %v4357 = vpack.c.b16 %v4348, %v4347
  %v4358 = vpack.c.b16 %v4350, %v4349
  %4359 = vrot.lane.b32.xlu0 %v4351, 48
  %v4360 = vpop.permute.xlu0 %4359
  %4361 = vrot.lane.b32.xlu0 %v4352, 48
  %v4362 = vpop.permute.xlu0 %4361
  %4363 = vrot.lane.b32.xlu0 %v4353, 48
  %v4364 = vpop.permute.xlu0 %4363
  %4365 = vrot.lane.b32.xlu0 %v4354, 48
  %v4366 = vpop.permute.xlu0 %4365
  %4367 = vrot.lane.b32.xlu0 %v4355, 48
  %v4368 = vpop.permute.xlu0 %4367
  %4369 = vrot.lane.b32.xlu0 %v4356, 48
  %v4370 = vpop.permute.xlu0 %4369
  %4371 = vrot.lane.b32.xlu0 %v4357, 48
  %v4372 = vpop.permute.xlu0 %4371
  %4373 = vrot.lane.b32.xlu0 %v4358, 48
  %v4374 = vpop.permute.xlu0 %4373
  %v4375 = vunpack.c.l.b16 %v3740
  %v4376 = vunpack.c.l.b16 %v3754
  %v4377 = vunpack.c.l.b16 %v3768
  %v4378 = vunpack.c.l.b16 %v3782
  %v4379 = vunpack.c.l.b16 %v3796
  %v4380 = vunpack.c.l.b16 %v3810
  %v4381 = vunpack.c.l.b16 %v3824
  %v4382 = vunpack.c.l.b16 %v3838
  %v4383 = vunpack.c.l.b16 %v3852
  %v4384 = vunpack.c.l.b16 %v3866
  %v4385 = vunpack.c.l.b16 %v3880
  %v4386 = vunpack.c.l.b16 %v3894
  %v4387 = vunpack.c.l.b16 %v3908
  %v4388 = vunpack.c.l.b16 %v3922
  %v4389 = vunpack.c.l.b16 %v3936
  %v4390 = vunpack.c.l.b16 %v3950
  %v4391 = vpack.c.b16 %v4376, %v4375
  %v4392 = vpack.c.b16 %v4378, %v4377
  %v4393 = vpack.c.b16 %v4380, %v4379
  %v4394 = vpack.c.b16 %v4382, %v4381
  %v4395 = vpack.c.b16 %v4384, %v4383
  %v4396 = vpack.c.b16 %v4386, %v4385
  %v4397 = vpack.c.b16 %v4388, %v4387
  %v4398 = vpack.c.b16 %v4390, %v4389
  %4399 = vrot.lane.b32.xlu0 %v4391, 56
  %v4400 = vpop.permute.xlu0 %4399
  %4401 = vrot.lane.b32.xlu0 %v4392, 56
  %v4402 = vpop.permute.xlu0 %4401
  %4403 = vrot.lane.b32.xlu0 %v4393, 56
  %v4404 = vpop.permute.xlu0 %4403
  %4405 = vrot.lane.b32.xlu0 %v4394, 56
  %v4406 = vpop.permute.xlu0 %4405
  %4407 = vrot.lane.b32.xlu0 %v4395, 56
  %v4408 = vpop.permute.xlu0 %4407
  %4409 = vrot.lane.b32.xlu0 %v4396, 56
  %v4410 = vpop.permute.xlu0 %4409
  %4411 = vrot.lane.b32.xlu0 %v4397, 56
  %v4412 = vpop.permute.xlu0 %4411
  %4413 = vrot.lane.b32.xlu0 %v4398, 56
  %v4414 = vpop.permute.xlu0 %4413
  %v4415 = vunpack.c.l.b16 %v4002
  %v4416 = vunpack.c.l.b16 %v4006
  %v4417 = vunpack.c.l.b16 %v4010
  %v4418 = vunpack.c.l.b16 %v4014
  %v4419 = vunpack.c.l.b16 %v4018
  %v4420 = vunpack.c.l.b16 %v4022
  %v4421 = vunpack.c.l.b16 %v4026
  %v4422 = vunpack.c.l.b16 %v4030
  %v4423 = vunpack.c.l.b16 %v4034
  %v4424 = vunpack.c.l.b16 %v4038
  %v4425 = vunpack.c.l.b16 %v4042
  %v4426 = vunpack.c.l.b16 %v4046
  %v4427 = vunpack.c.l.b16 %v4050
  %v4428 = vunpack.c.l.b16 %v4054
  %v4429 = vunpack.c.l.b16 %v4058
  %v4430 = vunpack.c.l.b16 %v4062
  %v4431 = vpack.c.b16 %v4416, %v4415
  %v4432 = vpack.c.b16 %v4418, %v4417
  %v4433 = vpack.c.b16 %v4420, %v4419
  %v4434 = vpack.c.b16 %v4422, %v4421
  %v4435 = vpack.c.b16 %v4424, %v4423
  %v4436 = vpack.c.b16 %v4426, %v4425
  %v4437 = vpack.c.b16 %v4428, %v4427
  %v4438 = vpack.c.b16 %v4430, %v4429
  %4439 = vrot.lane.b32.xlu0 %v4431, 64
  %v4440 = vpop.permute.xlu0 %4439
  %4441 = vrot.lane.b32.xlu0 %v4432, 64
  %v4442 = vpop.permute.xlu0 %4441
  %4443 = vrot.lane.b32.xlu0 %v4433, 64
  %v4444 = vpop.permute.xlu0 %4443
  %4445 = vrot.lane.b32.xlu0 %v4434, 64
  %v4446 = vpop.permute.xlu0 %4445
  %4447 = vrot.lane.b32.xlu0 %v4435, 64
  %v4448 = vpop.permute.xlu0 %4447
  %4449 = vrot.lane.b32.xlu0 %v4436, 64
  %v4450 = vpop.permute.xlu0 %4449
  %4451 = vrot.lane.b32.xlu0 %v4437, 64
  %v4452 = vpop.permute.xlu0 %4451
  %4453 = vrot.lane.b32.xlu0 %v4438, 64
  %v4454 = vpop.permute.xlu0 %4453
  %v4457 = vsel %vm2171, %v4095, %v4128
  %v4460 = vsel %vm2171, %v4096, %v4130
  %v4463 = vsel %vm2171, %v4097, %v4132
  %v4466 = vsel %vm2171, %v4098, %v4134
  %v4469 = vsel %vm2171, %v4099, %v4136
  %v4472 = vsel %vm2171, %v4100, %v4138
  %v4475 = vsel %vm2171, %v4101, %v4140
  %v4478 = vsel %vm2171, %v4102, %v4142
  %v4480 = vsel %vm2196, %v4457, %v4168
  %v4482 = vsel %vm2196, %v4460, %v4170
  %v4484 = vsel %vm2196, %v4463, %v4172
  %v4486 = vsel %vm2196, %v4466, %v4174
  %v4488 = vsel %vm2196, %v4469, %v4176
  %v4490 = vsel %vm2196, %v4472, %v4178
  %v4492 = vsel %vm2196, %v4475, %v4180
  %v4494 = vsel %vm2196, %v4478, %v4182
  %v4496 = vsel %vm2213, %v4480, %v4224
  %v4498 = vsel %vm2213, %v4482, %v4226
  %v4500 = vsel %vm2213, %v4484, %v4228
  %v4502 = vsel %vm2213, %v4486, %v4230
  %v4504 = vsel %vm2213, %v4488, %v4232
  %v4506 = vsel %vm2213, %v4490, %v4234
  %v4508 = vsel %vm2213, %v4492, %v4236
  %v4510 = vsel %vm2213, %v4494, %v4238
  %v4512 = vsel %vm2230, %v4496, %v4264
  %v4514 = vsel %vm2230, %v4498, %v4266
  %v4516 = vsel %vm2230, %v4500, %v4268
  %v4518 = vsel %vm2230, %v4502, %v4270
  %v4520 = vsel %vm2230, %v4504, %v4272
  %v4522 = vsel %vm2230, %v4506, %v4274
  %v4524 = vsel %vm2230, %v4508, %v4276
  %v4526 = vsel %vm2230, %v4510, %v4278
  %v4528 = vsel %vm2247, %v4512, %v4304
  %v4530 = vsel %vm2247, %v4514, %v4306
  %v4532 = vsel %vm2247, %v4516, %v4308
  %v4534 = vsel %vm2247, %v4518, %v4310
  %v4536 = vsel %vm2247, %v4520, %v4312
  %v4538 = vsel %vm2247, %v4522, %v4314
  %v4540 = vsel %vm2247, %v4524, %v4316
  %v4542 = vsel %vm2247, %v4526, %v4318
  %v4544 = vsel %vm2264, %v4528, %v4360
  %v4546 = vsel %vm2264, %v4530, %v4362
  %v4548 = vsel %vm2264, %v4532, %v4364
  %v4550 = vsel %vm2264, %v4534, %v4366
  %v4552 = vsel %vm2264, %v4536, %v4368
  %v4554 = vsel %vm2264, %v4538, %v4370
  %v4556 = vsel %vm2264, %v4540, %v4372
  %v4558 = vsel %vm2264, %v4542, %v4374
  %v4560 = vsel %vm2281, %v4544, %v4400
  %v4562 = vsel %vm2281, %v4546, %v4402
  %v4564 = vsel %vm2281, %v4548, %v4404
  %v4566 = vsel %vm2281, %v4550, %v4406
  %v4568 = vsel %vm2281, %v4552, %v4408
  %v4570 = vsel %vm2281, %v4554, %v4410
  %v4572 = vsel %vm2281, %v4556, %v4412
  %v4574 = vsel %vm2281, %v4558, %v4414
  %v4576 = vsel %vm2298, %v4560, %v4440
  %v4578 = vsel %vm2298, %v4562, %v4442
  %v4580 = vsel %vm2298, %v4564, %v4444
  %v4582 = vsel %vm2298, %v4566, %v4446
  %v4584 = vsel %vm2298, %v4568, %v4448
  %v4586 = vsel %vm2298, %v4570, %v4450
  %v4588 = vsel %vm2298, %v4572, %v4452
  %v4590 = vsel %vm2298, %v4574, %v4454
  %v4591 = vld [vmem:[%s7] sm:$0xf]
  %v4592 = vld [vmem:[%s7 + $0x4] sm:$0xf]
  %v4593 = vld [vmem:[%s7 + $0x8] sm:$0xf]
  %v4594 = vld [vmem:[%s7 + $0xc] sm:$0xf]
  %v4595 = vld [vmem:[%s7 + $0x10] sm:$0xf]
  %v4596 = vld [vmem:[%s7 + $0x14] sm:$0xf]
  %v4597 = vld [vmem:[%s7 + $0x18] sm:$0xf]
  %v4598 = vld [vmem:[%s7 + $0x1c] sm:$0xf]
  %v4599 = vld [vmem:[%s7 + $0x20] sm:$0xf]
  %v4600 = vld [vmem:[%s8] sm:$0x1]
  %v4602 = vperm.slane %v4600, 0
  %v4613 = vunpack.c.l.b16 %v4591
  %v4614 = vunpack.c.l.b16 %v4592
  %v4615 = vunpack.c.l.b16 %v4593
  %v4616 = vunpack.c.l.b16 %v4594
  %v4617 = vunpack.c.l.b16 %v4595
  %v4618 = vunpack.c.l.b16 %v4596
  %v4619 = vunpack.c.l.b16 %v4597
  %v4620 = vunpack.c.l.b16 %v4598
  %v4621 = vunpack.c.l.b16 %v4599
  %v4622 = vpack.c.b16 %v4614, %v4613
  %v4623 = vpack.c.b16 %v4616, %v4615
  %v4624 = vpack.c.b16 %v4618, %v4617
  %v4625 = vpack.c.b16 %v4620, %v4619
  %v4626 = vpack.c.b16 %v4621, %v4621
  %v4631 = vsel %vm2355, %v4576, 0
  %v4633 = vsel %vm2355, %v4578, 0
  %v4635 = vsel %vm2355, %v4580, 0
  %v4637 = vsel %vm2355, %v4582, 0
  %v4639 = vsel %vm2355, %v4584, 0
  %v4641 = vsel %vm2355, %v4586, 0
  %v4643 = vsel %vm2355, %v4588, 0
  %v4645 = vsel %vm2355, %v4590, 0
  %v4648 = vsel %vm2372, %v4626, 0
  %4650 = vmatpush.bf16.msra.mxu0 0
  %4651 = vmatpush.bf16.msra.mxu0 0
  %4652 = vmatpush.bf16.msra.mxu0 0
  %4653 = vmatpush.bf16.msra.mxu0 %v4648
  %4654 = vmatpush.bf16.msra.mxu0 %v4625
  %4655 = vmatpush.bf16.msra.mxu0 %v4624
  %4656 = vmatpush.bf16.msra.mxu0 %v4623
  %4657 = vmatpush.bf16.msra.mxu0 %v4622
  %4658 = vmatmul.bf16.gmra.mxu0 %v4631
  %v4659 = vpop.f32.mrf.mxu0
  %v4660 = vadd.f32 %v4602, %v4659
  %v4661 = vpop.f32.mrf.mxu0
  %v4662 = vadd.f32 %v4602, %v4661
  %4663 = vmatmul.bf16.gmra.mxu0 %v4633
  %v4664 = vpop.f32.mrf.mxu0
  %v4665 = vadd.f32 %v4602, %v4664
  %v4666 = vpop.f32.mrf.mxu0
  %v4667 = vadd.f32 %v4602, %v4666
  %4668 = vmatmul.bf16.gmra.mxu0 %v4635
  %v4669 = vpop.f32.mrf.mxu0
  %v4670 = vadd.f32 %v4602, %v4669
  %v4671 = vpop.f32.mrf.mxu0
  %v4672 = vadd.f32 %v4602, %v4671
  %4673 = vmatmul.bf16.gmra.mxu0 %v4637
  %v4674 = vpop.f32.mrf.mxu0
  %v4675 = vadd.f32 %v4602, %v4674
  %v4676 = vpop.f32.mrf.mxu0
  %v4677 = vadd.f32 %v4602, %v4676
  %4678 = vmatmul.bf16.gmra.mxu0 %v4639
  %v4679 = vpop.f32.mrf.mxu0
  %v4680 = vadd.f32 %v4602, %v4679
  %v4681 = vpop.f32.mrf.mxu0
  %v4682 = vadd.f32 %v4602, %v4681
  %4683 = vmatmul.bf16.gmra.mxu0 %v4641
  %v4684 = vpop.f32.mrf.mxu0
  %v4685 = vadd.f32 %v4602, %v4684
  %v4686 = vpop.f32.mrf.mxu0
  %v4687 = vadd.f32 %v4602, %v4686
  %4688 = vmatmul.bf16.gmra.mxu0 %v4643
  %v4689 = vpop.f32.mrf.mxu0
  %v4690 = vadd.f32 %v4602, %v4689
  %v4691 = vpop.f32.mrf.mxu0
  %v4692 = vadd.f32 %v4602, %v4691
  %4693 = vmatmul.bf16.gmra.mxu0 %v4645
  %v4694 = vpop.f32.mrf.mxu0
  %v4695 = vadd.f32 %v4602, %v4694
  %v4696 = vpop.f32.mrf.mxu0
  %v4697 = vadd.f32 %v4602, %v4696
  %4698 = vdwg.mxu0
  %v4699 = vsel %vm2171, %v4660, 0.0
  %v4700 = vsel %vm2171, %v4662, 0.0
  %v4701 = vadd.f32 %v4699, %v4700
  %v4702 = vsel %vm2171, %v4665, 0.0
  %v4703 = vadd.f32 %v4701, %v4702
  %v4704 = vsel %vm2171, %v4667, 0.0
  %v4705 = vadd.f32 %v4703, %v4704
  %v4706 = vsel %vm2171, %v4670, 0.0
  %v4707 = vadd.f32 %v4705, %v4706
  %v4708 = vsel %vm2171, %v4672, 0.0
  %v4709 = vadd.f32 %v4707, %v4708
  %v4710 = vsel %vm2171, %v4675, 0.0
  %v4711 = vadd.f32 %v4709, %v4710
  %v4712 = vsel %vm2171, %v4677, 0.0
  %v4713 = vadd.f32 %v4711, %v4712
  %v4714 = vsel %vm2171, %v4680, 0.0
  %v4715 = vadd.f32 %v4713, %v4714
  %v4716 = vsel %vm2171, %v4682, 0.0
  %v4717 = vadd.f32 %v4715, %v4716
  %v4718 = vsel %vm2171, %v4685, 0.0
  %v4719 = vadd.f32 %v4717, %v4718
  %v4720 = vsel %vm2171, %v4687, 0.0
  %v4721 = vadd.f32 %v4719, %v4720
  %v4722 = vsel %vm2171, %v4690, 0.0
  %v4723 = vadd.f32 %v4721, %v4722
  %v4724 = vsel %vm2171, %v4692, 0.0
  %v4725 = vadd.f32 %v4723, %v4724
  %v4726 = vsel %vm2171, %v4695, 0.0
  %v4727 = vadd.f32 %v4725, %v4726
  %v4728 = vsel %vm2171, %v4697, 0.0
  %v4729 = vadd.f32 %v4727, %v4728
  %v4730 = vrot.slane %v4729, 4
  %v4731 = vadd.f32 %v4729, %v4730
  %v4732 = vrot.slane %v4731, 2
  %v4733 = vadd.f32 %v4731, %v4732
  %v4734 = vrot.slane %v4733, 1
  %v4735 = vadd.f32 %v4733, %v4734
  %v4736 = vmul.f32 %v4735, %v2468
  %v4737 = vsub.f32 %v4660, %v4736
  %v4738 = vsub.f32 %v4662, %v4736
  %v4739 = vsub.f32 %v4665, %v4736
  %v4740 = vsub.f32 %v4667, %v4736
  %v4741 = vsub.f32 %v4670, %v4736
  %v4742 = vsub.f32 %v4672, %v4736
  %v4743 = vsub.f32 %v4675, %v4736
  %v4744 = vsub.f32 %v4677, %v4736
  %v4745 = vsub.f32 %v4680, %v4736
  %v4746 = vsub.f32 %v4682, %v4736
  %v4747 = vsub.f32 %v4685, %v4736
  %v4748 = vsub.f32 %v4687, %v4736
  %v4749 = vsub.f32 %v4690, %v4736
  %v4750 = vsub.f32 %v4692, %v4736
  %v4751 = vsub.f32 %v4695, %v4736
  %v4752 = vsub.f32 %v4697, %v4736
  %v4753 = vmul.f32 %v4737, %v4737
  %v4754 = vmul.f32 %v4738, %v4738
  %v4755 = vmul.f32 %v4739, %v4739
  %v4756 = vmul.f32 %v4740, %v4740
  %v4757 = vmul.f32 %v4741, %v4741
  %v4758 = vmul.f32 %v4742, %v4742
  %v4759 = vmul.f32 %v4743, %v4743
  %v4760 = vmul.f32 %v4744, %v4744
  %v4761 = vmul.f32 %v4745, %v4745
  %v4762 = vmul.f32 %v4746, %v4746
  %v4763 = vmul.f32 %v4747, %v4747
  %v4764 = vmul.f32 %v4748, %v4748
  %v4765 = vmul.f32 %v4749, %v4749
  %v4766 = vmul.f32 %v4750, %v4750
  %v4767 = vmul.f32 %v4751, %v4751
  %v4768 = vmul.f32 %v4752, %v4752
  %v4769 = vsel %vm2171, %v4753, 0.0
  %v4770 = vsel %vm2171, %v4754, 0.0
  %v4771 = vadd.f32 %v4769, %v4770
  %v4772 = vsel %vm2171, %v4755, 0.0
  %v4773 = vadd.f32 %v4771, %v4772
  %v4774 = vsel %vm2171, %v4756, 0.0
  %v4775 = vadd.f32 %v4773, %v4774
  %v4776 = vsel %vm2171, %v4757, 0.0
  %v4777 = vadd.f32 %v4775, %v4776
  %v4778 = vsel %vm2171, %v4758, 0.0
  %v4779 = vadd.f32 %v4777, %v4778
  %v4780 = vsel %vm2171, %v4759, 0.0
  %v4781 = vadd.f32 %v4779, %v4780
  %v4782 = vsel %vm2171, %v4760, 0.0
  %v4783 = vadd.f32 %v4781, %v4782
  %v4784 = vsel %vm2171, %v4761, 0.0
  %v4785 = vadd.f32 %v4783, %v4784
  %v4786 = vsel %vm2171, %v4762, 0.0
  %v4787 = vadd.f32 %v4785, %v4786
  %v4788 = vsel %vm2171, %v4763, 0.0
  %v4789 = vadd.f32 %v4787, %v4788
  %v4790 = vsel %vm2171, %v4764, 0.0
  %v4791 = vadd.f32 %v4789, %v4790
  %v4792 = vsel %vm2171, %v4765, 0.0
  %v4793 = vadd.f32 %v4791, %v4792
  %v4794 = vsel %vm2171, %v4766, 0.0
  %v4795 = vadd.f32 %v4793, %v4794
  %v4796 = vsel %vm2171, %v4767, 0.0
  %v4797 = vadd.f32 %v4795, %v4796
  %v4798 = vsel %vm2171, %v4768, 0.0
  %v4799 = vadd.f32 %v4797, %v4798
  %v4800 = vrot.slane %v4799, 4
  %v4801 = vadd.f32 %v4799, %v4800
  %v4802 = vrot.slane %v4801, 2
  %v4803 = vadd.f32 %v4801, %v4802
  %v4804 = vrot.slane %v4803, 1
  %v4805 = vadd.f32 %v4803, %v4804
  %v4806 = vmul.f32 %v4805, %v2468
  %v4807 = vld [vmem:[%s9] sm:$0x1]
  %v4808 = vadd.f32 %v4806, 1e-05
  %v4809 = vrsqrt.pop %v4808
  %v4810 = vmul.f32 %v4809, %v4808
  %v4811 = vmul.f32 %v4810, %v4809
  %v4812 = vmul.f32 0.5, %v4811
  %v4813 = vsub.f32 1.5, %v4812
  %v4814 = vmul.f32 %v4809, %v4813
  %vm4815 = vweird.f32 %v4808
  %vm4816 = vweird.f32 %v4809
  %vm4817 = vmor %vm4815, %vm4816
  %v4818 = vsel %vm4817, %v4809, %v4814
  %v4819 = vmul.f32 %v4807, %v4818
  %v4821 = vperm.slane %v4819, 0
  %v4823 = vmul.f32 %v4737, %v4821
  %v4824 = vmul.f32 %v4738, %v4821
  %v4825 = vmul.f32 %v4739, %v4821
  %v4826 = vmul.f32 %v4740, %v4821
  %v4827 = vmul.f32 %v4741, %v4821
  %v4828 = vmul.f32 %v4742, %v4821
  %v4829 = vmul.f32 %v4743, %v4821
  %v4830 = vmul.f32 %v4744, %v4821
  %v4831 = vmul.f32 %v4745, %v4821
  %v4832 = vmul.f32 %v4746, %v4821
  %v4833 = vmul.f32 %v4747, %v4821
  %v4834 = vmul.f32 %v4748, %v4821
  %v4835 = vmul.f32 %v4749, %v4821
  %v4836 = vmul.f32 %v4750, %v4821
  %v4837 = vmul.f32 %v4751, %v4821
  %v4838 = vmul.f32 %v4752, %v4821
  %v4839 = vld [vmem:[%s10] sm:$0x1]
  %v4841 = vperm.slane %v4839, 0
  %v4843 = vadd.f32 %v4823, %v4841
  %v4844 = vadd.f32 %v4824, %v4841
  %v4845 = vadd.f32 %v4825, %v4841
  %v4846 = vadd.f32 %v4826, %v4841
  %v4847 = vadd.f32 %v4827, %v4841
  %v4848 = vadd.f32 %v4828, %v4841
  %v4849 = vadd.f32 %v4829, %v4841
  %v4850 = vadd.f32 %v4830, %v4841
  %v4851 = vadd.f32 %v4831, %v4841
  %v4852 = vadd.f32 %v4832, %v4841
  %v4853 = vadd.f32 %v4833, %v4841
  %v4854 = vadd.f32 %v4834, %v4841
  %v4855 = vadd.f32 %v4835, %v4841
  %v4856 = vadd.f32 %v4836, %v4841
  %v4857 = vadd.f32 %v4837, %v4841
  %v4858 = vadd.f32 %v4838, %v4841
  %vm4859 = vcmp.gt.f32.partialorder %v4843, 0.0
  %vm4860 = vcmp.gt.f32.partialorder %v4844, 0.0
  %vm4861 = vcmp.gt.f32.partialorder %v4845, 0.0
  %vm4862 = vcmp.gt.f32.partialorder %v4846, 0.0
  %vm4863 = vcmp.gt.f32.partialorder %v4847, 0.0
  %vm4864 = vcmp.gt.f32.partialorder %v4848, 0.0
  %vm4865 = vcmp.gt.f32.partialorder %v4849, 0.0
  %vm4866 = vcmp.gt.f32.partialorder %v4850, 0.0
  %vm4867 = vcmp.gt.f32.partialorder %v4851, 0.0
  %vm4868 = vcmp.gt.f32.partialorder %v4852, 0.0
  %vm4869 = vcmp.gt.f32.partialorder %v4853, 0.0
  %vm4870 = vcmp.gt.f32.partialorder %v4854, 0.0
  %vm4871 = vcmp.gt.f32.partialorder %v4855, 0.0
  %vm4872 = vcmp.gt.f32.partialorder %v4856, 0.0
  %vm4873 = vcmp.gt.f32.partialorder %v4857, 0.0
  %vm4874 = vcmp.gt.f32.partialorder %v4858, 0.0
  %v4875 = vmin.f32 %v4843, 0.0
  %v4876 = vmin.f32 %v4844, 0.0
  %v4877 = vmin.f32 %v4845, 0.0
  %v4878 = vmin.f32 %v4846, 0.0
  %v4879 = vmin.f32 %v4847, 0.0
  %v4880 = vmin.f32 %v4848, 0.0
  %v4881 = vmin.f32 %v4849, 0.0
  %v4882 = vmin.f32 %v4850, 0.0
  %v4883 = vmin.f32 %v4851, 0.0
  %v4884 = vmin.f32 %v4852, 0.0
  %v4885 = vmin.f32 %v4853, 0.0
  %v4886 = vmin.f32 %v4854, 0.0
  %v4887 = vmin.f32 %v4855, 0.0
  %v4888 = vmin.f32 %v4856, 0.0
  %v4889 = vmin.f32 %v4857, 0.0
  %v4890 = vmin.f32 %v4858, 0.0
  %v4891 = vmul.f32 %v4875, 1.442695
  %v4892 = vpow.pop %v4891
  %v4893 = vmul.f32 %v4876, 1.442695
  %v4894 = vpow.pop %v4893
  %v4895 = vmul.f32 %v4877, 1.442695
  %v4896 = vpow.pop %v4895
  %v4897 = vmul.f32 %v4878, 1.442695
  %v4898 = vpow.pop %v4897
  %v4899 = vmul.f32 %v4879, 1.442695
  %v4900 = vpow.pop %v4899
  %v4901 = vmul.f32 %v4880, 1.442695
  %v4902 = vpow.pop %v4901
  %v4903 = vmul.f32 %v4881, 1.442695
  %v4904 = vpow.pop %v4903
  %v4905 = vmul.f32 %v4882, 1.442695
  %v4906 = vpow.pop %v4905
  %v4907 = vmul.f32 %v4883, 1.442695
  %v4908 = vpow.pop %v4907
  %v4909 = vmul.f32 %v4884, 1.442695
  %v4910 = vpow.pop %v4909
  %v4911 = vmul.f32 %v4885, 1.442695
  %v4912 = vpow.pop %v4911
  %v4913 = vmul.f32 %v4886, 1.442695
  %v4914 = vpow.pop %v4913
  %v4915 = vmul.f32 %v4887, 1.442695
  %v4916 = vpow.pop %v4915
  %v4917 = vmul.f32 %v4888, 1.442695
  %v4918 = vpow.pop %v4917
  %v4919 = vmul.f32 %v4889, 1.442695
  %v4920 = vpow.pop %v4919
  %v4921 = vmul.f32 %v4890, 1.442695
  %v4922 = vpow.pop %v4921
  %v4923 = vsub.f32 %v4892, 1.0
  %v4924 = vsub.f32 %v4894, 1.0
  %v4925 = vsub.f32 %v4896, 1.0
  %v4926 = vsub.f32 %v4898, 1.0
  %v4927 = vsub.f32 %v4900, 1.0
  %v4928 = vsub.f32 %v4902, 1.0
  %v4929 = vsub.f32 %v4904, 1.0
  %v4930 = vsub.f32 %v4906, 1.0
  %v4931 = vsub.f32 %v4908, 1.0
  %v4932 = vsub.f32 %v4910, 1.0
  %v4933 = vsub.f32 %v4912, 1.0
  %v4934 = vsub.f32 %v4914, 1.0
  %v4935 = vsub.f32 %v4916, 1.0
  %v4936 = vsub.f32 %v4918, 1.0
  %v4937 = vsub.f32 %v4920, 1.0
  %v4938 = vsub.f32 %v4922, 1.0
  %v4939 = vsel %vm4859, %v4843, %v4923
  %v4940 = vsel %vm4860, %v4844, %v4924
  %v4941 = vsel %vm4861, %v4845, %v4925
  %v4942 = vsel %vm4862, %v4846, %v4926
  %v4943 = vsel %vm4863, %v4847, %v4927
  %v4944 = vsel %vm4864, %v4848, %v4928
  %v4945 = vsel %vm4865, %v4849, %v4929
  %v4946 = vsel %vm4866, %v4850, %v4930
  %v4947 = vsel %vm4867, %v4851, %v4931
  %v4948 = vsel %vm4868, %v4852, %v4932
  %v4949 = vsel %vm4869, %v4853, %v4933
  %v4950 = vsel %vm4870, %v4854, %v4934
  %v4951 = vsel %vm4871, %v4855, %v4935
  %v4952 = vsel %vm4872, %v4856, %v4936
  %v4953 = vsel %vm4873, %v4857, %v4937
  %v4954 = vsel %vm4874, %v4858, %v4938
  %v4955 = vpack.c.bf16 %v4940, %v4939
  %v4956 = vpack.c.bf16 %v4942, %v4941
  %v4957 = vpack.c.bf16 %v4944, %v4943
  %v4958 = vpack.c.bf16 %v4946, %v4945
  %v4959 = vpack.c.bf16 %v4948, %v4947
  %v4960 = vpack.c.bf16 %v4950, %v4949
  %v4961 = vpack.c.bf16 %v4952, %v4951
  %v4962 = vpack.c.bf16 %v4954, %v4953
  %v4963 = vld [vmem:[%s11] sm:$0xf]
  %v4964 = vld [vmem:[%s12] sm:$0x1]
  %v4966 = vperm.slane %v4964, 0
  %v4969 = vsel %vm2171, %v4955, 0
  %v4972 = vsel %vm2171, %v4956, 0
  %v4975 = vsel %vm2171, %v4957, 0
  %v4978 = vsel %vm2171, %v4958, 0
  %v4981 = vsel %vm2171, %v4959, 0
  %v4984 = vsel %vm2171, %v4960, 0
  %v4987 = vsel %vm2171, %v4961, 0
  %v4990 = vsel %vm2171, %v4962, 0
  %v4993 = vsel %vm2372, %v4963, 0
  %4995 = vmatpush.bf16.msra.mxu0 0
  %4996 = vmatpush.bf16.msra.mxu0 0
  %4997 = vmatpush.bf16.msra.mxu0 0
  %4998 = vmatpush.bf16.msra.mxu0 0
  %4999 = vmatpush.bf16.msra.mxu0 0
  %5000 = vmatpush.bf16.msra.mxu0 0
  %5001 = vmatpush.bf16.msra.mxu0 0
  %5002 = vmatpush.bf16.msra.mxu0 %v4993
  %5003 = vmatmul.bf16.gmra.mxu0 %v4969
  %v5004 = vpop.f32.mrf.mxu0
  %v5005 = vadd.f32 %v4966, %v5004
  %v5006 = vpop.f32.mrf.mxu0
  %v5007 = vadd.f32 %v4966, %v5006
  %5008 = vmatmul.bf16.gmra.mxu0 %v4972
  %v5009 = vpop.f32.mrf.mxu0
  %v5010 = vadd.f32 %v4966, %v5009
  %v5011 = vpop.f32.mrf.mxu0
  %v5012 = vadd.f32 %v4966, %v5011
  %5013 = vmatmul.bf16.gmra.mxu0 %v4975
  %v5014 = vpop.f32.mrf.mxu0
  %v5015 = vadd.f32 %v4966, %v5014
  %v5016 = vpop.f32.mrf.mxu0
  %v5017 = vadd.f32 %v4966, %v5016
  %5018 = vmatmul.bf16.gmra.mxu0 %v4978
  %v5019 = vpop.f32.mrf.mxu0
  %v5020 = vadd.f32 %v4966, %v5019
  %v5021 = vpop.f32.mrf.mxu0
  %v5022 = vadd.f32 %v4966, %v5021
  %5023 = vmatmul.bf16.gmra.mxu0 %v4981
  %v5024 = vpop.f32.mrf.mxu0
  %v5025 = vadd.f32 %v4966, %v5024
  %v5026 = vpop.f32.mrf.mxu0
  %v5027 = vadd.f32 %v4966, %v5026
  %5028 = vmatmul.bf16.gmra.mxu0 %v4984
  %v5029 = vpop.f32.mrf.mxu0
  %v5030 = vadd.f32 %v4966, %v5029
  %v5031 = vpop.f32.mrf.mxu0
  %v5032 = vadd.f32 %v4966, %v5031
  %5033 = vmatmul.bf16.gmra.mxu0 %v4987
  %v5034 = vpop.f32.mrf.mxu0
  %v5035 = vadd.f32 %v4966, %v5034
  %v5036 = vpop.f32.mrf.mxu0
  %v5037 = vadd.f32 %v4966, %v5036
  %5038 = vmatmul.bf16.gmra.mxu0 %v4990
  %v5039 = vpop.f32.mrf.mxu0
  %v5040 = vadd.f32 %v4966, %v5039
  %v5041 = vpop.f32.mrf.mxu0
  %v5042 = vadd.f32 %v4966, %v5041
  %5043 = vdwg.mxu0
  %vm5044 = vcmp.gt.f32.partialorder %v5005, 0.0
  %vm5045 = vcmp.gt.f32.partialorder %v5007, 0.0
  %vm5046 = vcmp.gt.f32.partialorder %v5010, 0.0
  %vm5047 = vcmp.gt.f32.partialorder %v5012, 0.0
  %vm5048 = vcmp.gt.f32.partialorder %v5015, 0.0
  %vm5049 = vcmp.gt.f32.partialorder %v5017, 0.0
  %vm5050 = vcmp.gt.f32.partialorder %v5020, 0.0
  %vm5051 = vcmp.gt.f32.partialorder %v5022, 0.0
  %vm5052 = vcmp.gt.f32.partialorder %v5025, 0.0
  %vm5053 = vcmp.gt.f32.partialorder %v5027, 0.0
  %vm5054 = vcmp.gt.f32.partialorder %v5030, 0.0
  %vm5055 = vcmp.gt.f32.partialorder %v5032, 0.0
  %vm5056 = vcmp.gt.f32.partialorder %v5035, 0.0
  %vm5057 = vcmp.gt.f32.partialorder %v5037, 0.0
  %vm5058 = vcmp.gt.f32.partialorder %v5040, 0.0
  %vm5059 = vcmp.gt.f32.partialorder %v5042, 0.0
  %v5060 = vmin.f32 %v5005, 0.0
  %v5061 = vmin.f32 %v5007, 0.0
  %v5062 = vmin.f32 %v5010, 0.0
  %v5063 = vmin.f32 %v5012, 0.0
  %v5064 = vmin.f32 %v5015, 0.0
  %v5065 = vmin.f32 %v5017, 0.0
  %v5066 = vmin.f32 %v5020, 0.0
  %v5067 = vmin.f32 %v5022, 0.0
  %v5068 = vmin.f32 %v5025, 0.0
  %v5069 = vmin.f32 %v5027, 0.0
  %v5070 = vmin.f32 %v5030, 0.0
  %v5071 = vmin.f32 %v5032, 0.0
  %v5072 = vmin.f32 %v5035, 0.0
  %v5073 = vmin.f32 %v5037, 0.0
  %v5074 = vmin.f32 %v5040, 0.0
  %v5075 = vmin.f32 %v5042, 0.0
  %v5076 = vmul.f32 %v5060, 1.442695
  %v5077 = vpow.pop %v5076
  %v5078 = vmul.f32 %v5061, 1.442695
  %v5079 = vpow.pop %v5078
  %v5080 = vmul.f32 %v5062, 1.442695
  %v5081 = vpow.pop %v5080
  %v5082 = vmul.f32 %v5063, 1.442695
  %v5083 = vpow.pop %v5082
  %v5084 = vmul.f32 %v5064, 1.442695
  %v5085 = vpow.pop %v5084
  %v5086 = vmul.f32 %v5065, 1.442695
  %v5087 = vpow.pop %v5086
  %v5088 = vmul.f32 %v5066, 1.442695
  %v5089 = vpow.pop %v5088
  %v5090 = vmul.f32 %v5067, 1.442695
  %v5091 = vpow.pop %v5090
  %v5092 = vmul.f32 %v5068, 1.442695
  %v5093 = vpow.pop %v5092
  %v5094 = vmul.f32 %v5069, 1.442695
  %v5095 = vpow.pop %v5094
  %v5096 = vmul.f32 %v5070, 1.442695
  %v5097 = vpow.pop %v5096
  %v5098 = vmul.f32 %v5071, 1.442695
  %v5099 = vpow.pop %v5098
  %v5100 = vmul.f32 %v5072, 1.442695
  %v5101 = vpow.pop %v5100
  %v5102 = vmul.f32 %v5073, 1.442695
  %v5103 = vpow.pop %v5102
  %v5104 = vmul.f32 %v5074, 1.442695
  %v5105 = vpow.pop %v5104
  %v5106 = vmul.f32 %v5075, 1.442695
  %v5107 = vpow.pop %v5106
  %v5108 = vsub.f32 %v5077, 1.0
  %v5109 = vsub.f32 %v5079, 1.0
  %v5110 = vsub.f32 %v5081, 1.0
  %v5111 = vsub.f32 %v5083, 1.0
  %v5112 = vsub.f32 %v5085, 1.0
  %v5113 = vsub.f32 %v5087, 1.0
  %v5114 = vsub.f32 %v5089, 1.0
  %v5115 = vsub.f32 %v5091, 1.0
  %v5116 = vsub.f32 %v5093, 1.0
  %v5117 = vsub.f32 %v5095, 1.0
  %v5118 = vsub.f32 %v5097, 1.0
  %v5119 = vsub.f32 %v5099, 1.0
  %v5120 = vsub.f32 %v5101, 1.0
  %v5121 = vsub.f32 %v5103, 1.0
  %v5122 = vsub.f32 %v5105, 1.0
  %v5123 = vsub.f32 %v5107, 1.0
  %v5124 = vmul.f32 %v5108, 1.442695
  %v5125 = vpow.pop %v5124
  %v5126 = vmul.f32 %v5109, 1.442695
  %v5127 = vpow.pop %v5126
  %v5128 = vmul.f32 %v5110, 1.442695
  %v5129 = vpow.pop %v5128
  %v5130 = vmul.f32 %v5111, 1.442695
  %v5131 = vpow.pop %v5130
  %v5132 = vmul.f32 %v5112, 1.442695
  %v5133 = vpow.pop %v5132
  %v5134 = vmul.f32 %v5113, 1.442695
  %v5135 = vpow.pop %v5134
  %v5136 = vmul.f32 %v5114, 1.442695
  %v5137 = vpow.pop %v5136
  %v5138 = vmul.f32 %v5115, 1.442695
  %v5139 = vpow.pop %v5138
  %v5140 = vmul.f32 %v5116, 1.442695
  %v5141 = vpow.pop %v5140
  %v5142 = vmul.f32 %v5117, 1.442695
  %v5143 = vpow.pop %v5142
  %v5144 = vmul.f32 %v5118, 1.442695
  %v5145 = vpow.pop %v5144
  %v5146 = vmul.f32 %v5119, 1.442695
  %v5147 = vpow.pop %v5146
  %v5148 = vmul.f32 %v5120, 1.442695
  %v5149 = vpow.pop %v5148
  %v5150 = vmul.f32 %v5121, 1.442695
  %v5151 = vpow.pop %v5150
  %v5152 = vmul.f32 %v5122, 1.442695
  %v5153 = vpow.pop %v5152
  %v5154 = vmul.f32 %v5123, 1.442695
  %v5155 = vpow.pop %v5154
  %v5156 = vsub.f32 %v5125, 1.0
  %v5157 = vsub.f32 %v5127, 1.0
  %v5158 = vsub.f32 %v5129, 1.0
  %v5159 = vsub.f32 %v5131, 1.0
  %v5160 = vsub.f32 %v5133, 1.0
  %v5161 = vsub.f32 %v5135, 1.0
  %v5162 = vsub.f32 %v5137, 1.0
  %v5163 = vsub.f32 %v5139, 1.0
  %v5164 = vsub.f32 %v5141, 1.0
  %v5165 = vsub.f32 %v5143, 1.0
  %v5166 = vsub.f32 %v5145, 1.0
  %v5167 = vsub.f32 %v5147, 1.0
  %v5168 = vsub.f32 %v5149, 1.0
  %v5169 = vsub.f32 %v5151, 1.0
  %v5170 = vsub.f32 %v5153, 1.0
  %v5171 = vsub.f32 %v5155, 1.0
  %v5172 = vsel %vm5044, %v5005, %v5156
  %v5173 = vsel %vm5045, %v5007, %v5157
  %v5174 = vsel %vm5046, %v5010, %v5158
  %v5175 = vsel %vm5047, %v5012, %v5159
  %v5176 = vsel %vm5048, %v5015, %v5160
  %v5177 = vsel %vm5049, %v5017, %v5161
  %v5178 = vsel %vm5050, %v5020, %v5162
  %v5179 = vsel %vm5051, %v5022, %v5163
  %v5180 = vsel %vm5052, %v5025, %v5164
  %v5181 = vsel %vm5053, %v5027, %v5165
  %v5182 = vsel %vm5054, %v5030, %v5166
  %v5183 = vsel %vm5055, %v5032, %v5167
  %v5184 = vsel %vm5056, %v5035, %v5168
  %v5185 = vsel %vm5057, %v5037, %v5169
  %v5186 = vsel %vm5058, %v5040, %v5170
  %v5187 = vsel %vm5059, %v5042, %v5171
  %5188 = vst.msk [vmem:[%s13] sm:$0xff] %vm2196, %v5172
  %5189 = vst.msk [vmem:[%s13 + $0x8] sm:$0xff] %vm2196, %v5173
  %5190 = vst.msk [vmem:[%s13 + $0x10] sm:$0xff] %vm2196, %v5174
  %5191 = vst.msk [vmem:[%s13 + $0x18] sm:$0xff] %vm2196, %v5175
  %5192 = vst.msk [vmem:[%s13 + $0x20] sm:$0xff] %vm2196, %v5176
  %5193 = vst.msk [vmem:[%s13 + $0x28] sm:$0xff] %vm2196, %v5177
  %5194 = vst.msk [vmem:[%s13 + $0x30] sm:$0xff] %vm2196, %v5178
  %5195 = vst.msk [vmem:[%s13 + $0x38] sm:$0xff] %vm2196, %v5179
  %5196 = vst.msk [vmem:[%s13 + $0x40] sm:$0xff] %vm2196, %v5180
  %5197 = vst.msk [vmem:[%s13 + $0x48] sm:$0xff] %vm2196, %v5181
  %5198 = vst.msk [vmem:[%s13 + $0x50] sm:$0xff] %vm2196, %v5182
  %5199 = vst.msk [vmem:[%s13 + $0x58] sm:$0xff] %vm2196, %v5183
  %5200 = vst.msk [vmem:[%s13 + $0x60] sm:$0xff] %vm2196, %v5184
  %5201 = vst.msk [vmem:[%s13 + $0x68] sm:$0xff] %vm2196, %v5185
  %5202 = vst.msk [vmem:[%s13 + $0x70] sm:$0xff] %vm2196, %v5186
  %5203 = vst.msk [vmem:[%s13 + $0x78] sm:$0xff] %vm2196, %v5187
  // Predicated region
  $region54: #{tpu_custom_call.1} parent=0 // pred_check
    _
  $region55: #{tpu_custom_call.1} parent=0 // pred_check_branch
    %5205 = sbr.rel (0) target = $region57
  $region56: #{tpu_custom_call.1} parent=0 // pred_region
    _
  $region57: #{tpu_custom_call.1} parent=0 // pred_fallthru
    _
  // Predicated region
  $region58: #{tpu_custom_call.1} parent=0 // pred_check
    _
  $region59: #{tpu_custom_call.1} parent=0 // pred_check_branch
    %5207 = sbr.rel (0) target = $region61
  $region60: #{tpu_custom_call.1} parent=0 // pred_region
    _
  $region61: #{tpu_custom_call.1} parent=0 // pred_fallthru
    _

</llo_original>
